<compile_context>
chip_gen: v5e
topology: v5e:2x2
jax: 0.10.0
libtpu: 0.0.40
codegen_flags: <defaults>
</compile_context>

<pallas_src>
import functools
import math

import jax
import jax.numpy as jnp
from jax import lax
from jax.experimental import pallas as pl
from jax.experimental.pallas import tpu as pltpu


def _sdpa_kernel(q_ref, k_ref, v_ref, o_ref,
                 qs_scr, m_scr, l_scr, acc_scr, *, scale, matmul_dtype):
    # q_ref: (1, tq, D)  k_ref/v_ref: (1, tk, D)  o_ref: (1, tq, D)
    # qs_scr: (tq, D) matmul_dtype   m_scr/l_scr: (tq, 1) f32   acc_scr: (tq, D) f32
    kv = pl.program_id(2)

    @pl.when(kv == 0)
    def _init():
        # Hoist the softmax scale out of the kv loop: scale the q tile once per
        # q block ((tq, D) VPU work) instead of the (tq, tk) scores every step.
        qs_scr[...] = (q_ref[0].astype(jnp.float32) * scale).astype(matmul_dtype)
        m_scr[...] = jnp.full(m_scr.shape, -jnp.inf, m_scr.dtype)
        l_scr[...] = jnp.zeros(l_scr.shape, l_scr.dtype)
        acc_scr[...] = jnp.zeros(acc_scr.shape, acc_scr.dtype)

    k = k_ref[0].astype(matmul_dtype)          # (tk, D)
    v = v_ref[0].astype(matmul_dtype)          # (tk, D)

    # scores (tq, tk) = (q * scale) @ k^T : contract over D of both, no transpose.
    s = lax.dot_general(qs_scr[...], k, (((1,), (1,)), ((), ())),
                        preferred_element_type=jnp.float32)

    m_prev = m_scr[...]                                          # (tq, 1)
    m_new = jnp.maximum(m_prev, s.max(axis=-1, keepdims=True))   # (tq, 1)
    alpha = jnp.exp(m_prev - m_new)                              # rescale of old acc
    p = jnp.exp(s - m_new)                                       # (tq, tk) f32

    l_scr[...] = alpha * l_scr[...] + p.sum(axis=-1, keepdims=True)
    acc_scr[...] = alpha * acc_scr[...] + jnp.dot(
        p.astype(matmul_dtype), v, preferred_element_type=jnp.float32)
    m_scr[...] = m_new

    @pl.when(kv == pl.num_programs(2) - 1)
    def _finalize():
        # Runs once per q tile, off the hot kv loop -> exact normalization.
        o_ref[0] = (acc_scr[...] / l_scr[...]).astype(o_ref.dtype)


def _pick_tile(s, preferred):
    """Largest lane/sublane-friendly tile (multiple of 8) dividing s, <= preferred."""
    if s <= preferred:
        return s
    for t in range(preferred, 7, -1):
        if s % t == 0 and t % 8 == 0:
            return t
    # TODO(synk): pad + mask ragged sequence lengths instead of full-extent fallback.
    return s


def _vmem_bytes(tq, tk, D, in_dtype, out_dtype, mm_dtype):
    in_b = jnp.dtype(in_dtype).itemsize
    out_b = jnp.dtype(out_dtype).itemsize
    mm_b = jnp.dtype(mm_dtype).itemsize
    blocks = 2 * (tq * D * in_b + 2 * tk * D * in_b + tq * D * out_b)  # double-buffered
    scratch = tq * D * mm_b + tq * D * 4 + 2 * tq * 4                  # qs, acc, m, l
    temps = 3 * tq * tk * 4                                            # s / p headroom
    return blocks + scratch + temps


def scaled_dot_product_attention(q, k, v, d_model=None, *,
                                 matmul_dtype=None, tq=None, tk=None):
    """q: (..., Sq, D); k, v: (..., Sk, D) -> (..., Sq, D). Leading dims are batched."""
    *lead, Sq, D = q.shape
    Sk = k.shape[-2]
    if d_model is None:
        d_model = D
    scale = 1.0 / math.sqrt(float(d_model))

    # Fold all leading (batch / head) dims into one "parallel" grid axis.
    q3 = q.reshape(-1, Sq, D)
    k3 = k.reshape(-1, Sk, D)
    v3 = v.reshape(-1, Sk, D)
    B = q3.shape[0]

    if matmul_dtype is None:
        # bf16 MXU operands for <=16-bit inputs (recommended TPU path); keep f32
        # matmuls for f32 callers unless they opt in to bf16 explicitly.
        matmul_dtype = jnp.bfloat16 if q3.dtype.itemsize <= 2 else q3.dtype

    if tq is None:
        tq = _pick_tile(Sq, 512)   # big q tile => KV re-streamed fewer times
    if tk is None:
        tk = _pick_tile(Sk, 256)   # fills the 256-wide MXU N dim on v6e/v7x
    assert Sq % tq == 0 and Sk % tk == 0, (Sq, tq, Sk, tk)

    grid = (B, Sq // tq, Sk // tk)
    n_q_tiles = Sq // tq

    flops = 4 * B * Sq * Sk * D
    transcendentals = B * Sq * Sk
    bytes_accessed = ((q3.size + B * Sq * D) * q3.dtype.itemsize
                      + (k3.size * k3.dtype.itemsize
                         + v3.size * v3.dtype.itemsize) * n_q_tiles)

    vmem_need = _vmem_bytes(tq, tk, D, q3.dtype, q3.dtype, matmul_dtype)
    vmem_limit = int(min(max(2 * vmem_need, 32 * 1024 * 1024), 64 * 1024 * 1024))

    kernel = functools.partial(_sdpa_kernel, scale=scale, matmul_dtype=matmul_dtype)

    out3 = pl.pallas_call(
        kernel,
        out_shape=jax.ShapeDtypeStruct((B, Sq, D), q3.dtype),
        grid_spec=pltpu.PrefetchScalarGridSpec(
            num_scalar_prefetch=0,
            grid=grid,
            in_specs=[
                pl.BlockSpec((1, tq, D), lambda b, i, j: (b, i, 0)),   # q (resident over kv)
                pl.BlockSpec((1, tk, D), lambda b, i, j: (b, j, 0)),   # k
                pl.BlockSpec((1, tk, D), lambda b, i, j: (b, j, 0)),   # v
            ],
            out_specs=pl.BlockSpec((1, tq, D), lambda b, i, j: (b, i, 0)),
            scratch_shapes=[
                pltpu.VMEM((tq, D), matmul_dtype),   # pre-scaled q tile
                pltpu.VMEM((tq, 1), jnp.float32),    # running max m
                pltpu.VMEM((tq, 1), jnp.float32),    # running denom l
                pltpu.VMEM((tq, D), jnp.float32),    # output accumulator
            ],
        ),
        compiler_params=pltpu.CompilerParams(
            dimension_semantics=("parallel", "parallel", "arbitrary"),
            vmem_limit_bytes=vmem_limit),
        cost_estimate=pl.CostEstimate(
            flops=flops,
            transcendentals=transcendentals,
            bytes_accessed=bytes_accessed),
    )(q3, k3, v3)

    return out3.reshape(*lead, Sq, D)


def _sdpa_ref(q, k, v, d_model):
    qf, kf, vf = (x.astype(jnp.float32) for x in (q, k, v))
    scores = jnp.einsum("bqd,bkd->bqk", qf, kf) / jnp.sqrt(jnp.float32(d_model))
    w = jax.nn.softmax(scores, axis=-1)
    return jnp.einsum("bqk,bkd->bqd", w, vf)


if __name__ == "__main__":
    # batch=2, seq=512, d_model=128: lane-dense D, exercises the q-resident /
    # kv-streaming grid and the online-softmax accumulation across kv steps.
    B, S, D = 2, 512, 128
    key = jax.random.PRNGKey(0)
    kq, kk, kv_ = jax.random.split(key, 3)

    # 1) Recommended TPU path: bf16 inputs -> bf16 MXU operands, f32 softmax/acc.
    q = jax.random.normal(kq, (B, S, D), jnp.float32).astype(jnp.bfloat16)
    k = jax.random.normal(kk, (B, S, D), jnp.float32).astype(jnp.bfloat16)
    v = jax.random.normal(kv_, (B, S, D), jnp.float32).astype(jnp.bfloat16)
    out = scaled_dot_product_attention(q, k, v, d_model=D)
    jax.block_until_ready(out)
    ref = _sdpa_ref(q, k, v, D)
    assert out.shape == (B, S, D) and out.dtype == jnp.bfloat16
    err = float(jnp.max(jnp.abs(out.astype(jnp.float32) - ref)))
    assert err < 3e-2, f"bf16 path max abs err {err}"   # bf16-operand error budget

    # 2) f32-exact path with smaller tiles: exercises the full (B, q, kv) grid.
    qf = jax.random.normal(kq, (B, S, D), jnp.float32)
    kf = jax.random.normal(kk, (B, S, D), jnp.float32)
    vf = jax.random.normal(kv_, (B, S, D), jnp.float32)
    outf = scaled_dot_product_attention(qf, kf, vf, d_model=D,
                                        matmul_dtype=jnp.float32, tq=256, tk=128)
    jax.block_until_ready(outf)
    reff = _sdpa_ref(qf, kf, vf, D)
    errf = float(jnp.max(jnp.abs(outf - reff)))
    assert errf < 5e-3, f"f32 path max abs err {errf}"

    print("KERNEL_OK")
</pallas_src>

<mosaic_0001>
module attributes {stable_mosaic.version = 11 : i64} {
  func.func @_sdpa_kernel(%arg0: i32, %arg1: i32, %arg2: i32, %arg3: memref<1x512x128xbf16, #tpu.memory_space<vmem>>, %arg4: memref<1x256x128xbf16, #tpu.memory_space<vmem>>, %arg5: memref<1x256x128xbf16, #tpu.memory_space<vmem>>, %arg6: memref<1x512x128xbf16, #tpu.memory_space<vmem>>, %arg7: memref<512x128xbf16, #tpu.memory_space<vmem>>, %arg8: memref<512x1xf32, #tpu.memory_space<vmem>>, %arg9: memref<512x1xf32, #tpu.memory_space<vmem>>, %arg10: memref<512x128xf32, #tpu.memory_space<vmem>>) attributes {dimension_semantics = [#tpu.dimension_semantics<parallel>, #tpu.dimension_semantics<parallel>, #tpu.dimension_semantics<arbitrary>], iteration_bounds = array<i64: 2, 1, 2>, scalar_prefetch = 0 : i64, scratch_operands = 4 : i64, tpu.core_type = #tpu.core_type<tc>, window_params = [{transform_indices = @transform_0, window_bounds = array<i64: 1, 512, 128>}, {transform_indices = @transform_1, window_bounds = array<i64: 1, 256, 128>}, {transform_indices = @transform_2, window_bounds = array<i64: 1, 256, 128>}, {transform_indices = @transform_3, window_bounds = array<i64: 1, 512, 128>}]} {
    %c0_i32 = arith.constant 0 : i32
    %0 = arith.cmpi eq, %arg2, %c0_i32 : i32
    %1 = arith.extui %0 : i1 to i32
    %c0_i32_0 = arith.constant 0 : i32
    %2 = arith.cmpi ne, %1, %c0_i32_0 : i32
    scf.if %2 {
      %c0_24 = arith.constant 0 : index
      %c0_25 = arith.constant 0 : index
      %c0_26 = arith.constant 0 : index
      %35 = vector.load %arg3[%c0_24, %c0_25, %c0_26] : memref<1x512x128xbf16, #tpu.memory_space<vmem>>, vector<1x512x128xbf16>
      %36 = vector.shape_cast %35 : vector<1x512x128xbf16> to vector<512x128xbf16>
      %37 = arith.extf %36 : vector<512x128xbf16> to vector<512x128xf32>
      %cst_27 = arith.constant 0.0883883461 : f32
      %38 = vector.broadcast %cst_27 : f32 to vector<512x128xf32>
      %39 = arith.mulf %37, %38 : vector<512x128xf32>
      %40 = arith.truncf %39 : vector<512x128xf32> to vector<512x128xbf16>
      %c0_28 = arith.constant 0 : index
      %c0_29 = arith.constant 0 : index
      %41 = vector.load %arg7[%c0_28, %c0_29] : memref<512x128xbf16, #tpu.memory_space<vmem>>, vector<512x128xbf16>
      tpu.vector_store %arg7[%c0_28, %c0_29], %40 {strides = array<i32>} : memref<512x128xbf16, #tpu.memory_space<vmem>>, vector<512x128xbf16>,
      %cst_30 = arith.constant 0xFF800000 : f32
      %42 = vector.broadcast %cst_30 : f32 to vector<512x1xf32>
      %c0_31 = arith.constant 0 : index
      %c0_32 = arith.constant 0 : index
      %43 = vector.load %arg8[%c0_31, %c0_32] : memref<512x1xf32, #tpu.memory_space<vmem>>, vector<512x1xf32>
      tpu.vector_store %arg8[%c0_31, %c0_32], %42 {strides = array<i32>} : memref<512x1xf32, #tpu.memory_space<vmem>>, vector<512x1xf32>,
      %cst_33 = arith.constant 0.000000e+00 : f32
      %44 = vector.broadcast %cst_33 : f32 to vector<512x1xf32>
      %c0_34 = arith.constant 0 : index
      %c0_35 = arith.constant 0 : index
      %45 = vector.load %arg9[%c0_34, %c0_35] : memref<512x1xf32, #tpu.memory_space<vmem>>, vector<512x1xf32>
      tpu.vector_store %arg9[%c0_34, %c0_35], %44 {strides = array<i32>} : memref<512x1xf32, #tpu.memory_space<vmem>>, vector<512x1xf32>,
      %cst_36 = arith.constant 0.000000e+00 : f32
      %46 = vector.broadcast %cst_36 : f32 to vector<512x128xf32>
      %c0_37 = arith.constant 0 : index
      %c0_38 = arith.constant 0 : index
      %47 = vector.load %arg10[%c0_37, %c0_38] : memref<512x128xf32, #tpu.memory_space<vmem>>, vector<512x128xf32>
      tpu.vector_store %arg10[%c0_37, %c0_38], %46 {strides = array<i32>} : memref<512x128xf32, #tpu.memory_space<vmem>>, vector<512x128xf32>,
    } else {
    }
    %c0 = arith.constant 0 : index
    %c0_1 = arith.constant 0 : index
    %c0_2 = arith.constant 0 : index
    %3 = vector.load %arg4[%c0, %c0_1, %c0_2] : memref<1x256x128xbf16, #tpu.memory_space<vmem>>, vector<1x256x128xbf16>
    %4 = vector.shape_cast %3 : vector<1x256x128xbf16> to vector<256x128xbf16>
    %c0_3 = arith.constant 0 : index
    %c0_4 = arith.constant 0 : index
    %c0_5 = arith.constant 0 : index
    %5 = vector.load %arg5[%c0_3, %c0_4, %c0_5] : memref<1x256x128xbf16, #tpu.memory_space<vmem>>, vector<1x256x128xbf16>
    %6 = vector.shape_cast %5 : vector<1x256x128xbf16> to vector<256x128xbf16>
    %c0_6 = arith.constant 0 : index
    %c0_7 = arith.constant 0 : index
    %7 = vector.load %arg7[%c0_6, %c0_7] : memref<512x128xbf16, #tpu.memory_space<vmem>>, vector<512x128xbf16>
    %cst = arith.constant dense<0.000000e+00> : vector<512x256xf32>
    %8 = tpu.matmul %7, %4, %cst {dimension_numbers = #tpu.dot_dimension_numbers<[1], [1], [0], [0], [0, 0, 1, 0], [], []>} : vector<512x128xbf16>, vector<256x128xbf16>, vector<512x256xf32> -> vector<512x256xf32>
    %c0_8 = arith.constant 0 : index
    %c0_9 = arith.constant 0 : index
    %9 = vector.load %arg8[%c0_8, %c0_9] : memref<512x1xf32, #tpu.memory_space<vmem>>, vector<512x1xf32>
    %cst_10 = arith.constant dense<0xFF800000> : vector<512xf32>
    %10 = vector.multi_reduction <maximumf>, %8, %cst_10 [1] : vector<512x256xf32> to vector<512xf32>
    %11 = vector.shape_cast %10 : vector<512xf32> to vector<512x1xf32>
    %12 = arith.maximumf %9, %11 : vector<512x1xf32>
    %13 = arith.subf %9, %12 : vector<512x1xf32>
    %14 = math.exp %13 : vector<512x1xf32>
    %15 = vector.broadcast %12 : vector<512x1xf32> to vector<512x256xf32>
    %16 = arith.subf %8, %15 : vector<512x256xf32>
    %17 = math.exp %16 : vector<512x256xf32>
    %c0_11 = arith.constant 0 : index
    %c0_12 = arith.constant 0 : index
    %18 = vector.load %arg9[%c0_11, %c0_12] : memref<512x1xf32, #tpu.memory_space<vmem>>, vector<512x1xf32>
    %19 = arith.mulf %14, %18 : vector<512x1xf32>
    %cst_13 = arith.constant dense<0.000000e+00> : vector<512xf32>
    %20 = vector.multi_reduction <add>, %17, %cst_13 [1] : vector<512x256xf32> to vector<512xf32>
    %21 = vector.shape_cast %20 : vector<512xf32> to vector<512x1xf32>
    %22 = arith.addf %19, %21 : vector<512x1xf32>
    %c0_14 = arith.constant 0 : index
    %c0_15 = arith.constant 0 : index
    %23 = vector.load %arg9[%c0_14, %c0_15] : memref<512x1xf32, #tpu.memory_space<vmem>>, vector<512x1xf32>
    tpu.vector_store %arg9[%c0_14, %c0_15], %22 {strides = array<i32>} : memref<512x1xf32, #tpu.memory_space<vmem>>, vector<512x1xf32>,
    %c0_16 = arith.constant 0 : index
    %c0_17 = arith.constant 0 : index
    %24 = vector.load %arg10[%c0_16, %c0_17] : memref<512x128xf32, #tpu.memory_space<vmem>>, vector<512x128xf32>
    %25 = vector.broadcast %14 : vector<512x1xf32> to vector<512x128xf32>
    %26 = arith.mulf %25, %24 : vector<512x128xf32>
    %27 = arith.truncf %17 : vector<512x256xf32> to vector<512x256xbf16>
    %cst_18 = arith.constant dense<0.000000e+00> : vector<512x128xf32>
    %28 = tpu.matmul %27, %6, %cst_18 {dimension_numbers = #tpu.dot_dimension_numbers<[1], [0], [0], [1], [0, 0, 1, 1], [], []>} : vector<512x256xbf16>, vector<256x128xbf16>, vector<512x128xf32> -> vector<512x128xf32>
    %29 = arith.addf %26, %28 : vector<512x128xf32>
    %c0_19 = arith.constant 0 : index
    %c0_20 = arith.constant 0 : index
    %30 = vector.load %arg10[%c0_19, %c0_20] : memref<512x128xf32, #tpu.memory_space<vmem>>, vector<512x128xf32>
    tpu.vector_store %arg10[%c0_19, %c0_20], %29 {strides = array<i32>} : memref<512x128xf32, #tpu.memory_space<vmem>>, vector<512x128xf32>,
    %c0_21 = arith.constant 0 : index
    %c0_22 = arith.constant 0 : index
    %31 = vector.load %arg8[%c0_21, %c0_22] : memref<512x1xf32, #tpu.memory_space<vmem>>, vector<512x1xf32>
    tpu.vector_store %arg8[%c0_21, %c0_22], %12 {strides = array<i32>} : memref<512x1xf32, #tpu.memory_space<vmem>>, vector<512x1xf32>,
    %c1_i32 = arith.constant 1 : i32
    %32 = arith.cmpi eq, %arg2, %c1_i32 : i32
    %33 = arith.extui %32 : i1 to i32
    %c0_i32_23 = arith.constant 0 : i32
    %34 = arith.cmpi ne, %33, %c0_i32_23 : i32
    scf.if %34 {
      %c0_24 = arith.constant 0 : index
      %c0_25 = arith.constant 0 : index
      %35 = vector.load %arg10[%c0_24, %c0_25] : memref<512x128xf32, #tpu.memory_space<vmem>>, vector<512x128xf32>
      %c0_26 = arith.constant 0 : index
      %c0_27 = arith.constant 0 : index
      %36 = vector.load %arg9[%c0_26, %c0_27] : memref<512x1xf32, #tpu.memory_space<vmem>>, vector<512x1xf32>
      %37 = vector.broadcast %36 : vector<512x1xf32> to vector<512x128xf32>
      %38 = arith.divf %35, %37 : vector<512x128xf32>
      %39 = arith.truncf %38 : vector<512x128xf32> to vector<512x128xbf16>
      %c0_28 = arith.constant 0 : index
      %c0_29 = arith.constant 0 : index
      %c0_30 = arith.constant 0 : index
      %40 = vector.load %arg6[%c0_28, %c0_29, %c0_30] : memref<1x512x128xbf16, #tpu.memory_space<vmem>>, vector<1x512x128xbf16>
      %41 = vector.shape_cast %40 : vector<1x512x128xbf16> to vector<512x128xbf16>
      %42 = vector.shape_cast %39 : vector<512x128xbf16> to vector<1x512x128xbf16>
      tpu.vector_store %arg6[%c0_28, %c0_29, %c0_30], %42 {strides = array<i32>} : memref<1x512x128xbf16, #tpu.memory_space<vmem>>, vector<1x512x128xbf16>,
    } else {
    }
    return
  }
  func.func @transform_0(%arg0: i32, %arg1: i32, %arg2: i32) -> (i32, i32, i32) {
    %c0_i32 = arith.constant 0 : i32
    %c0_i32_0 = arith.constant 0 : i32
    return %arg0, %arg1, %c0_i32 : i32, i32, i32
  }
  func.func @transform_1(%arg0: i32, %arg1: i32, %arg2: i32) -> (i32, i32, i32) {
    %c0_i32 = arith.constant 0 : i32
    %c0_i32_0 = arith.constant 0 : i32
    return %arg0, %arg2, %c0_i32 : i32, i32, i32
  }
  func.func @transform_2(%arg0: i32, %arg1: i32, %arg2: i32) -> (i32, i32, i32) {
    %c0_i32 = arith.constant 0 : i32
    %c0_i32_0 = arith.constant 0 : i32
    return %arg0, %arg2, %c0_i32 : i32, i32, i32
  }
  func.func @transform_3(%arg0: i32, %arg1: i32, %arg2: i32) -> (i32, i32, i32) {
    %c0_i32 = arith.constant 0 : i32
    %c0_i32_0 = arith.constant 0 : i32
    return %arg0, %arg1, %c0_i32 : i32, i32, i32
  }
}

</mosaic_0001>

<llo_original>
// kernel: tpu_custom_call.1
$region0: #{tpu_custom_call.1}
  #allocation0 [shape = 'u32[]', space=smem, size = 0x4, offset = 0x4, fixed_abs, tag = 'smem constant byte address 0x4 - core index']
  #allocation1 [shape = 'u32[72,128]{1,0:T(1,128)}', space=vmem, size = 0x9000, scoped, tag = 'internal scratch']
  #allocation2 [shape = 'bf16[512,128]{1,0:T(8,128)(2,1)}', space=vmem, size = 0x20000, scoped, tag = 'scratch operand']
  #allocation3 [shape = 'f32[512,1]{1,0:T(8,128)}', space=vmem, size = 0x40000, scoped, tag = 'scratch operand']
  #allocation4 [shape = 'f32[512,1]{1,0:T(8,128)}', space=vmem, size = 0x40000, scoped, tag = 'scratch operand']
  #allocation5 [shape = 'f32[512,128]{1,0:T(8,128)}', space=vmem, size = 0x40000, scoped, tag = 'scratch operand']
  %s0 = inlined_call_operand.hbm [shape: bf16[2,512,128], index: 0, kind: input, shape index: {}]
  %s1 = inlined_call_operand.hbm [shape: bf16[2,512,128], index: 1, kind: input, shape index: {}]
  %s2 = inlined_call_operand.hbm [shape: bf16[2,512,128], index: 2, kind: input, shape index: {}]
  %s3 = inlined_call_operand.hbm [shape: bf16[2,512,128], index: 3, kind: output, shape index: {}]
  %s4 = sld [smem:[#allocation0]]
  $region65: #{tpu_custom_call.1} parent=0
    _
  %s6 = ssub.s32 1, %s4
  %s7 = scalar_select 0, %s6, %s4
  $region1: #{tpu_custom_call.1} parent=0
    #allocation6 [shape = 'u8[262144]{0}', space=vmem, size = 0x40000, scoped, tag = 'input window, operand 0']
    #allocation7 [shape = 's32[2]{0}', space=sflag, size = 0x8, scoped, tag = 'scoped memory for tpu_custom_call.1']
    #allocation8 [shape = 's32[2]{0}', space=sflag, size = 0x8, scoped, tag = 'scoped memory for tpu_custom_call.1']
    #allocation9 [shape = 'u8[131072]{0}', space=vmem, size = 0x20000, scoped, tag = 'input window, operand 1']
    #allocation10 [shape = 's32[2]{0}', space=sflag, size = 0x8, scoped, tag = 'scoped memory for tpu_custom_call.1']
    #allocation11 [shape = 'u8[131072]{0}', space=vmem, size = 0x20000, scoped, tag = 'input window, operand 2']
    #allocation12 [shape = 'u8[262144]{0}', space=vmem, size = 0x40000, scoped, tag = 'output window, operand 0']
    %8 = vsyncpa [#allocation7], 0
    %s9 = scalar_lea.sflag [#allocation7], 1
    %10 = vsyncpa %s9, 0
    %11 = vsyncpa [#allocation10], 0
    %s12 = scalar_lea.sflag [#allocation10], 1
    %13 = vsyncpa %s12, 0
    %14 = vsyncpa [#allocation8], 0
    %s15 = scalar_lea.sflag [#allocation8], 1
    %16 = vsyncpa %s15, 0
    loop: start=0, step=1, limit=6
    $region2: #{tpu_custom_call.1} parent=1 // loop_pre_header
      _
    $region3: #{tpu_custom_call.1} parent=1 // loop_header
      %s18 = sphi 0, %s22
      %p19 = scmp.ge.s32.totalorder %s18, 6
      %s25 = sphi 0, %s44
      %s26 = sphi 0, %s40
      %s27 = sphi 0, %s36
      %s28 = sphi 0, %s25
      %s29 = sphi 0, %s26
      %s30 = sphi 0, %s27
      %s31 = sphi 0, %s28
      %s32 = sphi 0, %s29
      %s33 = sphi 0, %s30
      %s49 = sphi 0, %s51
      %s52 = sphi 0, %s49
      %s53 = sphi 0, %s52
      %s69 = sphi 0, %s53
      %s77 = sphi 0, %s79
      %s80 = sphi 0, %s77
      %s81 = sphi 0, %s80
      %s97 = sphi 0, %s81
      %s105 = sphi 0, %s107
      %s108 = sphi 0, %s105
      %s109 = sphi 0, %s108
      %s125 = sphi 0, %s109
      %s133 = sphi 0, %s135
      %s136 = sphi 0, %s133
      %s137 = sphi 0, %s136
      %s153 = sphi 0, %s137
    $region4: #{tpu_custom_call.1} parent=1 // loop_header_branch
      %21 = sbr.rel (%p19) target = $region8
    $region5: #{tpu_custom_call.1} parent=1 // loop_body
      %s23 = ssub.s32 %s18, 1
      %s24 = ssub.s32 %s18, 2
      %s34 = sadd.s32 1, %s27
      %p35 = scmp.ge.s32.totalorder %s34, 2
      %s36 = scalar_select %p35, 0, %s34
      %s37 = sadd.s32 1, %s26
      %s38 = scalar_select %p35, %s37, %s26
      %p39 = scmp.ge.s32.totalorder %s38, 1
      %s40 = scalar_select %p39, 0, %s38
      %s41 = sadd.s32 1, %s25
      %s42 = scalar_select %p39, %s41, %s25
      %p43 = scmp.ge.s32.totalorder %s42, 2
      %s44 = scalar_select %p43, 0, %s42
      %s45 = ssub.s32 %s25, %s44
      %s46 = ssub.s32 %s26, %s40
      %s47 = sor.u32 %s45, %s46
      %p48 = scmp.eq.s32.totalorder %s47, 0
      %s50 = sadd.s32 %s49, 1
      %s51 = scalar_select %p48, %s49, %s50
      %p54 = pneg %p48
      %p55 = scmp.eq.s32.totalorder %s18, 3
      %p56 = por %p54, %p55
      %p57 = scmp.ne.s32.totalorder %s49, %s52
      %p58 = scmp.eq.s32.totalorder %s18, 0
      %p59 = por %p57, %p58
      %p60 = scmp.ne.s32.totalorder %s49, %s52
      %p61 = scmp.eq.s32.totalorder %s23, 3
      %p62 = por %p60, %p61
      %p63 = scmp.ne.s32.totalorder %s52, %s53
      %p64 = scmp.eq.s32.totalorder %s23, 0
      %p65 = por %p63, %p64
      %p66 = scmp.ne.s32.totalorder %s52, %s53
      %p67 = scmp.eq.s32.totalorder %s24, 3
      %p68 = por %p66, %p67
      %p70 = scmp.ne.s32.totalorder %s53, %s69
      %p71 = scmp.eq.s32.totalorder %s24, 0
      %p72 = por %p70, %p71
      %s73 = ssub.s32 %s25, %s44
      %s74 = ssub.s32 %s27, %s36
      %s75 = sor.u32 %s73, %s74
      %p76 = scmp.eq.s32.totalorder %s75, 0
      %s78 = sadd.s32 %s77, 1
      %s79 = scalar_select %p76, %s77, %s78
      %p82 = pneg %p76
      %p83 = scmp.eq.s32.totalorder %s18, 3
      %p84 = por %p82, %p83
      %p85 = scmp.ne.s32.totalorder %s77, %s80
      %p86 = scmp.eq.s32.totalorder %s18, 0
      %p87 = por %p85, %p86
      %p88 = scmp.ne.s32.totalorder %s77, %s80
      %p89 = scmp.eq.s32.totalorder %s23, 3
      %p90 = por %p88, %p89
      %p91 = scmp.ne.s32.totalorder %s80, %s81
      %p92 = scmp.eq.s32.totalorder %s23, 0
      %p93 = por %p91, %p92
      %p94 = scmp.ne.s32.totalorder %s80, %s81
      %p95 = scmp.eq.s32.totalorder %s24, 3
      %p96 = por %p94, %p95
      %p98 = scmp.ne.s32.totalorder %s81, %s97
      %p99 = scmp.eq.s32.totalorder %s24, 0
      %p100 = por %p98, %p99
      %s101 = ssub.s32 %s25, %s44
      %s102 = ssub.s32 %s27, %s36
      %s103 = sor.u32 %s101, %s102
      %p104 = scmp.eq.s32.totalorder %s103, 0
      %s106 = sadd.s32 %s105, 1
      %s107 = scalar_select %p104, %s105, %s106
      %p110 = pneg %p104
      %p111 = scmp.eq.s32.totalorder %s18, 3
      %p112 = por %p110, %p111
      %p113 = scmp.ne.s32.totalorder %s105, %s108
      %p114 = scmp.eq.s32.totalorder %s18, 0
      %p115 = por %p113, %p114
      %p116 = scmp.ne.s32.totalorder %s105, %s108
      %p117 = scmp.eq.s32.totalorder %s23, 3
      %p118 = por %p116, %p117
      %p119 = scmp.ne.s32.totalorder %s108, %s109
      %p120 = scmp.eq.s32.totalorder %s23, 0
      %p121 = por %p119, %p120
      %p122 = scmp.ne.s32.totalorder %s108, %s109
      %p123 = scmp.eq.s32.totalorder %s24, 3
      %p124 = por %p122, %p123
      %p126 = scmp.ne.s32.totalorder %s109, %s125
      %p127 = scmp.eq.s32.totalorder %s24, 0
      %p128 = por %p126, %p127
      %s129 = ssub.s32 %s25, %s44
      %s130 = ssub.s32 %s26, %s40
      %s131 = sor.u32 %s129, %s130
      %p132 = scmp.eq.s32.totalorder %s131, 0
      %s134 = sadd.s32 %s133, 1
      %s135 = scalar_select %p132, %s133, %s134
      %p138 = pneg %p132
      %p139 = scmp.eq.s32.totalorder %s18, 3
      %p140 = por %p138, %p139
      %p141 = scmp.ne.s32.totalorder %s133, %s136
      %p142 = scmp.eq.s32.totalorder %s18, 0
      %p143 = por %p141, %p142
      %p144 = scmp.ne.s32.totalorder %s133, %s136
      %p145 = scmp.eq.s32.totalorder %s23, 3
      %p146 = por %p144, %p145
      %p147 = scmp.ne.s32.totalorder %s136, %s137
      %p148 = scmp.eq.s32.totalorder %s23, 0
      %p149 = por %p147, %p148
      %p150 = scmp.ne.s32.totalorder %s136, %s137
      %p151 = scmp.eq.s32.totalorder %s24, 3
      %p152 = por %p150, %p151
      %p154 = scmp.ne.s32.totalorder %s137, %s153
      %p155 = scmp.eq.s32.totalorder %s24, 0
      %p156 = por %p154, %p155
      %p157 = scmp.le.s32.totalorder 1, %s18
      %p158 = scmp.lt.s32.totalorder %s18, 5
      %p159 = pnand %p157, %p158
      %p160 = pneg %p159
      // Predicated region
      $region9: #{tpu_custom_call.1} parent=5 // pred_check
        _
      $region10: #{tpu_custom_call.1} parent=5 // pred_check_branch
        %162 = sbr.rel (%p159) target = $region12
      $region11: #{tpu_custom_call.1} parent=5 // pred_region
        %s163 = ssub.s32 %s18, 1
      $region12: #{tpu_custom_call.1} parent=5 // pred_fallthru
        _
      %p164 = scmp.lt.s32.totalorder %s18, 4
      // Predicated region
      $region13: #{tpu_custom_call.1} parent=5 // pred_check
        %p165 = pneg %p164
      $region14: #{tpu_custom_call.1} parent=5 // pred_check_branch
        %167 = sbr.rel (%p165) target = $region16
      $region15: #{tpu_custom_call.1} parent=5 // pred_region
        // Predicated region
        $region17: #{tpu_custom_call.1} parent=15 // pred_check
          %p168 = pneg %p59
        $region18: #{tpu_custom_call.1} parent=15 // pred_check_branch
          %170 = sbr.rel (%p168) target = $region20
        $region19: #{tpu_custom_call.1} parent=15 // pred_region
          %s171 = sand.u32 %s49, 1
          %s172 = scalar_lea.sflag [#allocation7], %s171
          %s173 = sand.u32 %s49, 1
          %s174 = smul.addr %s173, 256
          %s175 = scalar_lea.vmem [#allocation6], %s174
          %s176 = smul.u32 64, %s26
          %178 = vsyncadd %s172, 0
          %s179 = smul.addr %s25, 64
          %s180 = sadd.s32 %s176, %s179
          %s181 = smul.addr %s180, 4
          %s182 = scalar_lea.hbm %s0, %s181
          %s183 = sshll.u32 %s182, 4
          %s184 = int_to_ptr.hbm [resolvable:$true] %s183
          %s185 = sshll.u32 %s175, 4
          %s186 = int_to_ptr.vmem [resolvable:$true] %s185
          %191 = dma.hbm_to_vmem [thread:$0]  %s184, 4096, %s186, %s172, 64, 64, 4
        $region20: #{tpu_custom_call.1} parent=15 // pred_fallthru
          _
        // Predicated region
        $region21: #{tpu_custom_call.1} parent=15 // pred_check
          %p192 = pneg %p87
        $region22: #{tpu_custom_call.1} parent=15 // pred_check_branch
          %194 = sbr.rel (%p192) target = $region24
        $region23: #{tpu_custom_call.1} parent=15 // pred_region
          %s195 = sand.u32 %s18, 1
          %s196 = scalar_lea.sflag [#allocation10], %s195
          %s197 = sand.u32 %s77, 1
          %s198 = smul.addr %s197, 128
          %s199 = scalar_lea.vmem [#allocation9], %s198
          %s200 = smul.u32 32, %s27
          %202 = vsyncadd %s196, 0
          %s203 = smul.addr %s25, 64
          %s204 = sadd.s32 %s200, %s203
          %s205 = smul.addr %s204, 4
          %s206 = scalar_lea.hbm %s1, %s205
          %s207 = sshll.u32 %s206, 4
          %s208 = int_to_ptr.hbm [resolvable:$true] %s207
          %s209 = sshll.u32 %s199, 4
          %s210 = int_to_ptr.vmem [resolvable:$true] %s209
          %215 = dma.hbm_to_vmem [thread:$0]  %s208, 2048, %s210, %s196, 64, 64, 4
        $region24: #{tpu_custom_call.1} parent=15 // pred_fallthru
          _
        // Predicated region
        $region25: #{tpu_custom_call.1} parent=15 // pred_check
          %p216 = pneg %p115
        $region26: #{tpu_custom_call.1} parent=15 // pred_check_branch
          %218 = sbr.rel (%p216) target = $region28
        $region27: #{tpu_custom_call.1} parent=15 // pred_region
          %s219 = sand.u32 %s18, 1
          %s220 = scalar_lea.sflag [#allocation10], %s219
          %s221 = sand.u32 %s105, 1
          %s222 = smul.addr %s221, 128
          %s223 = scalar_lea.vmem [#allocation11], %s222
          %s224 = smul.u32 32, %s27
          %226 = vsyncadd %s220, 0
          %s227 = smul.addr %s25, 64
          %s228 = sadd.s32 %s224, %s227
          %s229 = smul.addr %s228, 4
          %s230 = scalar_lea.hbm %s2, %s229
          %s231 = sshll.u32 %s230, 4
          %s232 = int_to_ptr.hbm [resolvable:$true] %s231
          %s233 = sshll.u32 %s223, 4
          %s234 = int_to_ptr.vmem [resolvable:$true] %s233
          %239 = dma.hbm_to_vmem [thread:$0]  %s232, 2048, %s234, %s220, 64, 64, 4
        $region28: #{tpu_custom_call.1} parent=15 // pred_fallthru
          _
      $region16: #{tpu_custom_call.1} parent=5 // pred_fallthru
        _
      %p240 = scmp.le.s32.totalorder 1, %s18
      %p241 = scmp.lt.s32.totalorder %s18, 5
      %p242 = pnand %p240, %p241
      %p243 = pneg %p242
      // Predicated region
      $region29: #{tpu_custom_call.1} parent=5 // pred_check
        _
      $region30: #{tpu_custom_call.1} parent=5 // pred_check_branch
        %245 = sbr.rel (%p242) target = $region32
      $region31: #{tpu_custom_call.1} parent=5 // pred_region
        %s246 = ssub.s32 %s18, 1
        %s247 = sand.u32 %s52, 1
        %s248 = scalar_lea.sflag [#allocation7], %s247
        %s249 = sand.u32 %s52, 1
        %s250 = smul.addr %s249, 256
        %s251 = scalar_lea.vmem [#allocation6], %s250
        // Predicated region
        $region33: #{tpu_custom_call.1} parent=31 // pred_check
          %p252 = pneg %p65
        $region34: #{tpu_custom_call.1} parent=31 // pred_check_branch
          %254 = sbr.rel (%p252) target = $region36
        $region35: #{tpu_custom_call.1} parent=31 // pred_region
          %256 = dma.done %s248, 4096
        $region36: #{tpu_custom_call.1} parent=31 // pred_fallthru
          _
        %s257 = sand.u32 %s23, 1
        %s258 = scalar_lea.sflag [#allocation10], %s257
        %s259 = sand.u32 %s80, 1
        %s260 = smul.addr %s259, 128
        %s261 = scalar_lea.vmem [#allocation9], %s260
        // Predicated region
        $region37: #{tpu_custom_call.1} parent=31 // pred_check
          %p262 = pneg %p93
        $region38: #{tpu_custom_call.1} parent=31 // pred_check_branch
          %264 = sbr.rel (%p262) target = $region40
        $region39: #{tpu_custom_call.1} parent=31 // pred_region
          %266 = dma.done %s258, 2048
        $region40: #{tpu_custom_call.1} parent=31 // pred_fallthru
          _
        %s267 = sand.u32 %s23, 1
        %s268 = scalar_lea.sflag [#allocation10], %s267
        %s269 = sand.u32 %s108, 1
        %s270 = smul.addr %s269, 128
        %s271 = scalar_lea.vmem [#allocation11], %s270
        // Predicated region
        $region41: #{tpu_custom_call.1} parent=31 // pred_check
          %p272 = pneg %p121
        $region42: #{tpu_custom_call.1} parent=31 // pred_check_branch
          %274 = sbr.rel (%p272) target = $region44
        $region43: #{tpu_custom_call.1} parent=31 // pred_region
          %276 = dma.done %s268, 2048
        $region44: #{tpu_custom_call.1} parent=31 // pred_fallthru
          _
        %s277 = sand.u32 %s52, 1
        %s278 = scalar_lea.sflag [#allocation7], %s277
        %s279 = sand.u32 %s52, 1
        %s280 = smul.addr %s279, 256
        %s281 = scalar_lea.vmem [#allocation6], %s280
        %p282 = pneg %p65
        %p283 = pneg %p62
        %s284 = sand.u32 %s23, 1
        %s285 = scalar_lea.sflag [#allocation10], %s284
        %s286 = sand.u32 %s80, 1
        %s287 = smul.addr %s286, 128
        %s288 = scalar_lea.vmem [#allocation9], %s287
        %p289 = pneg %p93
        %p290 = pneg %p90
        %s291 = sand.u32 %s23, 1
        %s292 = scalar_lea.sflag [#allocation10], %s291
        %s293 = sand.u32 %s108, 1
        %s294 = smul.addr %s293, 128
        %s295 = scalar_lea.vmem [#allocation11], %s294
        %p296 = pneg %p121
        %p297 = pneg %p118
        %p298 = pneg %p149
        %p299 = pneg %p146
        %s300 = sand.u32 %s136, 1
        %s301 = scalar_lea.sflag [#allocation8], %s300
        %s302 = sand.u32 %s136, 1
        %s303 = smul.addr %s302, 256
        %s304 = scalar_lea.vmem [#allocation12], %s303
        %s305 = smul.u32 64, %s29
        %s306 = smul.u32 32, %s30
        %s307 = smul.u32 32, %s30
        %s308 = smul.u32 64, %s29
        %p309 = scmp.eq.s32.totalorder %s30, 0
        // Predicated region
        $region45: #{tpu_custom_call.1} parent=31 // pred_check
          %p310 = pneg %p309
        $region46: #{tpu_custom_call.1} parent=31 // pred_check_branch
          %312 = sbr.rel (%p310) target = $region48
        $region47: #{tpu_custom_call.1} parent=31 // pred_region
          %v313 = vld [vmem:[%s251] sm:$0xf]
          %v314 = vld [vmem:[%s251 + $0x4] sm:$0xf]
          %v315 = vld [vmem:[%s251 + $0x8] sm:$0xf]
          %v316 = vld [vmem:[%s251 + $0xc] sm:$0xf]
          %v317 = vld [vmem:[%s251 + $0x10] sm:$0xf]
          %v318 = vld [vmem:[%s251 + $0x14] sm:$0xf]
          %v319 = vld [vmem:[%s251 + $0x18] sm:$0xf]
          %v320 = vld [vmem:[%s251 + $0x1c] sm:$0xf]
          %v321 = vld [vmem:[%s251 + $0x20] sm:$0xf]
          %v322 = vld [vmem:[%s251 + $0x24] sm:$0xf]
          %v323 = vld [vmem:[%s251 + $0x28] sm:$0xf]
          %v324 = vld [vmem:[%s251 + $0x2c] sm:$0xf]
          %v325 = vld [vmem:[%s251 + $0x30] sm:$0xf]
          %v326 = vld [vmem:[%s251 + $0x34] sm:$0xf]
          %v327 = vld [vmem:[%s251 + $0x38] sm:$0xf]
          %v328 = vld [vmem:[%s251 + $0x3c] sm:$0xf]
          %v329 = vld [vmem:[%s251 + $0x40] sm:$0xf]
          %v330 = vld [vmem:[%s251 + $0x44] sm:$0xf]
          %v331 = vld [vmem:[%s251 + $0x48] sm:$0xf]
          %v332 = vld [vmem:[%s251 + $0x4c] sm:$0xf]
          %v333 = vld [vmem:[%s251 + $0x50] sm:$0xf]
          %v334 = vld [vmem:[%s251 + $0x54] sm:$0xf]
          %v335 = vld [vmem:[%s251 + $0x58] sm:$0xf]
          %v336 = vld [vmem:[%s251 + $0x5c] sm:$0xf]
          %v337 = vld [vmem:[%s251 + $0x60] sm:$0xf]
          %v338 = vld [vmem:[%s251 + $0x64] sm:$0xf]
          %v339 = vld [vmem:[%s251 + $0x68] sm:$0xf]
          %v340 = vld [vmem:[%s251 + $0x6c] sm:$0xf]
          %v341 = vld [vmem:[%s251 + $0x70] sm:$0xf]
          %v342 = vld [vmem:[%s251 + $0x74] sm:$0xf]
          %v343 = vld [vmem:[%s251 + $0x78] sm:$0xf]
          %v344 = vld [vmem:[%s251 + $0x7c] sm:$0xf]
          %v345 = vld [vmem:[%s251 + $0x80] sm:$0xf]
          %v346 = vld [vmem:[%s251 + $0x84] sm:$0xf]
          %v347 = vld [vmem:[%s251 + $0x88] sm:$0xf]
          %v348 = vld [vmem:[%s251 + $0x8c] sm:$0xf]
          %v349 = vld [vmem:[%s251 + $0x90] sm:$0xf]
          %v350 = vld [vmem:[%s251 + $0x94] sm:$0xf]
          %v351 = vld [vmem:[%s251 + $0x98] sm:$0xf]
          %v352 = vld [vmem:[%s251 + $0x9c] sm:$0xf]
          %v353 = vld [vmem:[%s251 + $0xa0] sm:$0xf]
          %v354 = vld [vmem:[%s251 + $0xa4] sm:$0xf]
          %v355 = vld [vmem:[%s251 + $0xa8] sm:$0xf]
          %v356 = vld [vmem:[%s251 + $0xac] sm:$0xf]
          %v357 = vld [vmem:[%s251 + $0xb0] sm:$0xf]
          %v358 = vld [vmem:[%s251 + $0xb4] sm:$0xf]
          %v359 = vld [vmem:[%s251 + $0xb8] sm:$0xf]
          %v360 = vld [vmem:[%s251 + $0xbc] sm:$0xf]
          %v361 = vld [vmem:[%s251 + $0xc0] sm:$0xf]
          %v362 = vld [vmem:[%s251 + $0xc4] sm:$0xf]
          %v363 = vld [vmem:[%s251 + $0xc8] sm:$0xf]
          %v364 = vld [vmem:[%s251 + $0xcc] sm:$0xf]
          %v365 = vld [vmem:[%s251 + $0xd0] sm:$0xf]
          %v366 = vld [vmem:[%s251 + $0xd4] sm:$0xf]
          %v367 = vld [vmem:[%s251 + $0xd8] sm:$0xf]
          %v368 = vld [vmem:[%s251 + $0xdc] sm:$0xf]
          %v369 = vld [vmem:[%s251 + $0xe0] sm:$0xf]
          %v370 = vld [vmem:[%s251 + $0xe4] sm:$0xf]
          %v371 = vld [vmem:[%s251 + $0xe8] sm:$0xf]
          %v372 = vld [vmem:[%s251 + $0xec] sm:$0xf]
          %v373 = vld [vmem:[%s251 + $0xf0] sm:$0xf]
          %v374 = vld [vmem:[%s251 + $0xf4] sm:$0xf]
          %v375 = vld [vmem:[%s251 + $0xf8] sm:$0xf]
          %v376 = vld [vmem:[%s251 + $0xfc] sm:$0xf]
          %v377 = vunpack.c.l.bf16 %v313
          %v378 = vunpack.c.l.bf16 %v314
          %v379 = vunpack.c.l.bf16 %v315
          %v380 = vunpack.c.l.bf16 %v316
          %v381 = vunpack.c.l.bf16 %v317
          %v382 = vunpack.c.l.bf16 %v318
          %v383 = vunpack.c.l.bf16 %v319
          %v384 = vunpack.c.l.bf16 %v320
          %v385 = vunpack.c.l.bf16 %v321
          %v386 = vunpack.c.l.bf16 %v322
          %v387 = vunpack.c.l.bf16 %v323
          %v388 = vunpack.c.l.bf16 %v324
          %v389 = vunpack.c.l.bf16 %v325
          %v390 = vunpack.c.l.bf16 %v326
          %v391 = vunpack.c.l.bf16 %v327
          %v392 = vunpack.c.l.bf16 %v328
          %v393 = vunpack.c.l.bf16 %v329
          %v394 = vunpack.c.l.bf16 %v330
          %v395 = vunpack.c.l.bf16 %v331
          %v396 = vunpack.c.l.bf16 %v332
          %v397 = vunpack.c.l.bf16 %v333
          %v398 = vunpack.c.l.bf16 %v334
          %v399 = vunpack.c.l.bf16 %v335
          %v400 = vunpack.c.l.bf16 %v336
          %v401 = vunpack.c.l.bf16 %v337
          %v402 = vunpack.c.l.bf16 %v338
          %v403 = vunpack.c.l.bf16 %v339
          %v404 = vunpack.c.l.bf16 %v340
          %v405 = vunpack.c.l.bf16 %v341
          %v406 = vunpack.c.l.bf16 %v342
          %v407 = vunpack.c.l.bf16 %v343
          %v408 = vunpack.c.l.bf16 %v344
          %v409 = vunpack.c.l.bf16 %v345
          %v410 = vunpack.c.l.bf16 %v346
          %v411 = vunpack.c.l.bf16 %v347
          %v412 = vunpack.c.l.bf16 %v348
          %v413 = vunpack.c.l.bf16 %v349
          %v414 = vunpack.c.l.bf16 %v350
          %v415 = vunpack.c.l.bf16 %v351
          %v416 = vunpack.c.l.bf16 %v352
          %v417 = vunpack.c.l.bf16 %v353
          %v418 = vunpack.c.l.bf16 %v354
          %v419 = vunpack.c.l.bf16 %v355
          %v420 = vunpack.c.l.bf16 %v356
          %v421 = vunpack.c.l.bf16 %v357
          %v422 = vunpack.c.l.bf16 %v358
          %v423 = vunpack.c.l.bf16 %v359
          %v424 = vunpack.c.l.bf16 %v360
          %v425 = vunpack.c.l.bf16 %v361
          %v426 = vunpack.c.l.bf16 %v362
          %v427 = vunpack.c.l.bf16 %v363
          %v428 = vunpack.c.l.bf16 %v364
          %v429 = vunpack.c.l.bf16 %v365
          %v430 = vunpack.c.l.bf16 %v366
          %v431 = vunpack.c.l.bf16 %v367
          %v432 = vunpack.c.l.bf16 %v368
          %v433 = vunpack.c.l.bf16 %v369
          %v434 = vunpack.c.l.bf16 %v370
          %v435 = vunpack.c.l.bf16 %v371
          %v436 = vunpack.c.l.bf16 %v372
          %v437 = vunpack.c.l.bf16 %v373
          %v438 = vunpack.c.l.bf16 %v374
          %v439 = vunpack.c.l.bf16 %v375
          %v440 = vunpack.c.l.bf16 %v376
          %v441 = vmul.f32 %v377, 0.088388346
          %v442 = vmul.f32 %v378, 0.088388346
          %v443 = vmul.f32 %v379, 0.088388346
          %v444 = vmul.f32 %v380, 0.088388346
          %v445 = vmul.f32 %v381, 0.088388346
          %v446 = vmul.f32 %v382, 0.088388346
          %v447 = vmul.f32 %v383, 0.088388346
          %v448 = vmul.f32 %v384, 0.088388346
          %v449 = vmul.f32 %v385, 0.088388346
          %v450 = vmul.f32 %v386, 0.088388346
          %v451 = vmul.f32 %v387, 0.088388346
          %v452 = vmul.f32 %v388, 0.088388346
          %v453 = vmul.f32 %v389, 0.088388346
          %v454 = vmul.f32 %v390, 0.088388346
          %v455 = vmul.f32 %v391, 0.088388346
          %v456 = vmul.f32 %v392, 0.088388346
          %v457 = vmul.f32 %v393, 0.088388346
          %v458 = vmul.f32 %v394, 0.088388346
          %v459 = vmul.f32 %v395, 0.088388346
          %v460 = vmul.f32 %v396, 0.088388346
          %v461 = vmul.f32 %v397, 0.088388346
          %v462 = vmul.f32 %v398, 0.088388346
          %v463 = vmul.f32 %v399, 0.088388346
          %v464 = vmul.f32 %v400, 0.088388346
          %v465 = vmul.f32 %v401, 0.088388346
          %v466 = vmul.f32 %v402, 0.088388346
          %v467 = vmul.f32 %v403, 0.088388346
          %v468 = vmul.f32 %v404, 0.088388346
          %v469 = vmul.f32 %v405, 0.088388346
          %v470 = vmul.f32 %v406, 0.088388346
          %v471 = vmul.f32 %v407, 0.088388346
          %v472 = vmul.f32 %v408, 0.088388346
          %v473 = vmul.f32 %v409, 0.088388346
          %v474 = vmul.f32 %v410, 0.088388346
          %v475 = vmul.f32 %v411, 0.088388346
          %v476 = vmul.f32 %v412, 0.088388346
          %v477 = vmul.f32 %v413, 0.088388346
          %v478 = vmul.f32 %v414, 0.088388346
          %v479 = vmul.f32 %v415, 0.088388346
          %v480 = vmul.f32 %v416, 0.088388346
          %v481 = vmul.f32 %v417, 0.088388346
          %v482 = vmul.f32 %v418, 0.088388346
          %v483 = vmul.f32 %v419, 0.088388346
          %v484 = vmul.f32 %v420, 0.088388346
          %v485 = vmul.f32 %v421, 0.088388346
          %v486 = vmul.f32 %v422, 0.088388346
          %v487 = vmul.f32 %v423, 0.088388346
          %v488 = vmul.f32 %v424, 0.088388346
          %v489 = vmul.f32 %v425, 0.088388346
          %v490 = vmul.f32 %v426, 0.088388346
          %v491 = vmul.f32 %v427, 0.088388346
          %v492 = vmul.f32 %v428, 0.088388346
          %v493 = vmul.f32 %v429, 0.088388346
          %v494 = vmul.f32 %v430, 0.088388346
          %v495 = vmul.f32 %v431, 0.088388346
          %v496 = vmul.f32 %v432, 0.088388346
          %v497 = vmul.f32 %v433, 0.088388346
          %v498 = vmul.f32 %v434, 0.088388346
          %v499 = vmul.f32 %v435, 0.088388346
          %v500 = vmul.f32 %v436, 0.088388346
          %v501 = vmul.f32 %v437, 0.088388346
          %v502 = vmul.f32 %v438, 0.088388346
          %v503 = vmul.f32 %v439, 0.088388346
          %v504 = vmul.f32 %v440, 0.088388346
          %v505 = vpack.c.bf16 %v441, %v441
          %v506 = vpack.c.bf16 %v442, %v442
          %v507 = vpack.c.bf16 %v443, %v443
          %v508 = vpack.c.bf16 %v444, %v444
          %v509 = vpack.c.bf16 %v445, %v445
          %v510 = vpack.c.bf16 %v446, %v446
          %v511 = vpack.c.bf16 %v447, %v447
          %v512 = vpack.c.bf16 %v448, %v448
          %v513 = vpack.c.bf16 %v449, %v449
          %v514 = vpack.c.bf16 %v450, %v450
          %v515 = vpack.c.bf16 %v451, %v451
          %v516 = vpack.c.bf16 %v452, %v452
          %v517 = vpack.c.bf16 %v453, %v453
          %v518 = vpack.c.bf16 %v454, %v454
          %v519 = vpack.c.bf16 %v455, %v455
          %v520 = vpack.c.bf16 %v456, %v456
          %v521 = vpack.c.bf16 %v457, %v457
          %v522 = vpack.c.bf16 %v458, %v458
          %v523 = vpack.c.bf16 %v459, %v459
          %v524 = vpack.c.bf16 %v460, %v460
          %v525 = vpack.c.bf16 %v461, %v461
          %v526 = vpack.c.bf16 %v462, %v462
          %v527 = vpack.c.bf16 %v463, %v463
          %v528 = vpack.c.bf16 %v464, %v464
          %v529 = vpack.c.bf16 %v465, %v465
          %v530 = vpack.c.bf16 %v466, %v466
          %v531 = vpack.c.bf16 %v467, %v467
          %v532 = vpack.c.bf16 %v468, %v468
          %v533 = vpack.c.bf16 %v469, %v469
          %v534 = vpack.c.bf16 %v470, %v470
          %v535 = vpack.c.bf16 %v471, %v471
          %v536 = vpack.c.bf16 %v472, %v472
          %v537 = vpack.c.bf16 %v473, %v473
          %v538 = vpack.c.bf16 %v474, %v474
          %v539 = vpack.c.bf16 %v475, %v475
          %v540 = vpack.c.bf16 %v476, %v476
          %v541 = vpack.c.bf16 %v477, %v477
          %v542 = vpack.c.bf16 %v478, %v478
          %v543 = vpack.c.bf16 %v479, %v479
          %v544 = vpack.c.bf16 %v480, %v480
          %v545 = vpack.c.bf16 %v481, %v481
          %v546 = vpack.c.bf16 %v482, %v482
          %v547 = vpack.c.bf16 %v483, %v483
          %v548 = vpack.c.bf16 %v484, %v484
          %v549 = vpack.c.bf16 %v485, %v485
          %v550 = vpack.c.bf16 %v486, %v486
          %v551 = vpack.c.bf16 %v487, %v487
          %v552 = vpack.c.bf16 %v488, %v488
          %v553 = vpack.c.bf16 %v489, %v489
          %v554 = vpack.c.bf16 %v490, %v490
          %v555 = vpack.c.bf16 %v491, %v491
          %v556 = vpack.c.bf16 %v492, %v492
          %v557 = vpack.c.bf16 %v493, %v493
          %v558 = vpack.c.bf16 %v494, %v494
          %v559 = vpack.c.bf16 %v495, %v495
          %v560 = vpack.c.bf16 %v496, %v496
          %v561 = vpack.c.bf16 %v497, %v497
          %v562 = vpack.c.bf16 %v498, %v498
          %v563 = vpack.c.bf16 %v499, %v499
          %v564 = vpack.c.bf16 %v500, %v500
          %v565 = vpack.c.bf16 %v501, %v501
          %v566 = vpack.c.bf16 %v502, %v502
          %v567 = vpack.c.bf16 %v503, %v503
          %v568 = vpack.c.bf16 %v504, %v504
          %569 = vst [vmem:[#allocation2] sm:$0xf] %v505
          %570 = vst [vmem:[#allocation2 + $0x4] sm:$0xf] %v506
          %571 = vst [vmem:[#allocation2 + $0x8] sm:$0xf] %v507
          %572 = vst [vmem:[#allocation2 + $0xc] sm:$0xf] %v508
          %573 = vst [vmem:[#allocation2 + $0x10] sm:$0xf] %v509
          %574 = vst [vmem:[#allocation2 + $0x14] sm:$0xf] %v510
          %575 = vst [vmem:[#allocation2 + $0x18] sm:$0xf] %v511
          %576 = vst [vmem:[#allocation2 + $0x1c] sm:$0xf] %v512
          %577 = vst [vmem:[#allocation2 + $0x20] sm:$0xf] %v513
          %578 = vst [vmem:[#allocation2 + $0x24] sm:$0xf] %v514
          %579 = vst [vmem:[#allocation2 + $0x28] sm:$0xf] %v515
          %580 = vst [vmem:[#allocation2 + $0x2c] sm:$0xf] %v516
          %581 = vst [vmem:[#allocation2 + $0x30] sm:$0xf] %v517
          %582 = vst [vmem:[#allocation2 + $0x34] sm:$0xf] %v518
          %583 = vst [vmem:[#allocation2 + $0x38] sm:$0xf] %v519
          %584 = vst [vmem:[#allocation2 + $0x3c] sm:$0xf] %v520
          %585 = vst [vmem:[#allocation2 + $0x40] sm:$0xf] %v521
          %586 = vst [vmem:[#allocation2 + $0x44] sm:$0xf] %v522
          %587 = vst [vmem:[#allocation2 + $0x48] sm:$0xf] %v523
          %588 = vst [vmem:[#allocation2 + $0x4c] sm:$0xf] %v524
          %589 = vst [vmem:[#allocation2 + $0x50] sm:$0xf] %v525
          %590 = vst [vmem:[#allocation2 + $0x54] sm:$0xf] %v526
          %591 = vst [vmem:[#allocation2 + $0x58] sm:$0xf] %v527
          %592 = vst [vmem:[#allocation2 + $0x5c] sm:$0xf] %v528
          %593 = vst [vmem:[#allocation2 + $0x60] sm:$0xf] %v529
          %594 = vst [vmem:[#allocation2 + $0x64] sm:$0xf] %v530
          %595 = vst [vmem:[#allocation2 + $0x68] sm:$0xf] %v531
          %596 = vst [vmem:[#allocation2 + $0x6c] sm:$0xf] %v532
          %597 = vst [vmem:[#allocation2 + $0x70] sm:$0xf] %v533
          %598 = vst [vmem:[#allocation2 + $0x74] sm:$0xf] %v534
          %599 = vst [vmem:[#allocation2 + $0x78] sm:$0xf] %v535
          %600 = vst [vmem:[#allocation2 + $0x7c] sm:$0xf] %v536
          %601 = vst [vmem:[#allocation2 + $0x80] sm:$0xf] %v537
          %602 = vst [vmem:[#allocation2 + $0x84] sm:$0xf] %v538
          %603 = vst [vmem:[#allocation2 + $0x88] sm:$0xf] %v539
          %604 = vst [vmem:[#allocation2 + $0x8c] sm:$0xf] %v540
          %605 = vst [vmem:[#allocation2 + $0x90] sm:$0xf] %v541
          %606 = vst [vmem:[#allocation2 + $0x94] sm:$0xf] %v542
          %607 = vst [vmem:[#allocation2 + $0x98] sm:$0xf] %v543
          %608 = vst [vmem:[#allocation2 + $0x9c] sm:$0xf] %v544
          %609 = vst [vmem:[#allocation2 + $0xa0] sm:$0xf] %v545
          %610 = vst [vmem:[#allocation2 + $0xa4] sm:$0xf] %v546
          %611 = vst [vmem:[#allocation2 + $0xa8] sm:$0xf] %v547
          %612 = vst [vmem:[#allocation2 + $0xac] sm:$0xf] %v548
          %613 = vst [vmem:[#allocation2 + $0xb0] sm:$0xf] %v549
          %614 = vst [vmem:[#allocation2 + $0xb4] sm:$0xf] %v550
          %615 = vst [vmem:[#allocation2 + $0xb8] sm:$0xf] %v551
          %616 = vst [vmem:[#allocation2 + $0xbc] sm:$0xf] %v552
          %617 = vst [vmem:[#allocation2 + $0xc0] sm:$0xf] %v553
          %618 = vst [vmem:[#allocation2 + $0xc4] sm:$0xf] %v554
          %619 = vst [vmem:[#allocation2 + $0xc8] sm:$0xf] %v555
          %620 = vst [vmem:[#allocation2 + $0xcc] sm:$0xf] %v556
          %621 = vst [vmem:[#allocation2 + $0xd0] sm:$0xf] %v557
          %622 = vst [vmem:[#allocation2 + $0xd4] sm:$0xf] %v558
          %623 = vst [vmem:[#allocation2 + $0xd8] sm:$0xf] %v559
          %624 = vst [vmem:[#allocation2 + $0xdc] sm:$0xf] %v560
          %625 = vst [vmem:[#allocation2 + $0xe0] sm:$0xf] %v561
          %626 = vst [vmem:[#allocation2 + $0xe4] sm:$0xf] %v562
          %627 = vst [vmem:[#allocation2 + $0xe8] sm:$0xf] %v563
          %628 = vst [vmem:[#allocation2 + $0xec] sm:$0xf] %v564
          %629 = vst [vmem:[#allocation2 + $0xf0] sm:$0xf] %v565
          %630 = vst [vmem:[#allocation2 + $0xf4] sm:$0xf] %v566
          %631 = vst [vmem:[#allocation2 + $0xf8] sm:$0xf] %v567
          %632 = vst [vmem:[#allocation2 + $0xfc] sm:$0xf] %v568
          %vm633 = vcmask 7168
          %634 = vst.msk [vmem:[#allocation3] sm:$0xff] %vm633, -inf
          %635 = vst.msk [vmem:[#allocation3 + $0x8] sm:$0xff] %vm633, -inf
          %636 = vst.msk [vmem:[#allocation3 + $0x10] sm:$0xff] %vm633, -inf
          %637 = vst.msk [vmem:[#allocation3 + $0x18] sm:$0xff] %vm633, -inf
          %638 = vst.msk [vmem:[#allocation3 + $0x20] sm:$0xff] %vm633, -inf
          %639 = vst.msk [vmem:[#allocation3 + $0x28] sm:$0xff] %vm633, -inf
          %640 = vst.msk [vmem:[#allocation3 + $0x30] sm:$0xff] %vm633, -inf
          %641 = vst.msk [vmem:[#allocation3 + $0x38] sm:$0xff] %vm633, -inf
          %642 = vst.msk [vmem:[#allocation3 + $0x40] sm:$0xff] %vm633, -inf
          %643 = vst.msk [vmem:[#allocation3 + $0x48] sm:$0xff] %vm633, -inf
          %644 = vst.msk [vmem:[#allocation3 + $0x50] sm:$0xff] %vm633, -inf
          %645 = vst.msk [vmem:[#allocation3 + $0x58] sm:$0xff] %vm633, -inf
          %646 = vst.msk [vmem:[#allocation3 + $0x60] sm:$0xff] %vm633, -inf
          %647 = vst.msk [vmem:[#allocation3 + $0x68] sm:$0xff] %vm633, -inf
          %648 = vst.msk [vmem:[#allocation3 + $0x70] sm:$0xff] %vm633, -inf
          %649 = vst.msk [vmem:[#allocation3 + $0x78] sm:$0xff] %vm633, -inf
          %650 = vst.msk [vmem:[#allocation3 + $0x80] sm:$0xff] %vm633, -inf
          %651 = vst.msk [vmem:[#allocation3 + $0x88] sm:$0xff] %vm633, -inf
          %652 = vst.msk [vmem:[#allocation3 + $0x90] sm:$0xff] %vm633, -inf
          %653 = vst.msk [vmem:[#allocation3 + $0x98] sm:$0xff] %vm633, -inf
          %654 = vst.msk [vmem:[#allocation3 + $0xa0] sm:$0xff] %vm633, -inf
          %655 = vst.msk [vmem:[#allocation3 + $0xa8] sm:$0xff] %vm633, -inf
          %656 = vst.msk [vmem:[#allocation3 + $0xb0] sm:$0xff] %vm633, -inf
          %657 = vst.msk [vmem:[#allocation3 + $0xb8] sm:$0xff] %vm633, -inf
          %658 = vst.msk [vmem:[#allocation3 + $0xc0] sm:$0xff] %vm633, -inf
          %659 = vst.msk [vmem:[#allocation3 + $0xc8] sm:$0xff] %vm633, -inf
          %660 = vst.msk [vmem:[#allocation3 + $0xd0] sm:$0xff] %vm633, -inf
          %661 = vst.msk [vmem:[#allocation3 + $0xd8] sm:$0xff] %vm633, -inf
          %662 = vst.msk [vmem:[#allocation3 + $0xe0] sm:$0xff] %vm633, -inf
          %663 = vst.msk [vmem:[#allocation3 + $0xe8] sm:$0xff] %vm633, -inf
          %664 = vst.msk [vmem:[#allocation3 + $0xf0] sm:$0xff] %vm633, -inf
          %665 = vst.msk [vmem:[#allocation3 + $0xf8] sm:$0xff] %vm633, -inf
          %666 = vst.msk [vmem:[#allocation3 + $0x100] sm:$0xff] %vm633, -inf
          %667 = vst.msk [vmem:[#allocation3 + $0x108] sm:$0xff] %vm633, -inf
          %668 = vst.msk [vmem:[#allocation3 + $0x110] sm:$0xff] %vm633, -inf
          %669 = vst.msk [vmem:[#allocation3 + $0x118] sm:$0xff] %vm633, -inf
          %670 = vst.msk [vmem:[#allocation3 + $0x120] sm:$0xff] %vm633, -inf
          %671 = vst.msk [vmem:[#allocation3 + $0x128] sm:$0xff] %vm633, -inf
          %672 = vst.msk [vmem:[#allocation3 + $0x130] sm:$0xff] %vm633, -inf
          %673 = vst.msk [vmem:[#allocation3 + $0x138] sm:$0xff] %vm633, -inf
          %674 = vst.msk [vmem:[#allocation3 + $0x140] sm:$0xff] %vm633, -inf
          %675 = vst.msk [vmem:[#allocation3 + $0x148] sm:$0xff] %vm633, -inf
          %676 = vst.msk [vmem:[#allocation3 + $0x150] sm:$0xff] %vm633, -inf
          %677 = vst.msk [vmem:[#allocation3 + $0x158] sm:$0xff] %vm633, -inf
          %678 = vst.msk [vmem:[#allocation3 + $0x160] sm:$0xff] %vm633, -inf
          %679 = vst.msk [vmem:[#allocation3 + $0x168] sm:$0xff] %vm633, -inf
          %680 = vst.msk [vmem:[#allocation3 + $0x170] sm:$0xff] %vm633, -inf
          %681 = vst.msk [vmem:[#allocation3 + $0x178] sm:$0xff] %vm633, -inf
          %682 = vst.msk [vmem:[#allocation3 + $0x180] sm:$0xff] %vm633, -inf
          %683 = vst.msk [vmem:[#allocation3 + $0x188] sm:$0xff] %vm633, -inf
          %684 = vst.msk [vmem:[#allocation3 + $0x190] sm:$0xff] %vm633, -inf
          %685 = vst.msk [vmem:[#allocation3 + $0x198] sm:$0xff] %vm633, -inf
          %686 = vst.msk [vmem:[#allocation3 + $0x1a0] sm:$0xff] %vm633, -inf
          %687 = vst.msk [vmem:[#allocation3 + $0x1a8] sm:$0xff] %vm633, -inf
          %688 = vst.msk [vmem:[#allocation3 + $0x1b0] sm:$0xff] %vm633, -inf
          %689 = vst.msk [vmem:[#allocation3 + $0x1b8] sm:$0xff] %vm633, -inf
          %690 = vst.msk [vmem:[#allocation3 + $0x1c0] sm:$0xff] %vm633, -inf
          %691 = vst.msk [vmem:[#allocation3 + $0x1c8] sm:$0xff] %vm633, -inf
          %692 = vst.msk [vmem:[#allocation3 + $0x1d0] sm:$0xff] %vm633, -inf
          %693 = vst.msk [vmem:[#allocation3 + $0x1d8] sm:$0xff] %vm633, -inf
          %694 = vst.msk [vmem:[#allocation3 + $0x1e0] sm:$0xff] %vm633, -inf
          %695 = vst.msk [vmem:[#allocation3 + $0x1e8] sm:$0xff] %vm633, -inf
          %696 = vst.msk [vmem:[#allocation3 + $0x1f0] sm:$0xff] %vm633, -inf
          %697 = vst.msk [vmem:[#allocation3 + $0x1f8] sm:$0xff] %vm633, -inf
          %698 = vst.msk [vmem:[#allocation4] sm:$0xff] %vm633, 0.0
          %699 = vst.msk [vmem:[#allocation4 + $0x8] sm:$0xff] %vm633, 0.0
          %700 = vst.msk [vmem:[#allocation4 + $0x10] sm:$0xff] %vm633, 0.0
          %701 = vst.msk [vmem:[#allocation4 + $0x18] sm:$0xff] %vm633, 0.0
          %702 = vst.msk [vmem:[#allocation4 + $0x20] sm:$0xff] %vm633, 0.0
          %703 = vst.msk [vmem:[#allocation4 + $0x28] sm:$0xff] %vm633, 0.0
          %704 = vst.msk [vmem:[#allocation4 + $0x30] sm:$0xff] %vm633, 0.0
          %705 = vst.msk [vmem:[#allocation4 + $0x38] sm:$0xff] %vm633, 0.0
          %706 = vst.msk [vmem:[#allocation4 + $0x40] sm:$0xff] %vm633, 0.0
          %707 = vst.msk [vmem:[#allocation4 + $0x48] sm:$0xff] %vm633, 0.0
          %708 = vst.msk [vmem:[#allocation4 + $0x50] sm:$0xff] %vm633, 0.0
          %709 = vst.msk [vmem:[#allocation4 + $0x58] sm:$0xff] %vm633, 0.0
          %710 = vst.msk [vmem:[#allocation4 + $0x60] sm:$0xff] %vm633, 0.0
          %711 = vst.msk [vmem:[#allocation4 + $0x68] sm:$0xff] %vm633, 0.0
          %712 = vst.msk [vmem:[#allocation4 + $0x70] sm:$0xff] %vm633, 0.0
          %713 = vst.msk [vmem:[#allocation4 + $0x78] sm:$0xff] %vm633, 0.0
          %714 = vst.msk [vmem:[#allocation4 + $0x80] sm:$0xff] %vm633, 0.0
          %715 = vst.msk [vmem:[#allocation4 + $0x88] sm:$0xff] %vm633, 0.0
          %716 = vst.msk [vmem:[#allocation4 + $0x90] sm:$0xff] %vm633, 0.0
          %717 = vst.msk [vmem:[#allocation4 + $0x98] sm:$0xff] %vm633, 0.0
          %718 = vst.msk [vmem:[#allocation4 + $0xa0] sm:$0xff] %vm633, 0.0
          %719 = vst.msk [vmem:[#allocation4 + $0xa8] sm:$0xff] %vm633, 0.0
          %720 = vst.msk [vmem:[#allocation4 + $0xb0] sm:$0xff] %vm633, 0.0
          %721 = vst.msk [vmem:[#allocation4 + $0xb8] sm:$0xff] %vm633, 0.0
          %722 = vst.msk [vmem:[#allocation4 + $0xc0] sm:$0xff] %vm633, 0.0
          %723 = vst.msk [vmem:[#allocation4 + $0xc8] sm:$0xff] %vm633, 0.0
          %724 = vst.msk [vmem:[#allocation4 + $0xd0] sm:$0xff] %vm633, 0.0
          %725 = vst.msk [vmem:[#allocation4 + $0xd8] sm:$0xff] %vm633, 0.0
          %726 = vst.msk [vmem:[#allocation4 + $0xe0] sm:$0xff] %vm633, 0.0
          %727 = vst.msk [vmem:[#allocation4 + $0xe8] sm:$0xff] %vm633, 0.0
          %728 = vst.msk [vmem:[#allocation4 + $0xf0] sm:$0xff] %vm633, 0.0
          %729 = vst.msk [vmem:[#allocation4 + $0xf8] sm:$0xff] %vm633, 0.0
          %730 = vst.msk [vmem:[#allocation4 + $0x100] sm:$0xff] %vm633, 0.0
          %731 = vst.msk [vmem:[#allocation4 + $0x108] sm:$0xff] %vm633, 0.0
          %732 = vst.msk [vmem:[#allocation4 + $0x110] sm:$0xff] %vm633, 0.0
          %733 = vst.msk [vmem:[#allocation4 + $0x118] sm:$0xff] %vm633, 0.0
          %734 = vst.msk [vmem:[#allocation4 + $0x120] sm:$0xff] %vm633, 0.0
          %735 = vst.msk [vmem:[#allocation4 + $0x128] sm:$0xff] %vm633, 0.0
          %736 = vst.msk [vmem:[#allocation4 + $0x130] sm:$0xff] %vm633, 0.0
          %737 = vst.msk [vmem:[#allocation4 + $0x138] sm:$0xff] %vm633, 0.0
          %738 = vst.msk [vmem:[#allocation4 + $0x140] sm:$0xff] %vm633, 0.0
          %739 = vst.msk [vmem:[#allocation4 + $0x148] sm:$0xff] %vm633, 0.0
          %740 = vst.msk [vmem:[#allocation4 + $0x150] sm:$0xff] %vm633, 0.0
          %741 = vst.msk [vmem:[#allocation4 + $0x158] sm:$0xff] %vm633, 0.0
          %742 = vst.msk [vmem:[#allocation4 + $0x160] sm:$0xff] %vm633, 0.0
          %743 = vst.msk [vmem:[#allocation4 + $0x168] sm:$0xff] %vm633, 0.0
          %744 = vst.msk [vmem:[#allocation4 + $0x170] sm:$0xff] %vm633, 0.0
          %745 = vst.msk [vmem:[#allocation4 + $0x178] sm:$0xff] %vm633, 0.0
          %746 = vst.msk [vmem:[#allocation4 + $0x180] sm:$0xff] %vm633, 0.0
          %747 = vst.msk [vmem:[#allocation4 + $0x188] sm:$0xff] %vm633, 0.0
          %748 = vst.msk [vmem:[#allocation4 + $0x190] sm:$0xff] %vm633, 0.0
          %749 = vst.msk [vmem:[#allocation4 + $0x198] sm:$0xff] %vm633, 0.0
          %750 = vst.msk [vmem:[#allocation4 + $0x1a0] sm:$0xff] %vm633, 0.0
          %751 = vst.msk [vmem:[#allocation4 + $0x1a8] sm:$0xff] %vm633, 0.0
          %752 = vst.msk [vmem:[#allocation4 + $0x1b0] sm:$0xff] %vm633, 0.0
          %753 = vst.msk [vmem:[#allocation4 + $0x1b8] sm:$0xff] %vm633, 0.0
          %754 = vst.msk [vmem:[#allocation4 + $0x1c0] sm:$0xff] %vm633, 0.0
          %755 = vst.msk [vmem:[#allocation4 + $0x1c8] sm:$0xff] %vm633, 0.0
          %756 = vst.msk [vmem:[#allocation4 + $0x1d0] sm:$0xff] %vm633, 0.0
          %757 = vst.msk [vmem:[#allocation4 + $0x1d8] sm:$0xff] %vm633, 0.0
          %758 = vst.msk [vmem:[#allocation4 + $0x1e0] sm:$0xff] %vm633, 0.0
          %759 = vst.msk [vmem:[#allocation4 + $0x1e8] sm:$0xff] %vm633, 0.0
          %760 = vst.msk [vmem:[#allocation4 + $0x1f0] sm:$0xff] %vm633, 0.0
          %761 = vst.msk [vmem:[#allocation4 + $0x1f8] sm:$0xff] %vm633, 0.0
          %762 = vst [vmem:[#allocation5] sm:$0xff] 0.0
          %763 = vst [vmem:[#allocation5 + $0x8] sm:$0xff] 0.0
          %764 = vst [vmem:[#allocation5 + $0x10] sm:$0xff] 0.0
          %765 = vst [vmem:[#allocation5 + $0x18] sm:$0xff] 0.0
          %766 = vst [vmem:[#allocation5 + $0x20] sm:$0xff] 0.0
          %767 = vst [vmem:[#allocation5 + $0x28] sm:$0xff] 0.0
          %768 = vst [vmem:[#allocation5 + $0x30] sm:$0xff] 0.0
          %769 = vst [vmem:[#allocation5 + $0x38] sm:$0xff] 0.0
          %770 = vst [vmem:[#allocation5 + $0x40] sm:$0xff] 0.0
          %771 = vst [vmem:[#allocation5 + $0x48] sm:$0xff] 0.0
          %772 = vst [vmem:[#allocation5 + $0x50] sm:$0xff] 0.0
          %773 = vst [vmem:[#allocation5 + $0x58] sm:$0xff] 0.0
          %774 = vst [vmem:[#allocation5 + $0x60] sm:$0xff] 0.0
          %775 = vst [vmem:[#allocation5 + $0x68] sm:$0xff] 0.0
          %776 = vst [vmem:[#allocation5 + $0x70] sm:$0xff] 0.0
          %777 = vst [vmem:[#allocation5 + $0x78] sm:$0xff] 0.0
          %778 = vst [vmem:[#allocation5 + $0x80] sm:$0xff] 0.0
          %779 = vst [vmem:[#allocation5 + $0x88] sm:$0xff] 0.0
          %780 = vst [vmem:[#allocation5 + $0x90] sm:$0xff] 0.0
          %781 = vst [vmem:[#allocation5 + $0x98] sm:$0xff] 0.0
          %782 = vst [vmem:[#allocation5 + $0xa0] sm:$0xff] 0.0
          %783 = vst [vmem:[#allocation5 + $0xa8] sm:$0xff] 0.0
          %784 = vst [vmem:[#allocation5 + $0xb0] sm:$0xff] 0.0
          %785 = vst [vmem:[#allocation5 + $0xb8] sm:$0xff] 0.0
          %786 = vst [vmem:[#allocation5 + $0xc0] sm:$0xff] 0.0
          %787 = vst [vmem:[#allocation5 + $0xc8] sm:$0xff] 0.0
          %788 = vst [vmem:[#allocation5 + $0xd0] sm:$0xff] 0.0
          %789 = vst [vmem:[#allocation5 + $0xd8] sm:$0xff] 0.0
          %790 = vst [vmem:[#allocation5 + $0xe0] sm:$0xff] 0.0
          %791 = vst [vmem:[#allocation5 + $0xe8] sm:$0xff] 0.0
          %792 = vst [vmem:[#allocation5 + $0xf0] sm:$0xff] 0.0
          %793 = vst [vmem:[#allocation5 + $0xf8] sm:$0xff] 0.0
          %794 = vst [vmem:[#allocation5 + $0x100] sm:$0xff] 0.0
          %795 = vst [vmem:[#allocation5 + $0x108] sm:$0xff] 0.0
          %796 = vst [vmem:[#allocation5 + $0x110] sm:$0xff] 0.0
          %797 = vst [vmem:[#allocation5 + $0x118] sm:$0xff] 0.0
          %798 = vst [vmem:[#allocation5 + $0x120] sm:$0xff] 0.0
          %799 = vst [vmem:[#allocation5 + $0x128] sm:$0xff] 0.0
          %800 = vst [vmem:[#allocation5 + $0x130] sm:$0xff] 0.0
          %801 = vst [vmem:[#allocation5 + $0x138] sm:$0xff] 0.0
          %802 = vst [vmem:[#allocation5 + $0x140] sm:$0xff] 0.0
          %803 = vst [vmem:[#allocation5 + $0x148] sm:$0xff] 0.0
          %804 = vst [vmem:[#allocation5 + $0x150] sm:$0xff] 0.0
          %805 = vst [vmem:[#allocation5 + $0x158] sm:$0xff] 0.0
          %806 = vst [vmem:[#allocation5 + $0x160] sm:$0xff] 0.0
          %807 = vst [vmem:[#allocation5 + $0x168] sm:$0xff] 0.0
          %808 = vst [vmem:[#allocation5 + $0x170] sm:$0xff] 0.0
          %809 = vst [vmem:[#allocation5 + $0x178] sm:$0xff] 0.0
          %810 = vst [vmem:[#allocation5 + $0x180] sm:$0xff] 0.0
          %811 = vst [vmem:[#allocation5 + $0x188] sm:$0xff] 0.0
          %812 = vst [vmem:[#allocation5 + $0x190] sm:$0xff] 0.0
          %813 = vst [vmem:[#allocation5 + $0x198] sm:$0xff] 0.0
          %814 = vst [vmem:[#allocation5 + $0x1a0] sm:$0xff] 0.0
          %815 = vst [vmem:[#allocation5 + $0x1a8] sm:$0xff] 0.0
          %816 = vst [vmem:[#allocation5 + $0x1b0] sm:$0xff] 0.0
          %817 = vst [vmem:[#allocation5 + $0x1b8] sm:$0xff] 0.0
          %818 = vst [vmem:[#allocation5 + $0x1c0] sm:$0xff] 0.0
          %819 = vst [vmem:[#allocation5 + $0x1c8] sm:$0xff] 0.0
          %820 = vst [vmem:[#allocation5 + $0x1d0] sm:$0xff] 0.0
          %821 = vst [vmem:[#allocation5 + $0x1d8] sm:$0xff] 0.0
          %822 = vst [vmem:[#allocation5 + $0x1e0] sm:$0xff] 0.0
          %823 = vst [vmem:[#allocation5 + $0x1e8] sm:$0xff] 0.0
          %824 = vst [vmem:[#allocation5 + $0x1f0] sm:$0xff] 0.0
          %825 = vst [vmem:[#allocation5 + $0x1f8] sm:$0xff] 0.0
        $region48: #{tpu_custom_call.1} parent=31 // pred_fallthru
          _
        %v826 = vld [vmem:[%s261] sm:$0xf]
        %v827 = vld [vmem:[%s261 + $0x4] sm:$0xf]
        %v828 = vld [vmem:[%s261 + $0x8] sm:$0xf]
        %v829 = vld [vmem:[%s261 + $0xc] sm:$0xf]
        %v830 = vld [vmem:[%s261 + $0x10] sm:$0xf]
        %v831 = vld [vmem:[%s261 + $0x14] sm:$0xf]
        %v832 = vld [vmem:[%s261 + $0x18] sm:$0xf]
        %v833 = vld [vmem:[%s261 + $0x1c] sm:$0xf]
        %v834 = vld [vmem:[%s261 + $0x20] sm:$0xf]
        %v835 = vld [vmem:[%s261 + $0x24] sm:$0xf]
        %v836 = vld [vmem:[%s261 + $0x28] sm:$0xf]
        %v837 = vld [vmem:[%s261 + $0x2c] sm:$0xf]
        %v838 = vld [vmem:[%s261 + $0x30] sm:$0xf]
        %v839 = vld [vmem:[%s261 + $0x34] sm:$0xf]
        %v840 = vld [vmem:[%s261 + $0x38] sm:$0xf]
        %v841 = vld [vmem:[%s261 + $0x3c] sm:$0xf]
        %v842 = vld [vmem:[%s261 + $0x40] sm:$0xf]
        %v843 = vld [vmem:[%s261 + $0x44] sm:$0xf]
        %v844 = vld [vmem:[%s261 + $0x48] sm:$0xf]
        %v845 = vld [vmem:[%s261 + $0x4c] sm:$0xf]
        %v846 = vld [vmem:[%s261 + $0x50] sm:$0xf]
        %v847 = vld [vmem:[%s261 + $0x54] sm:$0xf]
        %v848 = vld [vmem:[%s261 + $0x58] sm:$0xf]
        %v849 = vld [vmem:[%s261 + $0x5c] sm:$0xf]
        %v850 = vld [vmem:[%s261 + $0x60] sm:$0xf]
        %v851 = vld [vmem:[%s261 + $0x64] sm:$0xf]
        %v852 = vld [vmem:[%s261 + $0x68] sm:$0xf]
        %v853 = vld [vmem:[%s261 + $0x6c] sm:$0xf]
        %v854 = vld [vmem:[%s261 + $0x70] sm:$0xf]
        %v855 = vld [vmem:[%s261 + $0x74] sm:$0xf]
        %v856 = vld [vmem:[%s261 + $0x78] sm:$0xf]
        %v857 = vld [vmem:[%s261 + $0x7c] sm:$0xf]
        %v858 = vld [vmem:[%s271] sm:$0xf]
        %v859 = vld [vmem:[%s271 + $0x4] sm:$0xf]
        %v860 = vld [vmem:[%s271 + $0x8] sm:$0xf]
        %v861 = vld [vmem:[%s271 + $0xc] sm:$0xf]
        %v862 = vld [vmem:[%s271 + $0x10] sm:$0xf]
        %v863 = vld [vmem:[%s271 + $0x14] sm:$0xf]
        %v864 = vld [vmem:[%s271 + $0x18] sm:$0xf]
        %v865 = vld [vmem:[%s271 + $0x1c] sm:$0xf]
        %v866 = vld [vmem:[%s271 + $0x20] sm:$0xf]
        %v867 = vld [vmem:[%s271 + $0x24] sm:$0xf]
        %v868 = vld [vmem:[%s271 + $0x28] sm:$0xf]
        %v869 = vld [vmem:[%s271 + $0x2c] sm:$0xf]
        %v870 = vld [vmem:[%s271 + $0x30] sm:$0xf]
        %v871 = vld [vmem:[%s271 + $0x34] sm:$0xf]
        %v872 = vld [vmem:[%s271 + $0x38] sm:$0xf]
        %v873 = vld [vmem:[%s271 + $0x3c] sm:$0xf]
        %v874 = vld [vmem:[%s271 + $0x40] sm:$0xf]
        %v875 = vld [vmem:[%s271 + $0x44] sm:$0xf]
        %v876 = vld [vmem:[%s271 + $0x48] sm:$0xf]
        %v877 = vld [vmem:[%s271 + $0x4c] sm:$0xf]
        %v878 = vld [vmem:[%s271 + $0x50] sm:$0xf]
        %v879 = vld [vmem:[%s271 + $0x54] sm:$0xf]
        %v880 = vld [vmem:[%s271 + $0x58] sm:$0xf]
        %v881 = vld [vmem:[%s271 + $0x5c] sm:$0xf]
        %v882 = vld [vmem:[%s271 + $0x60] sm:$0xf]
        %v883 = vld [vmem:[%s271 + $0x64] sm:$0xf]
        %v884 = vld [vmem:[%s271 + $0x68] sm:$0xf]
        %v885 = vld [vmem:[%s271 + $0x6c] sm:$0xf]
        %v886 = vld [vmem:[%s271 + $0x70] sm:$0xf]
        %v887 = vld [vmem:[%s271 + $0x74] sm:$0xf]
        %v888 = vld [vmem:[%s271 + $0x78] sm:$0xf]
        %v889 = vld [vmem:[%s271 + $0x7c] sm:$0xf]
        %v890 = vld [vmem:[#allocation2] sm:$0xf]
        %v891 = vld [vmem:[#allocation2 + $0x4] sm:$0xf]
        %v892 = vld [vmem:[#allocation2 + $0x8] sm:$0xf]
        %v893 = vld [vmem:[#allocation2 + $0xc] sm:$0xf]
        %v894 = vld [vmem:[#allocation2 + $0x10] sm:$0xf]
        %v895 = vld [vmem:[#allocation2 + $0x14] sm:$0xf]
        %v896 = vld [vmem:[#allocation2 + $0x18] sm:$0xf]
        %v897 = vld [vmem:[#allocation2 + $0x1c] sm:$0xf]
        %v898 = vld [vmem:[#allocation2 + $0x20] sm:$0xf]
        %v899 = vld [vmem:[#allocation2 + $0x24] sm:$0xf]
        %v900 = vld [vmem:[#allocation2 + $0x28] sm:$0xf]
        %v901 = vld [vmem:[#allocation2 + $0x2c] sm:$0xf]
        %v902 = vld [vmem:[#allocation2 + $0x30] sm:$0xf]
        %v903 = vld [vmem:[#allocation2 + $0x34] sm:$0xf]
        %v904 = vld [vmem:[#allocation2 + $0x38] sm:$0xf]
        %v905 = vld [vmem:[#allocation2 + $0x3c] sm:$0xf]
        %v906 = vld [vmem:[#allocation2 + $0x40] sm:$0xf]
        %v907 = vld [vmem:[#allocation2 + $0x44] sm:$0xf]
        %v908 = vld [vmem:[#allocation2 + $0x48] sm:$0xf]
        %v909 = vld [vmem:[#allocation2 + $0x4c] sm:$0xf]
        %v910 = vld [vmem:[#allocation2 + $0x50] sm:$0xf]
        %v911 = vld [vmem:[#allocation2 + $0x54] sm:$0xf]
        %v912 = vld [vmem:[#allocation2 + $0x58] sm:$0xf]
        %v913 = vld [vmem:[#allocation2 + $0x5c] sm:$0xf]
        %v914 = vld [vmem:[#allocation2 + $0x60] sm:$0xf]
        %v915 = vld [vmem:[#allocation2 + $0x64] sm:$0xf]
        %v916 = vld [vmem:[#allocation2 + $0x68] sm:$0xf]
        %v917 = vld [vmem:[#allocation2 + $0x6c] sm:$0xf]
        %v918 = vld [vmem:[#allocation2 + $0x70] sm:$0xf]
        %v919 = vld [vmem:[#allocation2 + $0x74] sm:$0xf]
        %v920 = vld [vmem:[#allocation2 + $0x78] sm:$0xf]
        %v921 = vld [vmem:[#allocation2 + $0x7c] sm:$0xf]
        %v922 = vld [vmem:[#allocation2 + $0x80] sm:$0xf]
        %v923 = vld [vmem:[#allocation2 + $0x84] sm:$0xf]
        %v924 = vld [vmem:[#allocation2 + $0x88] sm:$0xf]
        %v925 = vld [vmem:[#allocation2 + $0x8c] sm:$0xf]
        %v926 = vld [vmem:[#allocation2 + $0x90] sm:$0xf]
        %v927 = vld [vmem:[#allocation2 + $0x94] sm:$0xf]
        %v928 = vld [vmem:[#allocation2 + $0x98] sm:$0xf]
        %v929 = vld [vmem:[#allocation2 + $0x9c] sm:$0xf]
        %v930 = vld [vmem:[#allocation2 + $0xa0] sm:$0xf]
        %v931 = vld [vmem:[#allocation2 + $0xa4] sm:$0xf]
        %v932 = vld [vmem:[#allocation2 + $0xa8] sm:$0xf]
        %v933 = vld [vmem:[#allocation2 + $0xac] sm:$0xf]
        %v934 = vld [vmem:[#allocation2 + $0xb0] sm:$0xf]
        %v935 = vld [vmem:[#allocation2 + $0xb4] sm:$0xf]
        %v936 = vld [vmem:[#allocation2 + $0xb8] sm:$0xf]
        %v937 = vld [vmem:[#allocation2 + $0xbc] sm:$0xf]
        %v938 = vld [vmem:[#allocation2 + $0xc0] sm:$0xf]
        %v939 = vld [vmem:[#allocation2 + $0xc4] sm:$0xf]
        %v940 = vld [vmem:[#allocation2 + $0xc8] sm:$0xf]
        %v941 = vld [vmem:[#allocation2 + $0xcc] sm:$0xf]
        %v942 = vld [vmem:[#allocation2 + $0xd0] sm:$0xf]
        %v943 = vld [vmem:[#allocation2 + $0xd4] sm:$0xf]
        %v944 = vld [vmem:[#allocation2 + $0xd8] sm:$0xf]
        %v945 = vld [vmem:[#allocation2 + $0xdc] sm:$0xf]
        %v946 = vld [vmem:[#allocation2 + $0xe0] sm:$0xf]
        %v947 = vld [vmem:[#allocation2 + $0xe4] sm:$0xf]
        %v948 = vld [vmem:[#allocation2 + $0xe8] sm:$0xf]
        %v949 = vld [vmem:[#allocation2 + $0xec] sm:$0xf]
        %v950 = vld [vmem:[#allocation2 + $0xf0] sm:$0xf]
        %v951 = vld [vmem:[#allocation2 + $0xf4] sm:$0xf]
        %v952 = vld [vmem:[#allocation2 + $0xf8] sm:$0xf]
        %v953 = vld [vmem:[#allocation2 + $0xfc] sm:$0xf]
        %v1018 = vunpack.c.l.b16 %v890
        %v1019 = vunpack.c.l.b16 %v891
        %v1020 = vunpack.c.l.b16 %v892
        %v1021 = vunpack.c.l.b16 %v893
        %v1022 = vunpack.c.l.b16 %v894
        %v1023 = vunpack.c.l.b16 %v895
        %v1024 = vunpack.c.l.b16 %v896
        %v1025 = vunpack.c.l.b16 %v897
        %v1026 = vunpack.c.l.b16 %v898
        %v1027 = vunpack.c.l.b16 %v899
        %v1028 = vunpack.c.l.b16 %v900
        %v1029 = vunpack.c.l.b16 %v901
        %v1030 = vunpack.c.l.b16 %v902
        %v1031 = vunpack.c.l.b16 %v903
        %v1032 = vunpack.c.l.b16 %v904
        %v1033 = vunpack.c.l.b16 %v905
        %v1034 = vunpack.c.l.b16 %v906
        %v1035 = vunpack.c.l.b16 %v907
        %v1036 = vunpack.c.l.b16 %v908
        %v1037 = vunpack.c.l.b16 %v909
        %v1038 = vunpack.c.l.b16 %v910
        %v1039 = vunpack.c.l.b16 %v911
        %v1040 = vunpack.c.l.b16 %v912
        %v1041 = vunpack.c.l.b16 %v913
        %v1042 = vunpack.c.l.b16 %v914
        %v1043 = vunpack.c.l.b16 %v915
        %v1044 = vunpack.c.l.b16 %v916
        %v1045 = vunpack.c.l.b16 %v917
        %v1046 = vunpack.c.l.b16 %v918
        %v1047 = vunpack.c.l.b16 %v919
        %v1048 = vunpack.c.l.b16 %v920
        %v1049 = vunpack.c.l.b16 %v921
        %v1050 = vunpack.c.l.b16 %v922
        %v1051 = vunpack.c.l.b16 %v923
        %v1052 = vunpack.c.l.b16 %v924
        %v1053 = vunpack.c.l.b16 %v925
        %v1054 = vunpack.c.l.b16 %v926
        %v1055 = vunpack.c.l.b16 %v927
        %v1056 = vunpack.c.l.b16 %v928
        %v1057 = vunpack.c.l.b16 %v929
        %v1058 = vunpack.c.l.b16 %v930
        %v1059 = vunpack.c.l.b16 %v931
        %v1060 = vunpack.c.l.b16 %v932
        %v1061 = vunpack.c.l.b16 %v933
        %v1062 = vunpack.c.l.b16 %v934
        %v1063 = vunpack.c.l.b16 %v935
        %v1064 = vunpack.c.l.b16 %v936
        %v1065 = vunpack.c.l.b16 %v937
        %v1066 = vunpack.c.l.b16 %v938
        %v1067 = vunpack.c.l.b16 %v939
        %v1068 = vunpack.c.l.b16 %v940
        %v1069 = vunpack.c.l.b16 %v941
        %v1070 = vunpack.c.l.b16 %v942
        %v1071 = vunpack.c.l.b16 %v943
        %v1072 = vunpack.c.l.b16 %v944
        %v1073 = vunpack.c.l.b16 %v945
        %v1074 = vunpack.c.l.b16 %v946
        %v1075 = vunpack.c.l.b16 %v947
        %v1076 = vunpack.c.l.b16 %v948
        %v1077 = vunpack.c.l.b16 %v949
        %v1078 = vunpack.c.l.b16 %v950
        %v1079 = vunpack.c.l.b16 %v951
        %v1080 = vunpack.c.l.b16 %v952
        %v1081 = vunpack.c.l.b16 %v953
        %v1082 = vpack.c.b16 %v1019, %v1018
        %v1083 = vpack.c.b16 %v1021, %v1020
        %v1084 = vpack.c.b16 %v1023, %v1022
        %v1085 = vpack.c.b16 %v1025, %v1024
        %v1086 = vpack.c.b16 %v1027, %v1026
        %v1087 = vpack.c.b16 %v1029, %v1028
        %v1088 = vpack.c.b16 %v1031, %v1030
        %v1089 = vpack.c.b16 %v1033, %v1032
        %v1090 = vpack.c.b16 %v1035, %v1034
        %v1091 = vpack.c.b16 %v1037, %v1036
        %v1092 = vpack.c.b16 %v1039, %v1038
        %v1093 = vpack.c.b16 %v1041, %v1040
        %v1094 = vpack.c.b16 %v1043, %v1042
        %v1095 = vpack.c.b16 %v1045, %v1044
        %v1096 = vpack.c.b16 %v1047, %v1046
        %v1097 = vpack.c.b16 %v1049, %v1048
        %v1098 = vpack.c.b16 %v1051, %v1050
        %v1099 = vpack.c.b16 %v1053, %v1052
        %v1100 = vpack.c.b16 %v1055, %v1054
        %v1101 = vpack.c.b16 %v1057, %v1056
        %v1102 = vpack.c.b16 %v1059, %v1058
        %v1103 = vpack.c.b16 %v1061, %v1060
        %v1104 = vpack.c.b16 %v1063, %v1062
        %v1105 = vpack.c.b16 %v1065, %v1064
        %v1106 = vpack.c.b16 %v1067, %v1066
        %v1107 = vpack.c.b16 %v1069, %v1068
        %v1108 = vpack.c.b16 %v1071, %v1070
        %v1109 = vpack.c.b16 %v1073, %v1072
        %v1110 = vpack.c.b16 %v1075, %v1074
        %v1111 = vpack.c.b16 %v1077, %v1076
        %v1112 = vpack.c.b16 %v1079, %v1078
        %v1113 = vpack.c.b16 %v1081, %v1080
        %v1178 = vunpack.c.l.b16 %v826
        %v1179 = vunpack.c.l.b16 %v827
        %v1180 = vunpack.c.l.b16 %v828
        %v1181 = vunpack.c.l.b16 %v829
        %v1182 = vunpack.c.l.b16 %v830
        %v1183 = vunpack.c.l.b16 %v831
        %v1184 = vunpack.c.l.b16 %v832
        %v1185 = vunpack.c.l.b16 %v833
        %v1186 = vunpack.c.l.b16 %v834
        %v1187 = vunpack.c.l.b16 %v835
        %v1188 = vunpack.c.l.b16 %v836
        %v1189 = vunpack.c.l.b16 %v837
        %v1190 = vunpack.c.l.b16 %v838
        %v1191 = vunpack.c.l.b16 %v839
        %v1192 = vunpack.c.l.b16 %v840
        %v1193 = vunpack.c.l.b16 %v841
        %v1194 = vunpack.c.l.b16 %v842
        %v1195 = vunpack.c.l.b16 %v843
        %v1196 = vunpack.c.l.b16 %v844
        %v1197 = vunpack.c.l.b16 %v845
        %v1198 = vunpack.c.l.b16 %v846
        %v1199 = vunpack.c.l.b16 %v847
        %v1200 = vunpack.c.l.b16 %v848
        %v1201 = vunpack.c.l.b16 %v849
        %v1202 = vunpack.c.l.b16 %v850
        %v1203 = vunpack.c.l.b16 %v851
        %v1204 = vunpack.c.l.b16 %v852
        %v1205 = vunpack.c.l.b16 %v853
        %v1206 = vunpack.c.l.b16 %v854
        %v1207 = vunpack.c.l.b16 %v855
        %v1208 = vunpack.c.l.b16 %v856
        %v1209 = vunpack.c.l.b16 %v857
        %v1210 = vpack.c.b16 %v1179, %v1178
        %v1211 = vpack.c.b16 %v1181, %v1180
        %v1212 = vpack.c.b16 %v1183, %v1182
        %v1213 = vpack.c.b16 %v1185, %v1184
        %v1214 = vpack.c.b16 %v1187, %v1186
        %v1215 = vpack.c.b16 %v1189, %v1188
        %v1216 = vpack.c.b16 %v1191, %v1190
        %v1217 = vpack.c.b16 %v1193, %v1192
        %v1218 = vpack.c.b16 %v1195, %v1194
        %v1219 = vpack.c.b16 %v1197, %v1196
        %v1220 = vpack.c.b16 %v1199, %v1198
        %v1221 = vpack.c.b16 %v1201, %v1200
        %v1222 = vpack.c.b16 %v1203, %v1202
        %v1223 = vpack.c.b16 %v1205, %v1204
        %v1224 = vpack.c.b16 %v1207, %v1206
        %v1225 = vpack.c.b16 %v1209, %v1208
        %1242 = vmatpush.bf16.xpose.msra.mxu0 %v1217
        %1243 = vmatpush.bf16.xpose.msra.mxu0 %v1216
        %1244 = vmatpush.bf16.xpose.msra.mxu0 %v1215
        %1245 = vmatpush.bf16.xpose.msra.mxu0 %v1214
        %1246 = vmatpush.bf16.xpose.msra.mxu0 %v1213
        %1247 = vmatpush.bf16.xpose.msra.mxu0 %v1212
        %1248 = vmatpush.bf16.xpose.msra.mxu0 %v1211
        %1249 = vmatpush.bf16.xpose.msra.mxu0 %v1210
        %1250 = vmatmul.bf16.gmra.mxu0 %v1082
        %v1251 = vpop.f32.mrf.mxu0
        %v1252 = vadd.f32 0.0, %v1251
        %v1253 = vpop.f32.mrf.mxu0
        %v1254 = vadd.f32 0.0, %v1253
        %1255 = vmatmul.bf16.gmra.mxu0 %v1083
        %v1256 = vpop.f32.mrf.mxu0
        %v1257 = vadd.f32 0.0, %v1256
        %v1258 = vpop.f32.mrf.mxu0
        %v1259 = vadd.f32 0.0, %v1258
        %1260 = vmatmul.bf16.gmra.mxu0 %v1084
        %v1261 = vpop.f32.mrf.mxu0
        %v1262 = vadd.f32 0.0, %v1261
        %v1263 = vpop.f32.mrf.mxu0
        %v1264 = vadd.f32 0.0, %v1263
        %1265 = vmatmul.bf16.gmra.mxu0 %v1085
        %v1266 = vpop.f32.mrf.mxu0
        %v1267 = vadd.f32 0.0, %v1266
        %v1268 = vpop.f32.mrf.mxu0
        %v1269 = vadd.f32 0.0, %v1268
        %1270 = vmatmul.bf16.gmra.mxu0 %v1086
        %v1271 = vpop.f32.mrf.mxu0
        %v1272 = vadd.f32 0.0, %v1271
        %v1273 = vpop.f32.mrf.mxu0
        %v1274 = vadd.f32 0.0, %v1273
        %1275 = vmatmul.bf16.gmra.mxu0 %v1087
        %v1276 = vpop.f32.mrf.mxu0
        %v1277 = vadd.f32 0.0, %v1276
        %v1278 = vpop.f32.mrf.mxu0
        %v1279 = vadd.f32 0.0, %v1278
        %1280 = vmatmul.bf16.gmra.mxu0 %v1088
        %v1281 = vpop.f32.mrf.mxu0
        %v1282 = vadd.f32 0.0, %v1281
        %v1283 = vpop.f32.mrf.mxu0
        %v1284 = vadd.f32 0.0, %v1283
        %1285 = vmatmul.bf16.gmra.mxu0 %v1089
        %v1286 = vpop.f32.mrf.mxu0
        %v1287 = vadd.f32 0.0, %v1286
        %v1288 = vpop.f32.mrf.mxu0
        %v1289 = vadd.f32 0.0, %v1288
        %1290 = vmatmul.bf16.gmra.mxu0 %v1090
        %v1291 = vpop.f32.mrf.mxu0
        %v1292 = vadd.f32 0.0, %v1291
        %v1293 = vpop.f32.mrf.mxu0
        %v1294 = vadd.f32 0.0, %v1293
        %1295 = vmatmul.bf16.gmra.mxu0 %v1091
        %v1296 = vpop.f32.mrf.mxu0
        %v1297 = vadd.f32 0.0, %v1296
        %v1298 = vpop.f32.mrf.mxu0
        %v1299 = vadd.f32 0.0, %v1298
        %1300 = vmatmul.bf16.gmra.mxu0 %v1092
        %v1301 = vpop.f32.mrf.mxu0
        %v1302 = vadd.f32 0.0, %v1301
        %v1303 = vpop.f32.mrf.mxu0
        %v1304 = vadd.f32 0.0, %v1303
        %1305 = vmatmul.bf16.gmra.mxu0 %v1093
        %v1306 = vpop.f32.mrf.mxu0
        %v1307 = vadd.f32 0.0, %v1306
        %v1308 = vpop.f32.mrf.mxu0
        %v1309 = vadd.f32 0.0, %v1308
        %1310 = vmatmul.bf16.gmra.mxu0 %v1094
        %v1311 = vpop.f32.mrf.mxu0
        %v1312 = vadd.f32 0.0, %v1311
        %v1313 = vpop.f32.mrf.mxu0
        %v1314 = vadd.f32 0.0, %v1313
        %1315 = vmatmul.bf16.gmra.mxu0 %v1095
        %v1316 = vpop.f32.mrf.mxu0
        %v1317 = vadd.f32 0.0, %v1316
        %v1318 = vpop.f32.mrf.mxu0
        %v1319 = vadd.f32 0.0, %v1318
        %1320 = vmatmul.bf16.gmra.mxu0 %v1096
        %v1321 = vpop.f32.mrf.mxu0
        %v1322 = vadd.f32 0.0, %v1321
        %v1323 = vpop.f32.mrf.mxu0
        %v1324 = vadd.f32 0.0, %v1323
        %1325 = vmatmul.bf16.gmra.mxu0 %v1097
        %v1326 = vpop.f32.mrf.mxu0
        %v1327 = vadd.f32 0.0, %v1326
        %v1328 = vpop.f32.mrf.mxu0
        %v1329 = vadd.f32 0.0, %v1328
        %1330 = vmatmul.bf16.gmra.mxu0 %v1098
        %v1331 = vpop.f32.mrf.mxu0
        %v1332 = vadd.f32 0.0, %v1331
        %v1333 = vpop.f32.mrf.mxu0
        %v1334 = vadd.f32 0.0, %v1333
        %1335 = vmatmul.bf16.gmra.mxu0 %v1099
        %v1336 = vpop.f32.mrf.mxu0
        %v1337 = vadd.f32 0.0, %v1336
        %v1338 = vpop.f32.mrf.mxu0
        %v1339 = vadd.f32 0.0, %v1338
        %1340 = vmatmul.bf16.gmra.mxu0 %v1100
        %v1341 = vpop.f32.mrf.mxu0
        %v1342 = vadd.f32 0.0, %v1341
        %v1343 = vpop.f32.mrf.mxu0
        %v1344 = vadd.f32 0.0, %v1343
        %1345 = vmatmul.bf16.gmra.mxu0 %v1101
        %v1346 = vpop.f32.mrf.mxu0
        %v1347 = vadd.f32 0.0, %v1346
        %v1348 = vpop.f32.mrf.mxu0
        %v1349 = vadd.f32 0.0, %v1348
        %1350 = vmatmul.bf16.gmra.mxu0 %v1102
        %v1351 = vpop.f32.mrf.mxu0
        %v1352 = vadd.f32 0.0, %v1351
        %v1353 = vpop.f32.mrf.mxu0
        %v1354 = vadd.f32 0.0, %v1353
        %1355 = vmatmul.bf16.gmra.mxu0 %v1103
        %v1356 = vpop.f32.mrf.mxu0
        %v1357 = vadd.f32 0.0, %v1356
        %v1358 = vpop.f32.mrf.mxu0
        %v1359 = vadd.f32 0.0, %v1358
        %1360 = vmatmul.bf16.gmra.mxu0 %v1104
        %v1361 = vpop.f32.mrf.mxu0
        %v1362 = vadd.f32 0.0, %v1361
        %v1363 = vpop.f32.mrf.mxu0
        %v1364 = vadd.f32 0.0, %v1363
        %1365 = vmatmul.bf16.gmra.mxu0 %v1105
        %v1366 = vpop.f32.mrf.mxu0
        %v1367 = vadd.f32 0.0, %v1366
        %v1368 = vpop.f32.mrf.mxu0
        %v1369 = vadd.f32 0.0, %v1368
        %1370 = vmatmul.bf16.gmra.mxu0 %v1106
        %v1371 = vpop.f32.mrf.mxu0
        %v1372 = vadd.f32 0.0, %v1371
        %v1373 = vpop.f32.mrf.mxu0
        %v1374 = vadd.f32 0.0, %v1373
        %1375 = vmatmul.bf16.gmra.mxu0 %v1107
        %v1376 = vpop.f32.mrf.mxu0
        %v1377 = vadd.f32 0.0, %v1376
        %v1378 = vpop.f32.mrf.mxu0
        %v1379 = vadd.f32 0.0, %v1378
        %1380 = vmatmul.bf16.gmra.mxu0 %v1108
        %v1381 = vpop.f32.mrf.mxu0
        %v1382 = vadd.f32 0.0, %v1381
        %v1383 = vpop.f32.mrf.mxu0
        %v1384 = vadd.f32 0.0, %v1383
        %1385 = vmatmul.bf16.gmra.mxu0 %v1109
        %v1386 = vpop.f32.mrf.mxu0
        %v1387 = vadd.f32 0.0, %v1386
        %v1388 = vpop.f32.mrf.mxu0
        %v1389 = vadd.f32 0.0, %v1388
        %1390 = vmatmul.bf16.gmra.mxu0 %v1110
        %v1391 = vpop.f32.mrf.mxu0
        %v1392 = vadd.f32 0.0, %v1391
        %v1393 = vpop.f32.mrf.mxu0
        %v1394 = vadd.f32 0.0, %v1393
        %1395 = vmatmul.bf16.gmra.mxu0 %v1111
        %v1396 = vpop.f32.mrf.mxu0
        %v1397 = vadd.f32 0.0, %v1396
        %v1398 = vpop.f32.mrf.mxu0
        %v1399 = vadd.f32 0.0, %v1398
        %1400 = vmatmul.bf16.gmra.mxu0 %v1112
        %v1401 = vpop.f32.mrf.mxu0
        %v1402 = vadd.f32 0.0, %v1401
        %v1403 = vpop.f32.mrf.mxu0
        %v1404 = vadd.f32 0.0, %v1403
        %1405 = vmatmul.bf16.gmra.mxu0 %v1113
        %v1406 = vpop.f32.mrf.mxu0
        %v1407 = vadd.f32 0.0, %v1406
        %v1408 = vpop.f32.mrf.mxu0
        %v1409 = vadd.f32 0.0, %v1408
        %1410 = vdwg.mxu0
        %1411 = vmatpush.bf16.xpose.msra.mxu0 %v1225
        %1412 = vmatpush.bf16.xpose.msra.mxu0 %v1224
        %1413 = vmatpush.bf16.xpose.msra.mxu0 %v1223
        %1414 = vmatpush.bf16.xpose.msra.mxu0 %v1222
        %1415 = vmatpush.bf16.xpose.msra.mxu0 %v1221
        %1416 = vmatpush.bf16.xpose.msra.mxu0 %v1220
        %1417 = vmatpush.bf16.xpose.msra.mxu0 %v1219
        %1418 = vmatpush.bf16.xpose.msra.mxu0 %v1218
        %1419 = vmatmul.bf16.gmra.mxu0 %v1082
        %v1420 = vpop.f32.mrf.mxu0
        %v1421 = vadd.f32 0.0, %v1420
        %v1422 = vpop.f32.mrf.mxu0
        %v1423 = vadd.f32 0.0, %v1422
        %1424 = vmatmul.bf16.gmra.mxu0 %v1083
        %v1425 = vpop.f32.mrf.mxu0
        %v1426 = vadd.f32 0.0, %v1425
        %v1427 = vpop.f32.mrf.mxu0
        %v1428 = vadd.f32 0.0, %v1427
        %1429 = vmatmul.bf16.gmra.mxu0 %v1084
        %v1430 = vpop.f32.mrf.mxu0
        %v1431 = vadd.f32 0.0, %v1430
        %v1432 = vpop.f32.mrf.mxu0
        %v1433 = vadd.f32 0.0, %v1432
        %1434 = vmatmul.bf16.gmra.mxu0 %v1085
        %v1435 = vpop.f32.mrf.mxu0
        %v1436 = vadd.f32 0.0, %v1435
        %v1437 = vpop.f32.mrf.mxu0
        %v1438 = vadd.f32 0.0, %v1437
        %1439 = vmatmul.bf16.gmra.mxu0 %v1086
        %v1440 = vpop.f32.mrf.mxu0
        %v1441 = vadd.f32 0.0, %v1440
        %v1442 = vpop.f32.mrf.mxu0
        %v1443 = vadd.f32 0.0, %v1442
        %1444 = vmatmul.bf16.gmra.mxu0 %v1087
        %v1445 = vpop.f32.mrf.mxu0
        %v1446 = vadd.f32 0.0, %v1445
        %v1447 = vpop.f32.mrf.mxu0
        %v1448 = vadd.f32 0.0, %v1447
        %1449 = vmatmul.bf16.gmra.mxu0 %v1088
        %v1450 = vpop.f32.mrf.mxu0
        %v1451 = vadd.f32 0.0, %v1450
        %v1452 = vpop.f32.mrf.mxu0
        %v1453 = vadd.f32 0.0, %v1452
        %1454 = vmatmul.bf16.gmra.mxu0 %v1089
        %v1455 = vpop.f32.mrf.mxu0
        %v1456 = vadd.f32 0.0, %v1455
        %v1457 = vpop.f32.mrf.mxu0
        %v1458 = vadd.f32 0.0, %v1457
        %1459 = vmatmul.bf16.gmra.mxu0 %v1090
        %v1460 = vpop.f32.mrf.mxu0
        %v1461 = vadd.f32 0.0, %v1460
        %v1462 = vpop.f32.mrf.mxu0
        %v1463 = vadd.f32 0.0, %v1462
        %1464 = vmatmul.bf16.gmra.mxu0 %v1091
        %v1465 = vpop.f32.mrf.mxu0
        %v1466 = vadd.f32 0.0, %v1465
        %v1467 = vpop.f32.mrf.mxu0
        %v1468 = vadd.f32 0.0, %v1467
        %1469 = vmatmul.bf16.gmra.mxu0 %v1092
        %v1470 = vpop.f32.mrf.mxu0
        %v1471 = vadd.f32 0.0, %v1470
        %v1472 = vpop.f32.mrf.mxu0
        %v1473 = vadd.f32 0.0, %v1472
        %1474 = vmatmul.bf16.gmra.mxu0 %v1093
        %v1475 = vpop.f32.mrf.mxu0
        %v1476 = vadd.f32 0.0, %v1475
        %v1477 = vpop.f32.mrf.mxu0
        %v1478 = vadd.f32 0.0, %v1477
        %1479 = vmatmul.bf16.gmra.mxu0 %v1094
        %v1480 = vpop.f32.mrf.mxu0
        %v1481 = vadd.f32 0.0, %v1480
        %v1482 = vpop.f32.mrf.mxu0
        %v1483 = vadd.f32 0.0, %v1482
        %1484 = vmatmul.bf16.gmra.mxu0 %v1095
        %v1485 = vpop.f32.mrf.mxu0
        %v1486 = vadd.f32 0.0, %v1485
        %v1487 = vpop.f32.mrf.mxu0
        %v1488 = vadd.f32 0.0, %v1487
        %1489 = vmatmul.bf16.gmra.mxu0 %v1096
        %v1490 = vpop.f32.mrf.mxu0
        %v1491 = vadd.f32 0.0, %v1490
        %v1492 = vpop.f32.mrf.mxu0
        %v1493 = vadd.f32 0.0, %v1492
        %1494 = vmatmul.bf16.gmra.mxu0 %v1097
        %v1495 = vpop.f32.mrf.mxu0
        %v1496 = vadd.f32 0.0, %v1495
        %v1497 = vpop.f32.mrf.mxu0
        %v1498 = vadd.f32 0.0, %v1497
        %1499 = vmatmul.bf16.gmra.mxu0 %v1098
        %v1500 = vpop.f32.mrf.mxu0
        %v1501 = vadd.f32 0.0, %v1500
        %v1502 = vpop.f32.mrf.mxu0
        %v1503 = vadd.f32 0.0, %v1502
        %1504 = vmatmul.bf16.gmra.mxu0 %v1099
        %v1505 = vpop.f32.mrf.mxu0
        %v1506 = vadd.f32 0.0, %v1505
        %v1507 = vpop.f32.mrf.mxu0
        %v1508 = vadd.f32 0.0, %v1507
        %1509 = vmatmul.bf16.gmra.mxu0 %v1100
        %v1510 = vpop.f32.mrf.mxu0
        %v1511 = vadd.f32 0.0, %v1510
        %v1512 = vpop.f32.mrf.mxu0
        %v1513 = vadd.f32 0.0, %v1512
        %1514 = vmatmul.bf16.gmra.mxu0 %v1101
        %v1515 = vpop.f32.mrf.mxu0
        %v1516 = vadd.f32 0.0, %v1515
        %v1517 = vpop.f32.mrf.mxu0
        %v1518 = vadd.f32 0.0, %v1517
        %1519 = vmatmul.bf16.gmra.mxu0 %v1102
        %v1520 = vpop.f32.mrf.mxu0
        %v1521 = vadd.f32 0.0, %v1520
        %v1522 = vpop.f32.mrf.mxu0
        %v1523 = vadd.f32 0.0, %v1522
        %1524 = vmatmul.bf16.gmra.mxu0 %v1103
        %v1525 = vpop.f32.mrf.mxu0
        %v1526 = vadd.f32 0.0, %v1525
        %v1527 = vpop.f32.mrf.mxu0
        %v1528 = vadd.f32 0.0, %v1527
        %1529 = vmatmul.bf16.gmra.mxu0 %v1104
        %v1530 = vpop.f32.mrf.mxu0
        %v1531 = vadd.f32 0.0, %v1530
        %v1532 = vpop.f32.mrf.mxu0
        %v1533 = vadd.f32 0.0, %v1532
        %1534 = vmatmul.bf16.gmra.mxu0 %v1105
        %v1535 = vpop.f32.mrf.mxu0
        %v1536 = vadd.f32 0.0, %v1535
        %v1537 = vpop.f32.mrf.mxu0
        %v1538 = vadd.f32 0.0, %v1537
        %1539 = vmatmul.bf16.gmra.mxu0 %v1106
        %v1540 = vpop.f32.mrf.mxu0
        %v1541 = vadd.f32 0.0, %v1540
        %v1542 = vpop.f32.mrf.mxu0
        %v1543 = vadd.f32 0.0, %v1542
        %1544 = vmatmul.bf16.gmra.mxu0 %v1107
        %v1545 = vpop.f32.mrf.mxu0
        %v1546 = vadd.f32 0.0, %v1545
        %v1547 = vpop.f32.mrf.mxu0
        %v1548 = vadd.f32 0.0, %v1547
        %1549 = vmatmul.bf16.gmra.mxu0 %v1108
        %v1550 = vpop.f32.mrf.mxu0
        %v1551 = vadd.f32 0.0, %v1550
        %v1552 = vpop.f32.mrf.mxu0
        %v1553 = vadd.f32 0.0, %v1552
        %1554 = vmatmul.bf16.gmra.mxu0 %v1109
        %v1555 = vpop.f32.mrf.mxu0
        %v1556 = vadd.f32 0.0, %v1555
        %v1557 = vpop.f32.mrf.mxu0
        %v1558 = vadd.f32 0.0, %v1557
        %1559 = vmatmul.bf16.gmra.mxu0 %v1110
        %v1560 = vpop.f32.mrf.mxu0
        %v1561 = vadd.f32 0.0, %v1560
        %v1562 = vpop.f32.mrf.mxu0
        %v1563 = vadd.f32 0.0, %v1562
        %1564 = vmatmul.bf16.gmra.mxu0 %v1111
        %v1565 = vpop.f32.mrf.mxu0
        %v1566 = vadd.f32 0.0, %v1565
        %v1567 = vpop.f32.mrf.mxu0
        %v1568 = vadd.f32 0.0, %v1567
        %1569 = vmatmul.bf16.gmra.mxu0 %v1112
        %v1570 = vpop.f32.mrf.mxu0
        %v1571 = vadd.f32 0.0, %v1570
        %v1572 = vpop.f32.mrf.mxu0
        %v1573 = vadd.f32 0.0, %v1572
        %1574 = vmatmul.bf16.gmra.mxu0 %v1113
        %v1575 = vpop.f32.mrf.mxu0
        %v1576 = vadd.f32 0.0, %v1575
        %v1577 = vpop.f32.mrf.mxu0
        %v1578 = vadd.f32 0.0, %v1577
        %1579 = vdwg.mxu0
        %v1580 = vld [vmem:[#allocation3] sm:$0xff]
        %v1581 = vld [vmem:[#allocation3 + $0x8] sm:$0xff]
        %v1582 = vld [vmem:[#allocation3 + $0x10] sm:$0xff]
        %v1583 = vld [vmem:[#allocation3 + $0x18] sm:$0xff]
        %v1584 = vld [vmem:[#allocation3 + $0x20] sm:$0xff]
        %v1585 = vld [vmem:[#allocation3 + $0x28] sm:$0xff]
        %v1586 = vld [vmem:[#allocation3 + $0x30] sm:$0xff]
        %v1587 = vld [vmem:[#allocation3 + $0x38] sm:$0xff]
        %v1588 = vld [vmem:[#allocation3 + $0x40] sm:$0xff]
        %v1589 = vld [vmem:[#allocation3 + $0x48] sm:$0xff]
        %v1590 = vld [vmem:[#allocation3 + $0x50] sm:$0xff]
        %v1591 = vld [vmem:[#allocation3 + $0x58] sm:$0xff]
        %v1592 = vld [vmem:[#allocation3 + $0x60] sm:$0xff]
        %v1593 = vld [vmem:[#allocation3 + $0x68] sm:$0xff]
        %v1594 = vld [vmem:[#allocation3 + $0x70] sm:$0xff]
        %v1595 = vld [vmem:[#allocation3 + $0x78] sm:$0xff]
        %v1596 = vld [vmem:[#allocation3 + $0x80] sm:$0xff]
        %v1597 = vld [vmem:[#allocation3 + $0x88] sm:$0xff]
        %v1598 = vld [vmem:[#allocation3 + $0x90] sm:$0xff]
        %v1599 = vld [vmem:[#allocation3 + $0x98] sm:$0xff]
        %v1600 = vld [vmem:[#allocation3 + $0xa0] sm:$0xff]
        %v1601 = vld [vmem:[#allocation3 + $0xa8] sm:$0xff]
        %v1602 = vld [vmem:[#allocation3 + $0xb0] sm:$0xff]
        %v1603 = vld [vmem:[#allocation3 + $0xb8] sm:$0xff]
        %v1604 = vld [vmem:[#allocation3 + $0xc0] sm:$0xff]
        %v1605 = vld [vmem:[#allocation3 + $0xc8] sm:$0xff]
        %v1606 = vld [vmem:[#allocation3 + $0xd0] sm:$0xff]
        %v1607 = vld [vmem:[#allocation3 + $0xd8] sm:$0xff]
        %v1608 = vld [vmem:[#allocation3 + $0xe0] sm:$0xff]
        %v1609 = vld [vmem:[#allocation3 + $0xe8] sm:$0xff]
        %v1610 = vld [vmem:[#allocation3 + $0xf0] sm:$0xff]
        %v1611 = vld [vmem:[#allocation3 + $0xf8] sm:$0xff]
        %v1612 = vld [vmem:[#allocation3 + $0x100] sm:$0xff]
        %v1613 = vld [vmem:[#allocation3 + $0x108] sm:$0xff]
        %v1614 = vld [vmem:[#allocation3 + $0x110] sm:$0xff]
        %v1615 = vld [vmem:[#allocation3 + $0x118] sm:$0xff]
        %v1616 = vld [vmem:[#allocation3 + $0x120] sm:$0xff]
        %v1617 = vld [vmem:[#allocation3 + $0x128] sm:$0xff]
        %v1618 = vld [vmem:[#allocation3 + $0x130] sm:$0xff]
        %v1619 = vld [vmem:[#allocation3 + $0x138] sm:$0xff]
        %v1620 = vld [vmem:[#allocation3 + $0x140] sm:$0xff]
        %v1621 = vld [vmem:[#allocation3 + $0x148] sm:$0xff]
        %v1622 = vld [vmem:[#allocation3 + $0x150] sm:$0xff]
        %v1623 = vld [vmem:[#allocation3 + $0x158] sm:$0xff]
        %v1624 = vld [vmem:[#allocation3 + $0x160] sm:$0xff]
        %v1625 = vld [vmem:[#allocation3 + $0x168] sm:$0xff]
        %v1626 = vld [vmem:[#allocation3 + $0x170] sm:$0xff]
        %v1627 = vld [vmem:[#allocation3 + $0x178] sm:$0xff]
        %v1628 = vld [vmem:[#allocation3 + $0x180] sm:$0xff]
        %v1629 = vld [vmem:[#allocation3 + $0x188] sm:$0xff]
        %v1630 = vld [vmem:[#allocation3 + $0x190] sm:$0xff]
        %v1631 = vld [vmem:[#allocation3 + $0x198] sm:$0xff]
        %v1632 = vld [vmem:[#allocation3 + $0x1a0] sm:$0xff]
        %v1633 = vld [vmem:[#allocation3 + $0x1a8] sm:$0xff]
        %v1634 = vld [vmem:[#allocation3 + $0x1b0] sm:$0xff]
        %v1635 = vld [vmem:[#allocation3 + $0x1b8] sm:$0xff]
        %v1636 = vld [vmem:[#allocation3 + $0x1c0] sm:$0xff]
        %v1637 = vld [vmem:[#allocation3 + $0x1c8] sm:$0xff]
        %v1638 = vld [vmem:[#allocation3 + $0x1d0] sm:$0xff]
        %v1639 = vld [vmem:[#allocation3 + $0x1d8] sm:$0xff]
        %v1640 = vld [vmem:[#allocation3 + $0x1e0] sm:$0xff]
        %v1641 = vld [vmem:[#allocation3 + $0x1e8] sm:$0xff]
        %v1642 = vld [vmem:[#allocation3 + $0x1f0] sm:$0xff]
        %v1643 = vld [vmem:[#allocation3 + $0x1f8] sm:$0xff]
        %v1644 = vmax.f32 %v1252, %v1421
        %1645 = vmax.xlane.f32.xlu0 %v1644
        %v1646 = vpop.xlane.xlu0 %1645
        %v1647 = vmax.f32 %v1254, %v1423
        %1648 = vmax.xlane.f32.xlu0 %v1647
        %v1649 = vpop.xlane.xlu0 %1648
        %v1650 = vmax.f32 %v1257, %v1426
        %1651 = vmax.xlane.f32.xlu0 %v1650
        %v1652 = vpop.xlane.xlu0 %1651
        %v1653 = vmax.f32 %v1259, %v1428
        %1654 = vmax.xlane.f32.xlu0 %v1653
        %v1655 = vpop.xlane.xlu0 %1654
        %v1656 = vmax.f32 %v1262, %v1431
        %1657 = vmax.xlane.f32.xlu0 %v1656
        %v1658 = vpop.xlane.xlu0 %1657
        %v1659 = vmax.f32 %v1264, %v1433
        %1660 = vmax.xlane.f32.xlu0 %v1659
        %v1661 = vpop.xlane.xlu0 %1660
        %v1662 = vmax.f32 %v1267, %v1436
        %1663 = vmax.xlane.f32.xlu0 %v1662
        %v1664 = vpop.xlane.xlu0 %1663
        %v1665 = vmax.f32 %v1269, %v1438
        %1666 = vmax.xlane.f32.xlu0 %v1665
        %v1667 = vpop.xlane.xlu0 %1666
        %v1668 = vmax.f32 %v1272, %v1441
        %1669 = vmax.xlane.f32.xlu0 %v1668
        %v1670 = vpop.xlane.xlu0 %1669
        %v1671 = vmax.f32 %v1274, %v1443
        %1672 = vmax.xlane.f32.xlu0 %v1671
        %v1673 = vpop.xlane.xlu0 %1672
        %v1674 = vmax.f32 %v1277, %v1446
        %1675 = vmax.xlane.f32.xlu0 %v1674
        %v1676 = vpop.xlane.xlu0 %1675
        %v1677 = vmax.f32 %v1279, %v1448
        %1678 = vmax.xlane.f32.xlu0 %v1677
        %v1679 = vpop.xlane.xlu0 %1678
        %v1680 = vmax.f32 %v1282, %v1451
        %1681 = vmax.xlane.f32.xlu0 %v1680
        %v1682 = vpop.xlane.xlu0 %1681
        %v1683 = vmax.f32 %v1284, %v1453
        %1684 = vmax.xlane.f32.xlu0 %v1683
        %v1685 = vpop.xlane.xlu0 %1684
        %v1686 = vmax.f32 %v1287, %v1456
        %1687 = vmax.xlane.f32.xlu0 %v1686
        %v1688 = vpop.xlane.xlu0 %1687
        %v1689 = vmax.f32 %v1289, %v1458
        %1690 = vmax.xlane.f32.xlu0 %v1689
        %v1691 = vpop.xlane.xlu0 %1690
        %v1692 = vmax.f32 %v1292, %v1461
        %1693 = vmax.xlane.f32.xlu0 %v1692
        %v1694 = vpop.xlane.xlu0 %1693
        %v1695 = vmax.f32 %v1294, %v1463
        %1696 = vmax.xlane.f32.xlu0 %v1695
        %v1697 = vpop.xlane.xlu0 %1696
        %v1698 = vmax.f32 %v1297, %v1466
        %1699 = vmax.xlane.f32.xlu0 %v1698
        %v1700 = vpop.xlane.xlu0 %1699
        %v1701 = vmax.f32 %v1299, %v1468
        %1702 = vmax.xlane.f32.xlu0 %v1701
        %v1703 = vpop.xlane.xlu0 %1702
        %v1704 = vmax.f32 %v1302, %v1471
        %1705 = vmax.xlane.f32.xlu0 %v1704
        %v1706 = vpop.xlane.xlu0 %1705
        %v1707 = vmax.f32 %v1304, %v1473
        %1708 = vmax.xlane.f32.xlu0 %v1707
        %v1709 = vpop.xlane.xlu0 %1708
        %v1710 = vmax.f32 %v1307, %v1476
        %1711 = vmax.xlane.f32.xlu0 %v1710
        %v1712 = vpop.xlane.xlu0 %1711
        %v1713 = vmax.f32 %v1309, %v1478
        %1714 = vmax.xlane.f32.xlu0 %v1713
        %v1715 = vpop.xlane.xlu0 %1714
        %v1716 = vmax.f32 %v1312, %v1481
        %1717 = vmax.xlane.f32.xlu0 %v1716
        %v1718 = vpop.xlane.xlu0 %1717
        %v1719 = vmax.f32 %v1314, %v1483
        %1720 = vmax.xlane.f32.xlu0 %v1719
        %v1721 = vpop.xlane.xlu0 %1720
        %v1722 = vmax.f32 %v1317, %v1486
        %1723 = vmax.xlane.f32.xlu0 %v1722
        %v1724 = vpop.xlane.xlu0 %1723
        %v1725 = vmax.f32 %v1319, %v1488
        %1726 = vmax.xlane.f32.xlu0 %v1725
        %v1727 = vpop.xlane.xlu0 %1726
        %v1728 = vmax.f32 %v1322, %v1491
        %1729 = vmax.xlane.f32.xlu0 %v1728
        %v1730 = vpop.xlane.xlu0 %1729
        %v1731 = vmax.f32 %v1324, %v1493
        %1732 = vmax.xlane.f32.xlu0 %v1731
        %v1733 = vpop.xlane.xlu0 %1732
        %v1734 = vmax.f32 %v1327, %v1496
        %1735 = vmax.xlane.f32.xlu0 %v1734
        %v1736 = vpop.xlane.xlu0 %1735
        %v1737 = vmax.f32 %v1329, %v1498
        %1738 = vmax.xlane.f32.xlu0 %v1737
        %v1739 = vpop.xlane.xlu0 %1738
        %v1740 = vmax.f32 %v1332, %v1501
        %1741 = vmax.xlane.f32.xlu0 %v1740
        %v1742 = vpop.xlane.xlu0 %1741
        %v1743 = vmax.f32 %v1334, %v1503
        %1744 = vmax.xlane.f32.xlu0 %v1743
        %v1745 = vpop.xlane.xlu0 %1744
        %v1746 = vmax.f32 %v1337, %v1506
        %1747 = vmax.xlane.f32.xlu0 %v1746
        %v1748 = vpop.xlane.xlu0 %1747
        %v1749 = vmax.f32 %v1339, %v1508
        %1750 = vmax.xlane.f32.xlu0 %v1749
        %v1751 = vpop.xlane.xlu0 %1750
        %v1752 = vmax.f32 %v1342, %v1511
        %1753 = vmax.xlane.f32.xlu0 %v1752
        %v1754 = vpop.xlane.xlu0 %1753
        %v1755 = vmax.f32 %v1344, %v1513
        %1756 = vmax.xlane.f32.xlu0 %v1755
        %v1757 = vpop.xlane.xlu0 %1756
        %v1758 = vmax.f32 %v1347, %v1516
        %1759 = vmax.xlane.f32.xlu0 %v1758
        %v1760 = vpop.xlane.xlu0 %1759
        %v1761 = vmax.f32 %v1349, %v1518
        %1762 = vmax.xlane.f32.xlu0 %v1761
        %v1763 = vpop.xlane.xlu0 %1762
        %v1764 = vmax.f32 %v1352, %v1521
        %1765 = vmax.xlane.f32.xlu0 %v1764
        %v1766 = vpop.xlane.xlu0 %1765
        %v1767 = vmax.f32 %v1354, %v1523
        %1768 = vmax.xlane.f32.xlu0 %v1767
        %v1769 = vpop.xlane.xlu0 %1768
        %v1770 = vmax.f32 %v1357, %v1526
        %1771 = vmax.xlane.f32.xlu0 %v1770
        %v1772 = vpop.xlane.xlu0 %1771
        %v1773 = vmax.f32 %v1359, %v1528
        %1774 = vmax.xlane.f32.xlu0 %v1773
        %v1775 = vpop.xlane.xlu0 %1774
        %v1776 = vmax.f32 %v1362, %v1531
        %1777 = vmax.xlane.f32.xlu0 %v1776
        %v1778 = vpop.xlane.xlu0 %1777
        %v1779 = vmax.f32 %v1364, %v1533
        %1780 = vmax.xlane.f32.xlu0 %v1779
        %v1781 = vpop.xlane.xlu0 %1780
        %v1782 = vmax.f32 %v1367, %v1536
        %1783 = vmax.xlane.f32.xlu0 %v1782
        %v1784 = vpop.xlane.xlu0 %1783
        %v1785 = vmax.f32 %v1369, %v1538
        %1786 = vmax.xlane.f32.xlu0 %v1785
        %v1787 = vpop.xlane.xlu0 %1786
        %v1788 = vmax.f32 %v1372, %v1541
        %1789 = vmax.xlane.f32.xlu0 %v1788
        %v1790 = vpop.xlane.xlu0 %1789
        %v1791 = vmax.f32 %v1374, %v1543
        %1792 = vmax.xlane.f32.xlu0 %v1791
        %v1793 = vpop.xlane.xlu0 %1792
        %v1794 = vmax.f32 %v1377, %v1546
        %1795 = vmax.xlane.f32.xlu0 %v1794
        %v1796 = vpop.xlane.xlu0 %1795
        %v1797 = vmax.f32 %v1379, %v1548
        %1798 = vmax.xlane.f32.xlu0 %v1797
        %v1799 = vpop.xlane.xlu0 %1798
        %v1800 = vmax.f32 %v1382, %v1551
        %1801 = vmax.xlane.f32.xlu0 %v1800
        %v1802 = vpop.xlane.xlu0 %1801
        %v1803 = vmax.f32 %v1384, %v1553
        %1804 = vmax.xlane.f32.xlu0 %v1803
        %v1805 = vpop.xlane.xlu0 %1804
        %v1806 = vmax.f32 %v1387, %v1556
        %1807 = vmax.xlane.f32.xlu0 %v1806
        %v1808 = vpop.xlane.xlu0 %1807
        %v1809 = vmax.f32 %v1389, %v1558
        %1810 = vmax.xlane.f32.xlu0 %v1809
        %v1811 = vpop.xlane.xlu0 %1810
        %v1812 = vmax.f32 %v1392, %v1561
        %1813 = vmax.xlane.f32.xlu0 %v1812
        %v1814 = vpop.xlane.xlu0 %1813
        %v1815 = vmax.f32 %v1394, %v1563
        %1816 = vmax.xlane.f32.xlu0 %v1815
        %v1817 = vpop.xlane.xlu0 %1816
        %v1818 = vmax.f32 %v1397, %v1566
        %1819 = vmax.xlane.f32.xlu0 %v1818
        %v1820 = vpop.xlane.xlu0 %1819
        %v1821 = vmax.f32 %v1399, %v1568
        %1822 = vmax.xlane.f32.xlu0 %v1821
        %v1823 = vpop.xlane.xlu0 %1822
        %v1824 = vmax.f32 %v1402, %v1571
        %1825 = vmax.xlane.f32.xlu0 %v1824
        %v1826 = vpop.xlane.xlu0 %1825
        %v1827 = vmax.f32 %v1404, %v1573
        %1828 = vmax.xlane.f32.xlu0 %v1827
        %v1829 = vpop.xlane.xlu0 %1828
        %v1830 = vmax.f32 %v1407, %v1576
        %1831 = vmax.xlane.f32.xlu0 %v1830
        %v1832 = vpop.xlane.xlu0 %1831
        %v1833 = vmax.f32 %v1409, %v1578
        %1834 = vmax.xlane.f32.xlu0 %v1833
        %v1835 = vpop.xlane.xlu0 %1834
        %v1836 = vmax.f32 %v1580, %v1646
        %v1837 = vmax.f32 %v1581, %v1649
        %v1838 = vmax.f32 %v1582, %v1652
        %v1839 = vmax.f32 %v1583, %v1655
        %v1840 = vmax.f32 %v1584, %v1658
        %v1841 = vmax.f32 %v1585, %v1661
        %v1842 = vmax.f32 %v1586, %v1664
        %v1843 = vmax.f32 %v1587, %v1667
        %v1844 = vmax.f32 %v1588, %v1670
        %v1845 = vmax.f32 %v1589, %v1673
        %v1846 = vmax.f32 %v1590, %v1676
        %v1847 = vmax.f32 %v1591, %v1679
        %v1848 = vmax.f32 %v1592, %v1682
        %v1849 = vmax.f32 %v1593, %v1685
        %v1850 = vmax.f32 %v1594, %v1688
        %v1851 = vmax.f32 %v1595, %v1691
        %v1852 = vmax.f32 %v1596, %v1694
        %v1853 = vmax.f32 %v1597, %v1697
        %v1854 = vmax.f32 %v1598, %v1700
        %v1855 = vmax.f32 %v1599, %v1703
        %v1856 = vmax.f32 %v1600, %v1706
        %v1857 = vmax.f32 %v1601, %v1709
        %v1858 = vmax.f32 %v1602, %v1712
        %v1859 = vmax.f32 %v1603, %v1715
        %v1860 = vmax.f32 %v1604, %v1718
        %v1861 = vmax.f32 %v1605, %v1721
        %v1862 = vmax.f32 %v1606, %v1724
        %v1863 = vmax.f32 %v1607, %v1727
        %v1864 = vmax.f32 %v1608, %v1730
        %v1865 = vmax.f32 %v1609, %v1733
        %v1866 = vmax.f32 %v1610, %v1736
        %v1867 = vmax.f32 %v1611, %v1739
        %v1868 = vmax.f32 %v1612, %v1742
        %v1869 = vmax.f32 %v1613, %v1745
        %v1870 = vmax.f32 %v1614, %v1748
        %v1871 = vmax.f32 %v1615, %v1751
        %v1872 = vmax.f32 %v1616, %v1754
        %v1873 = vmax.f32 %v1617, %v1757
        %v1874 = vmax.f32 %v1618, %v1760
        %v1875 = vmax.f32 %v1619, %v1763
        %v1876 = vmax.f32 %v1620, %v1766
        %v1877 = vmax.f32 %v1621, %v1769
        %v1878 = vmax.f32 %v1622, %v1772
        %v1879 = vmax.f32 %v1623, %v1775
        %v1880 = vmax.f32 %v1624, %v1778
        %v1881 = vmax.f32 %v1625, %v1781
        %v1882 = vmax.f32 %v1626, %v1784
        %v1883 = vmax.f32 %v1627, %v1787
        %v1884 = vmax.f32 %v1628, %v1790
        %v1885 = vmax.f32 %v1629, %v1793
        %v1886 = vmax.f32 %v1630, %v1796
        %v1887 = vmax.f32 %v1631, %v1799
        %v1888 = vmax.f32 %v1632, %v1802
        %v1889 = vmax.f32 %v1633, %v1805
        %v1890 = vmax.f32 %v1634, %v1808
        %v1891 = vmax.f32 %v1635, %v1811
        %v1892 = vmax.f32 %v1636, %v1814
        %v1893 = vmax.f32 %v1637, %v1817
        %v1894 = vmax.f32 %v1638, %v1820
        %v1895 = vmax.f32 %v1639, %v1823
        %v1896 = vmax.f32 %v1640, %v1826
        %v1897 = vmax.f32 %v1641, %v1829
        %v1898 = vmax.f32 %v1642, %v1832
        %v1899 = vmax.f32 %v1643, %v1835
        %v1900 = vsub.f32 %v1580, %v1836
        %v1901 = vsub.f32 %v1581, %v1837
        %v1902 = vsub.f32 %v1582, %v1838
        %v1903 = vsub.f32 %v1583, %v1839
        %v1904 = vsub.f32 %v1584, %v1840
        %v1905 = vsub.f32 %v1585, %v1841
        %v1906 = vsub.f32 %v1586, %v1842
        %v1907 = vsub.f32 %v1587, %v1843
        %v1908 = vsub.f32 %v1588, %v1844
        %v1909 = vsub.f32 %v1589, %v1845
        %v1910 = vsub.f32 %v1590, %v1846
        %v1911 = vsub.f32 %v1591, %v1847
        %v1912 = vsub.f32 %v1592, %v1848
        %v1913 = vsub.f32 %v1593, %v1849
        %v1914 = vsub.f32 %v1594, %v1850
        %v1915 = vsub.f32 %v1595, %v1851
        %v1916 = vsub.f32 %v1596, %v1852
        %v1917 = vsub.f32 %v1597, %v1853
        %v1918 = vsub.f32 %v1598, %v1854
        %v1919 = vsub.f32 %v1599, %v1855
        %v1920 = vsub.f32 %v1600, %v1856
        %v1921 = vsub.f32 %v1601, %v1857
        %v1922 = vsub.f32 %v1602, %v1858
        %v1923 = vsub.f32 %v1603, %v1859
        %v1924 = vsub.f32 %v1604, %v1860
        %v1925 = vsub.f32 %v1605, %v1861
        %v1926 = vsub.f32 %v1606, %v1862
        %v1927 = vsub.f32 %v1607, %v1863
        %v1928 = vsub.f32 %v1608, %v1864
        %v1929 = vsub.f32 %v1609, %v1865
        %v1930 = vsub.f32 %v1610, %v1866
        %v1931 = vsub.f32 %v1611, %v1867
        %v1932 = vsub.f32 %v1612, %v1868
        %v1933 = vsub.f32 %v1613, %v1869
        %v1934 = vsub.f32 %v1614, %v1870
        %v1935 = vsub.f32 %v1615, %v1871
        %v1936 = vsub.f32 %v1616, %v1872
        %v1937 = vsub.f32 %v1617, %v1873
        %v1938 = vsub.f32 %v1618, %v1874
        %v1939 = vsub.f32 %v1619, %v1875
        %v1940 = vsub.f32 %v1620, %v1876
        %v1941 = vsub.f32 %v1621, %v1877
        %v1942 = vsub.f32 %v1622, %v1878
        %v1943 = vsub.f32 %v1623, %v1879
        %v1944 = vsub.f32 %v1624, %v1880
        %v1945 = vsub.f32 %v1625, %v1881
        %v1946 = vsub.f32 %v1626, %v1882
        %v1947 = vsub.f32 %v1627, %v1883
        %v1948 = vsub.f32 %v1628, %v1884
        %v1949 = vsub.f32 %v1629, %v1885
        %v1950 = vsub.f32 %v1630, %v1886
        %v1951 = vsub.f32 %v1631, %v1887
        %v1952 = vsub.f32 %v1632, %v1888
        %v1953 = vsub.f32 %v1633, %v1889
        %v1954 = vsub.f32 %v1634, %v1890
        %v1955 = vsub.f32 %v1635, %v1891
        %v1956 = vsub.f32 %v1636, %v1892
        %v1957 = vsub.f32 %v1637, %v1893
        %v1958 = vsub.f32 %v1638, %v1894
        %v1959 = vsub.f32 %v1639, %v1895
        %v1960 = vsub.f32 %v1640, %v1896
        %v1961 = vsub.f32 %v1641, %v1897
        %v1962 = vsub.f32 %v1642, %v1898
        %v1963 = vsub.f32 %v1643, %v1899
        %v1964 = vmul.f32 %v1900, 1.442695
        %v1965 = vpow.pop %v1964
        %v1966 = vmul.f32 %v1901, 1.442695
        %v1967 = vpow.pop %v1966
        %v1968 = vmul.f32 %v1902, 1.442695
        %v1969 = vpow.pop %v1968
        %v1970 = vmul.f32 %v1903, 1.442695
        %v1971 = vpow.pop %v1970
        %v1972 = vmul.f32 %v1904, 1.442695
        %v1973 = vpow.pop %v1972
        %v1974 = vmul.f32 %v1905, 1.442695
        %v1975 = vpow.pop %v1974
        %v1976 = vmul.f32 %v1906, 1.442695
        %v1977 = vpow.pop %v1976
        %v1978 = vmul.f32 %v1907, 1.442695
        %v1979 = vpow.pop %v1978
        %v1980 = vmul.f32 %v1908, 1.442695
        %v1981 = vpow.pop %v1980
        %v1982 = vmul.f32 %v1909, 1.442695
        %v1983 = vpow.pop %v1982
        %v1984 = vmul.f32 %v1910, 1.442695
        %v1985 = vpow.pop %v1984
        %v1986 = vmul.f32 %v1911, 1.442695
        %v1987 = vpow.pop %v1986
        %v1988 = vmul.f32 %v1912, 1.442695
        %v1989 = vpow.pop %v1988
        %v1990 = vmul.f32 %v1913, 1.442695
        %v1991 = vpow.pop %v1990
        %v1992 = vmul.f32 %v1914, 1.442695
        %v1993 = vpow.pop %v1992
        %v1994 = vmul.f32 %v1915, 1.442695
        %v1995 = vpow.pop %v1994
        %v1996 = vmul.f32 %v1916, 1.442695
        %v1997 = vpow.pop %v1996
        %v1998 = vmul.f32 %v1917, 1.442695
        %v1999 = vpow.pop %v1998
        %v2000 = vmul.f32 %v1918, 1.442695
        %v2001 = vpow.pop %v2000
        %v2002 = vmul.f32 %v1919, 1.442695
        %v2003 = vpow.pop %v2002
        %v2004 = vmul.f32 %v1920, 1.442695
        %v2005 = vpow.pop %v2004
        %v2006 = vmul.f32 %v1921, 1.442695
        %v2007 = vpow.pop %v2006
        %v2008 = vmul.f32 %v1922, 1.442695
        %v2009 = vpow.pop %v2008
        %v2010 = vmul.f32 %v1923, 1.442695
        %v2011 = vpow.pop %v2010
        %v2012 = vmul.f32 %v1924, 1.442695
        %v2013 = vpow.pop %v2012
        %v2014 = vmul.f32 %v1925, 1.442695
        %v2015 = vpow.pop %v2014
        %v2016 = vmul.f32 %v1926, 1.442695
        %v2017 = vpow.pop %v2016
        %v2018 = vmul.f32 %v1927, 1.442695
        %v2019 = vpow.pop %v2018
        %v2020 = vmul.f32 %v1928, 1.442695
        %v2021 = vpow.pop %v2020
        %v2022 = vmul.f32 %v1929, 1.442695
        %v2023 = vpow.pop %v2022
        %v2024 = vmul.f32 %v1930, 1.442695
        %v2025 = vpow.pop %v2024
        %v2026 = vmul.f32 %v1931, 1.442695
        %v2027 = vpow.pop %v2026
        %v2028 = vmul.f32 %v1932, 1.442695
        %v2029 = vpow.pop %v2028
        %v2030 = vmul.f32 %v1933, 1.442695
        %v2031 = vpow.pop %v2030
        %v2032 = vmul.f32 %v1934, 1.442695
        %v2033 = vpow.pop %v2032
        %v2034 = vmul.f32 %v1935, 1.442695
        %v2035 = vpow.pop %v2034
        %v2036 = vmul.f32 %v1936, 1.442695
        %v2037 = vpow.pop %v2036
        %v2038 = vmul.f32 %v1937, 1.442695
        %v2039 = vpow.pop %v2038
        %v2040 = vmul.f32 %v1938, 1.442695
        %v2041 = vpow.pop %v2040
        %v2042 = vmul.f32 %v1939, 1.442695
        %v2043 = vpow.pop %v2042
        %v2044 = vmul.f32 %v1940, 1.442695
        %v2045 = vpow.pop %v2044
        %v2046 = vmul.f32 %v1941, 1.442695
        %v2047 = vpow.pop %v2046
        %v2048 = vmul.f32 %v1942, 1.442695
        %v2049 = vpow.pop %v2048
        %v2050 = vmul.f32 %v1943, 1.442695
        %v2051 = vpow.pop %v2050
        %v2052 = vmul.f32 %v1944, 1.442695
        %v2053 = vpow.pop %v2052
        %v2054 = vmul.f32 %v1945, 1.442695
        %v2055 = vpow.pop %v2054
        %v2056 = vmul.f32 %v1946, 1.442695
        %v2057 = vpow.pop %v2056
        %v2058 = vmul.f32 %v1947, 1.442695
        %v2059 = vpow.pop %v2058
        %v2060 = vmul.f32 %v1948, 1.442695
        %v2061 = vpow.pop %v2060
        %v2062 = vmul.f32 %v1949, 1.442695
        %v2063 = vpow.pop %v2062
        %v2064 = vmul.f32 %v1950, 1.442695
        %v2065 = vpow.pop %v2064
        %v2066 = vmul.f32 %v1951, 1.442695
        %v2067 = vpow.pop %v2066
        %v2068 = vmul.f32 %v1952, 1.442695
        %v2069 = vpow.pop %v2068
        %v2070 = vmul.f32 %v1953, 1.442695
        %v2071 = vpow.pop %v2070
        %v2072 = vmul.f32 %v1954, 1.442695
        %v2073 = vpow.pop %v2072
        %v2074 = vmul.f32 %v1955, 1.442695
        %v2075 = vpow.pop %v2074
        %v2076 = vmul.f32 %v1956, 1.442695
        %v2077 = vpow.pop %v2076
        %v2078 = vmul.f32 %v1957, 1.442695
        %v2079 = vpow.pop %v2078
        %v2080 = vmul.f32 %v1958, 1.442695
        %v2081 = vpow.pop %v2080
        %v2082 = vmul.f32 %v1959, 1.442695
        %v2083 = vpow.pop %v2082
        %v2084 = vmul.f32 %v1960, 1.442695
        %v2085 = vpow.pop %v2084
        %v2086 = vmul.f32 %v1961, 1.442695
        %v2087 = vpow.pop %v2086
        %v2088 = vmul.f32 %v1962, 1.442695
        %v2089 = vpow.pop %v2088
        %v2090 = vmul.f32 %v1963, 1.442695
        %v2091 = vpow.pop %v2090
        %2093 = vset.pattern.permute.xlu0 0
        %2094 = vperm.xlu0 %2093, %v1836
        %v2095 = vpop.permute.xlu0 %2094
        %2098 = vset.pattern.permute.xlu0 0
        %2099 = vperm.xlu0 %2098, %v1837
        %v2100 = vpop.permute.xlu0 %2099
        %2103 = vset.pattern.permute.xlu0 0
        %2104 = vperm.xlu0 %2103, %v1838
        %v2105 = vpop.permute.xlu0 %2104
        %2108 = vset.pattern.permute.xlu0 0
        %2109 = vperm.xlu0 %2108, %v1839
        %v2110 = vpop.permute.xlu0 %2109
        %2113 = vset.pattern.permute.xlu0 0
        %2114 = vperm.xlu0 %2113, %v1840
        %v2115 = vpop.permute.xlu0 %2114
        %2118 = vset.pattern.permute.xlu0 0
        %2119 = vperm.xlu0 %2118, %v1841
        %v2120 = vpop.permute.xlu0 %2119
        %2123 = vset.pattern.permute.xlu0 0
        %2124 = vperm.xlu0 %2123, %v1842
        %v2125 = vpop.permute.xlu0 %2124
        %2128 = vset.pattern.permute.xlu0 0
        %2129 = vperm.xlu0 %2128, %v1843
        %v2130 = vpop.permute.xlu0 %2129
        %2133 = vset.pattern.permute.xlu0 0
        %2134 = vperm.xlu0 %2133, %v1844
        %v2135 = vpop.permute.xlu0 %2134
        %2138 = vset.pattern.permute.xlu0 0
        %2139 = vperm.xlu0 %2138, %v1845
        %v2140 = vpop.permute.xlu0 %2139
        %2143 = vset.pattern.permute.xlu0 0
        %2144 = vperm.xlu0 %2143, %v1846
        %v2145 = vpop.permute.xlu0 %2144
        %2148 = vset.pattern.permute.xlu0 0
        %2149 = vperm.xlu0 %2148, %v1847
        %v2150 = vpop.permute.xlu0 %2149
        %2153 = vset.pattern.permute.xlu0 0
        %2154 = vperm.xlu0 %2153, %v1848
        %v2155 = vpop.permute.xlu0 %2154
        %2158 = vset.pattern.permute.xlu0 0
        %2159 = vperm.xlu0 %2158, %v1849
        %v2160 = vpop.permute.xlu0 %2159
        %2163 = vset.pattern.permute.xlu0 0
        %2164 = vperm.xlu0 %2163, %v1850
        %v2165 = vpop.permute.xlu0 %2164
        %2168 = vset.pattern.permute.xlu0 0
        %2169 = vperm.xlu0 %2168, %v1851
        %v2170 = vpop.permute.xlu0 %2169
        %2173 = vset.pattern.permute.xlu0 0
        %2174 = vperm.xlu0 %2173, %v1852
        %v2175 = vpop.permute.xlu0 %2174
        %2178 = vset.pattern.permute.xlu0 0
        %2179 = vperm.xlu0 %2178, %v1853
        %v2180 = vpop.permute.xlu0 %2179
        %2183 = vset.pattern.permute.xlu0 0
        %2184 = vperm.xlu0 %2183, %v1854
        %v2185 = vpop.permute.xlu0 %2184
        %2188 = vset.pattern.permute.xlu0 0
        %2189 = vperm.xlu0 %2188, %v1855
        %v2190 = vpop.permute.xlu0 %2189
        %2193 = vset.pattern.permute.xlu0 0
        %2194 = vperm.xlu0 %2193, %v1856
        %v2195 = vpop.permute.xlu0 %2194
        %2198 = vset.pattern.permute.xlu0 0
        %2199 = vperm.xlu0 %2198, %v1857
        %v2200 = vpop.permute.xlu0 %2199
        %2203 = vset.pattern.permute.xlu0 0
        %2204 = vperm.xlu0 %2203, %v1858
        %v2205 = vpop.permute.xlu0 %2204
        %2208 = vset.pattern.permute.xlu0 0
        %2209 = vperm.xlu0 %2208, %v1859
        %v2210 = vpop.permute.xlu0 %2209
        %2213 = vset.pattern.permute.xlu0 0
        %2214 = vperm.xlu0 %2213, %v1860
        %v2215 = vpop.permute.xlu0 %2214
        %2218 = vset.pattern.permute.xlu0 0
        %2219 = vperm.xlu0 %2218, %v1861
        %v2220 = vpop.permute.xlu0 %2219
        %2223 = vset.pattern.permute.xlu0 0
        %2224 = vperm.xlu0 %2223, %v1862
        %v2225 = vpop.permute.xlu0 %2224
        %2228 = vset.pattern.permute.xlu0 0
        %2229 = vperm.xlu0 %2228, %v1863
        %v2230 = vpop.permute.xlu0 %2229
        %2233 = vset.pattern.permute.xlu0 0
        %2234 = vperm.xlu0 %2233, %v1864
        %v2235 = vpop.permute.xlu0 %2234
        %2238 = vset.pattern.permute.xlu0 0
        %2239 = vperm.xlu0 %2238, %v1865
        %v2240 = vpop.permute.xlu0 %2239
        %2243 = vset.pattern.permute.xlu0 0
        %2244 = vperm.xlu0 %2243, %v1866
        %v2245 = vpop.permute.xlu0 %2244
        %2248 = vset.pattern.permute.xlu0 0
        %2249 = vperm.xlu0 %2248, %v1867
        %v2250 = vpop.permute.xlu0 %2249
        %2253 = vset.pattern.permute.xlu0 0
        %2254 = vperm.xlu0 %2253, %v1868
        %v2255 = vpop.permute.xlu0 %2254
        %2258 = vset.pattern.permute.xlu0 0
        %2259 = vperm.xlu0 %2258, %v1869
        %v2260 = vpop.permute.xlu0 %2259
        %2263 = vset.pattern.permute.xlu0 0
        %2264 = vperm.xlu0 %2263, %v1870
        %v2265 = vpop.permute.xlu0 %2264
        %2268 = vset.pattern.permute.xlu0 0
        %2269 = vperm.xlu0 %2268, %v1871
        %v2270 = vpop.permute.xlu0 %2269
        %2273 = vset.pattern.permute.xlu0 0
        %2274 = vperm.xlu0 %2273, %v1872
        %v2275 = vpop.permute.xlu0 %2274
        %2278 = vset.pattern.permute.xlu0 0
        %2279 = vperm.xlu0 %2278, %v1873
        %v2280 = vpop.permute.xlu0 %2279
        %2283 = vset.pattern.permute.xlu0 0
        %2284 = vperm.xlu0 %2283, %v1874
        %v2285 = vpop.permute.xlu0 %2284
        %2288 = vset.pattern.permute.xlu0 0
        %2289 = vperm.xlu0 %2288, %v1875
        %v2290 = vpop.permute.xlu0 %2289
        %2293 = vset.pattern.permute.xlu0 0
        %2294 = vperm.xlu0 %2293, %v1876
        %v2295 = vpop.permute.xlu0 %2294
        %2298 = vset.pattern.permute.xlu0 0
        %2299 = vperm.xlu0 %2298, %v1877
        %v2300 = vpop.permute.xlu0 %2299
        %2303 = vset.pattern.permute.xlu0 0
        %2304 = vperm.xlu0 %2303, %v1878
        %v2305 = vpop.permute.xlu0 %2304
        %2308 = vset.pattern.permute.xlu0 0
        %2309 = vperm.xlu0 %2308, %v1879
        %v2310 = vpop.permute.xlu0 %2309
        %2313 = vset.pattern.permute.xlu0 0
        %2314 = vperm.xlu0 %2313, %v1880
        %v2315 = vpop.permute.xlu0 %2314
        %2318 = vset.pattern.permute.xlu0 0
        %2319 = vperm.xlu0 %2318, %v1881
        %v2320 = vpop.permute.xlu0 %2319
        %2323 = vset.pattern.permute.xlu0 0
        %2324 = vperm.xlu0 %2323, %v1882
        %v2325 = vpop.permute.xlu0 %2324
        %2328 = vset.pattern.permute.xlu0 0
        %2329 = vperm.xlu0 %2328, %v1883
        %v2330 = vpop.permute.xlu0 %2329
        %2333 = vset.pattern.permute.xlu0 0
        %2334 = vperm.xlu0 %2333, %v1884
        %v2335 = vpop.permute.xlu0 %2334
        %2338 = vset.pattern.permute.xlu0 0
        %2339 = vperm.xlu0 %2338, %v1885
        %v2340 = vpop.permute.xlu0 %2339
        %2343 = vset.pattern.permute.xlu0 0
        %2344 = vperm.xlu0 %2343, %v1886
        %v2345 = vpop.permute.xlu0 %2344
        %2348 = vset.pattern.permute.xlu0 0
        %2349 = vperm.xlu0 %2348, %v1887
        %v2350 = vpop.permute.xlu0 %2349
        %2353 = vset.pattern.permute.xlu0 0
        %2354 = vperm.xlu0 %2353, %v1888
        %v2355 = vpop.permute.xlu0 %2354
        %2358 = vset.pattern.permute.xlu0 0
        %2359 = vperm.xlu0 %2358, %v1889
        %v2360 = vpop.permute.xlu0 %2359
        %2363 = vset.pattern.permute.xlu0 0
        %2364 = vperm.xlu0 %2363, %v1890
        %v2365 = vpop.permute.xlu0 %2364
        %2368 = vset.pattern.permute.xlu0 0
        %2369 = vperm.xlu0 %2368, %v1891
        %v2370 = vpop.permute.xlu0 %2369
        %2373 = vset.pattern.permute.xlu0 0
        %2374 = vperm.xlu0 %2373, %v1892
        %v2375 = vpop.permute.xlu0 %2374
        %2378 = vset.pattern.permute.xlu0 0
        %2379 = vperm.xlu0 %2378, %v1893
        %v2380 = vpop.permute.xlu0 %2379
        %2383 = vset.pattern.permute.xlu0 0
        %2384 = vperm.xlu0 %2383, %v1894
        %v2385 = vpop.permute.xlu0 %2384
        %2388 = vset.pattern.permute.xlu0 0
        %2389 = vperm.xlu0 %2388, %v1895
        %v2390 = vpop.permute.xlu0 %2389
        %2393 = vset.pattern.permute.xlu0 0
        %2394 = vperm.xlu0 %2393, %v1896
        %v2395 = vpop.permute.xlu0 %2394
        %2398 = vset.pattern.permute.xlu0 0
        %2399 = vperm.xlu0 %2398, %v1897
        %v2400 = vpop.permute.xlu0 %2399
        %2403 = vset.pattern.permute.xlu0 0
        %2404 = vperm.xlu0 %2403, %v1898
        %v2405 = vpop.permute.xlu0 %2404
        %2408 = vset.pattern.permute.xlu0 0
        %2409 = vperm.xlu0 %2408, %v1899
        %v2410 = vpop.permute.xlu0 %2409
        %v2412 = vsub.f32 %v1252, %v2095
        %v2413 = vsub.f32 %v1421, %v2095
        %v2414 = vsub.f32 %v1254, %v2100
        %v2415 = vsub.f32 %v1423, %v2100
        %v2416 = vsub.f32 %v1257, %v2105
        %v2417 = vsub.f32 %v1426, %v2105
        %v2418 = vsub.f32 %v1259, %v2110
        %v2419 = vsub.f32 %v1428, %v2110
        %v2420 = vsub.f32 %v1262, %v2115
        %v2421 = vsub.f32 %v1431, %v2115
        %v2422 = vsub.f32 %v1264, %v2120
        %v2423 = vsub.f32 %v1433, %v2120
        %v2424 = vsub.f32 %v1267, %v2125
        %v2425 = vsub.f32 %v1436, %v2125
        %v2426 = vsub.f32 %v1269, %v2130
        %v2427 = vsub.f32 %v1438, %v2130
        %v2428 = vsub.f32 %v1272, %v2135
        %v2429 = vsub.f32 %v1441, %v2135
        %v2430 = vsub.f32 %v1274, %v2140
        %v2431 = vsub.f32 %v1443, %v2140
        %v2432 = vsub.f32 %v1277, %v2145
        %v2433 = vsub.f32 %v1446, %v2145
        %v2434 = vsub.f32 %v1279, %v2150
        %v2435 = vsub.f32 %v1448, %v2150
        %v2436 = vsub.f32 %v1282, %v2155
        %v2437 = vsub.f32 %v1451, %v2155
        %v2438 = vsub.f32 %v1284, %v2160
        %v2439 = vsub.f32 %v1453, %v2160
        %v2440 = vsub.f32 %v1287, %v2165
        %v2441 = vsub.f32 %v1456, %v2165
        %v2442 = vsub.f32 %v1289, %v2170
        %v2443 = vsub.f32 %v1458, %v2170
        %v2444 = vsub.f32 %v1292, %v2175
        %v2445 = vsub.f32 %v1461, %v2175
        %v2446 = vsub.f32 %v1294, %v2180
        %v2447 = vsub.f32 %v1463, %v2180
        %v2448 = vsub.f32 %v1297, %v2185
        %v2449 = vsub.f32 %v1466, %v2185
        %v2450 = vsub.f32 %v1299, %v2190
        %v2451 = vsub.f32 %v1468, %v2190
        %v2452 = vsub.f32 %v1302, %v2195
        %v2453 = vsub.f32 %v1471, %v2195
        %v2454 = vsub.f32 %v1304, %v2200
        %v2455 = vsub.f32 %v1473, %v2200
        %v2456 = vsub.f32 %v1307, %v2205
        %v2457 = vsub.f32 %v1476, %v2205
        %v2458 = vsub.f32 %v1309, %v2210
        %v2459 = vsub.f32 %v1478, %v2210
        %v2460 = vsub.f32 %v1312, %v2215
        %v2461 = vsub.f32 %v1481, %v2215
        %v2462 = vsub.f32 %v1314, %v2220
        %v2463 = vsub.f32 %v1483, %v2220
        %v2464 = vsub.f32 %v1317, %v2225
        %v2465 = vsub.f32 %v1486, %v2225
        %v2466 = vsub.f32 %v1319, %v2230
        %v2467 = vsub.f32 %v1488, %v2230
        %v2468 = vsub.f32 %v1322, %v2235
        %v2469 = vsub.f32 %v1491, %v2235
        %v2470 = vsub.f32 %v1324, %v2240
        %v2471 = vsub.f32 %v1493, %v2240
        %v2472 = vsub.f32 %v1327, %v2245
        %v2473 = vsub.f32 %v1496, %v2245
        %v2474 = vsub.f32 %v1329, %v2250
        %v2475 = vsub.f32 %v1498, %v2250
        %v2476 = vsub.f32 %v1332, %v2255
        %v2477 = vsub.f32 %v1501, %v2255
        %v2478 = vsub.f32 %v1334, %v2260
        %v2479 = vsub.f32 %v1503, %v2260
        %v2480 = vsub.f32 %v1337, %v2265
        %v2481 = vsub.f32 %v1506, %v2265
        %v2482 = vsub.f32 %v1339, %v2270
        %v2483 = vsub.f32 %v1508, %v2270
        %v2484 = vsub.f32 %v1342, %v2275
        %v2485 = vsub.f32 %v1511, %v2275
        %v2486 = vsub.f32 %v1344, %v2280
        %v2487 = vsub.f32 %v1513, %v2280
        %v2488 = vsub.f32 %v1347, %v2285
        %v2489 = vsub.f32 %v1516, %v2285
        %v2490 = vsub.f32 %v1349, %v2290
        %v2491 = vsub.f32 %v1518, %v2290
        %v2492 = vsub.f32 %v1352, %v2295
        %v2493 = vsub.f32 %v1521, %v2295
        %v2494 = vsub.f32 %v1354, %v2300
        %v2495 = vsub.f32 %v1523, %v2300
        %v2496 = vsub.f32 %v1357, %v2305
        %v2497 = vsub.f32 %v1526, %v2305
        %v2498 = vsub.f32 %v1359, %v2310
        %v2499 = vsub.f32 %v1528, %v2310
        %v2500 = vsub.f32 %v1362, %v2315
        %v2501 = vsub.f32 %v1531, %v2315
        %v2502 = vsub.f32 %v1364, %v2320
        %v2503 = vsub.f32 %v1533, %v2320
        %v2504 = vsub.f32 %v1367, %v2325
        %v2505 = vsub.f32 %v1536, %v2325
        %v2506 = vsub.f32 %v1369, %v2330
        %v2507 = vsub.f32 %v1538, %v2330
        %v2508 = vsub.f32 %v1372, %v2335
        %v2509 = vsub.f32 %v1541, %v2335
        %v2510 = vsub.f32 %v1374, %v2340
        %v2511 = vsub.f32 %v1543, %v2340
        %v2512 = vsub.f32 %v1377, %v2345
        %v2513 = vsub.f32 %v1546, %v2345
        %v2514 = vsub.f32 %v1379, %v2350
        %v2515 = vsub.f32 %v1548, %v2350
        %v2516 = vsub.f32 %v1382, %v2355
        %v2517 = vsub.f32 %v1551, %v2355
        %v2518 = vsub.f32 %v1384, %v2360
        %v2519 = vsub.f32 %v1553, %v2360
        %v2520 = vsub.f32 %v1387, %v2365
        %v2521 = vsub.f32 %v1556, %v2365
        %v2522 = vsub.f32 %v1389, %v2370
        %v2523 = vsub.f32 %v1558, %v2370
        %v2524 = vsub.f32 %v1392, %v2375
        %v2525 = vsub.f32 %v1561, %v2375
        %v2526 = vsub.f32 %v1394, %v2380
        %v2527 = vsub.f32 %v1563, %v2380
        %v2528 = vsub.f32 %v1397, %v2385
        %v2529 = vsub.f32 %v1566, %v2385
        %v2530 = vsub.f32 %v1399, %v2390
        %v2531 = vsub.f32 %v1568, %v2390
        %v2532 = vsub.f32 %v1402, %v2395
        %v2533 = vsub.f32 %v1571, %v2395
        %v2534 = vsub.f32 %v1404, %v2400
        %v2535 = vsub.f32 %v1573, %v2400
        %v2536 = vsub.f32 %v1407, %v2405
        %v2537 = vsub.f32 %v1576, %v2405
        %v2538 = vsub.f32 %v1409, %v2410
        %v2539 = vsub.f32 %v1578, %v2410
        %v2540 = vmul.f32 %v2412, 1.442695
        %v2541 = vpow.pop %v2540
        %v2542 = vmul.f32 %v2413, 1.442695
        %v2543 = vpow.pop %v2542
        %v2544 = vmul.f32 %v2414, 1.442695
        %v2545 = vpow.pop %v2544
        %v2546 = vmul.f32 %v2415, 1.442695
        %v2547 = vpow.pop %v2546
        %v2548 = vmul.f32 %v2416, 1.442695
        %v2549 = vpow.pop %v2548
        %v2550 = vmul.f32 %v2417, 1.442695
        %v2551 = vpow.pop %v2550
        %v2552 = vmul.f32 %v2418, 1.442695
        %v2553 = vpow.pop %v2552
        %v2554 = vmul.f32 %v2419, 1.442695
        %v2555 = vpow.pop %v2554
        %v2556 = vmul.f32 %v2420, 1.442695
        %v2557 = vpow.pop %v2556
        %v2558 = vmul.f32 %v2421, 1.442695
        %v2559 = vpow.pop %v2558
        %v2560 = vmul.f32 %v2422, 1.442695
        %v2561 = vpow.pop %v2560
        %v2562 = vmul.f32 %v2423, 1.442695
        %v2563 = vpow.pop %v2562
        %v2564 = vmul.f32 %v2424, 1.442695
        %v2565 = vpow.pop %v2564
        %v2566 = vmul.f32 %v2425, 1.442695
        %v2567 = vpow.pop %v2566
        %v2568 = vmul.f32 %v2426, 1.442695
        %v2569 = vpow.pop %v2568
        %v2570 = vmul.f32 %v2427, 1.442695
        %v2571 = vpow.pop %v2570
        %v2572 = vmul.f32 %v2428, 1.442695
        %v2573 = vpow.pop %v2572
        %v2574 = vmul.f32 %v2429, 1.442695
        %v2575 = vpow.pop %v2574
        %v2576 = vmul.f32 %v2430, 1.442695
        %v2577 = vpow.pop %v2576
        %v2578 = vmul.f32 %v2431, 1.442695
        %v2579 = vpow.pop %v2578
        %v2580 = vmul.f32 %v2432, 1.442695
        %v2581 = vpow.pop %v2580
        %v2582 = vmul.f32 %v2433, 1.442695
        %v2583 = vpow.pop %v2582
        %v2584 = vmul.f32 %v2434, 1.442695
        %v2585 = vpow.pop %v2584
        %v2586 = vmul.f32 %v2435, 1.442695
        %v2587 = vpow.pop %v2586
        %v2588 = vmul.f32 %v2436, 1.442695
        %v2589 = vpow.pop %v2588
        %v2590 = vmul.f32 %v2437, 1.442695
        %v2591 = vpow.pop %v2590
        %v2592 = vmul.f32 %v2438, 1.442695
        %v2593 = vpow.pop %v2592
        %v2594 = vmul.f32 %v2439, 1.442695
        %v2595 = vpow.pop %v2594
        %v2596 = vmul.f32 %v2440, 1.442695
        %v2597 = vpow.pop %v2596
        %v2598 = vmul.f32 %v2441, 1.442695
        %v2599 = vpow.pop %v2598
        %v2600 = vmul.f32 %v2442, 1.442695
        %v2601 = vpow.pop %v2600
        %v2602 = vmul.f32 %v2443, 1.442695
        %v2603 = vpow.pop %v2602
        %v2604 = vmul.f32 %v2444, 1.442695
        %v2605 = vpow.pop %v2604
        %v2606 = vmul.f32 %v2445, 1.442695
        %v2607 = vpow.pop %v2606
        %v2608 = vmul.f32 %v2446, 1.442695
        %v2609 = vpow.pop %v2608
        %v2610 = vmul.f32 %v2447, 1.442695
        %v2611 = vpow.pop %v2610
        %v2612 = vmul.f32 %v2448, 1.442695
        %v2613 = vpow.pop %v2612
        %v2614 = vmul.f32 %v2449, 1.442695
        %v2615 = vpow.pop %v2614
        %v2616 = vmul.f32 %v2450, 1.442695
        %v2617 = vpow.pop %v2616
        %v2618 = vmul.f32 %v2451, 1.442695
        %v2619 = vpow.pop %v2618
        %v2620 = vmul.f32 %v2452, 1.442695
        %v2621 = vpow.pop %v2620
        %v2622 = vmul.f32 %v2453, 1.442695
        %v2623 = vpow.pop %v2622
        %v2624 = vmul.f32 %v2454, 1.442695
        %v2625 = vpow.pop %v2624
        %v2626 = vmul.f32 %v2455, 1.442695
        %v2627 = vpow.pop %v2626
        %v2628 = vmul.f32 %v2456, 1.442695
        %v2629 = vpow.pop %v2628
        %v2630 = vmul.f32 %v2457, 1.442695
        %v2631 = vpow.pop %v2630
        %v2632 = vmul.f32 %v2458, 1.442695
        %v2633 = vpow.pop %v2632
        %v2634 = vmul.f32 %v2459, 1.442695
        %v2635 = vpow.pop %v2634
        %v2636 = vmul.f32 %v2460, 1.442695
        %v2637 = vpow.pop %v2636
        %v2638 = vmul.f32 %v2461, 1.442695
        %v2639 = vpow.pop %v2638
        %v2640 = vmul.f32 %v2462, 1.442695
        %v2641 = vpow.pop %v2640
        %v2642 = vmul.f32 %v2463, 1.442695
        %v2643 = vpow.pop %v2642
        %v2644 = vmul.f32 %v2464, 1.442695
        %v2645 = vpow.pop %v2644
        %v2646 = vmul.f32 %v2465, 1.442695
        %v2647 = vpow.pop %v2646
        %v2648 = vmul.f32 %v2466, 1.442695
        %v2649 = vpow.pop %v2648
        %v2650 = vmul.f32 %v2467, 1.442695
        %v2651 = vpow.pop %v2650
        %v2652 = vmul.f32 %v2468, 1.442695
        %v2653 = vpow.pop %v2652
        %v2654 = vmul.f32 %v2469, 1.442695
        %v2655 = vpow.pop %v2654
        %v2656 = vmul.f32 %v2470, 1.442695
        %v2657 = vpow.pop %v2656
        %v2658 = vmul.f32 %v2471, 1.442695
        %v2659 = vpow.pop %v2658
        %v2660 = vmul.f32 %v2472, 1.442695
        %v2661 = vpow.pop %v2660
        %v2662 = vmul.f32 %v2473, 1.442695
        %v2663 = vpow.pop %v2662
        %v2664 = vmul.f32 %v2474, 1.442695
        %v2665 = vpow.pop %v2664
        %v2666 = vmul.f32 %v2475, 1.442695
        %v2667 = vpow.pop %v2666
        %v2668 = vmul.f32 %v2476, 1.442695
        %v2669 = vpow.pop %v2668
        %v2670 = vmul.f32 %v2477, 1.442695
        %v2671 = vpow.pop %v2670
        %v2672 = vmul.f32 %v2478, 1.442695
        %v2673 = vpow.pop %v2672
        %v2674 = vmul.f32 %v2479, 1.442695
        %v2675 = vpow.pop %v2674
        %v2676 = vmul.f32 %v2480, 1.442695
        %v2677 = vpow.pop %v2676
        %v2678 = vmul.f32 %v2481, 1.442695
        %v2679 = vpow.pop %v2678
        %v2680 = vmul.f32 %v2482, 1.442695
        %v2681 = vpow.pop %v2680
        %v2682 = vmul.f32 %v2483, 1.442695
        %v2683 = vpow.pop %v2682
        %v2684 = vmul.f32 %v2484, 1.442695
        %v2685 = vpow.pop %v2684
        %v2686 = vmul.f32 %v2485, 1.442695
        %v2687 = vpow.pop %v2686
        %v2688 = vmul.f32 %v2486, 1.442695
        %v2689 = vpow.pop %v2688
        %v2690 = vmul.f32 %v2487, 1.442695
        %v2691 = vpow.pop %v2690
        %v2692 = vmul.f32 %v2488, 1.442695
        %v2693 = vpow.pop %v2692
        %v2694 = vmul.f32 %v2489, 1.442695
        %v2695 = vpow.pop %v2694
        %v2696 = vmul.f32 %v2490, 1.442695
        %v2697 = vpow.pop %v2696
        %v2698 = vmul.f32 %v2491, 1.442695
        %v2699 = vpow.pop %v2698
        %v2700 = vmul.f32 %v2492, 1.442695
        %v2701 = vpow.pop %v2700
        %v2702 = vmul.f32 %v2493, 1.442695
        %v2703 = vpow.pop %v2702
        %v2704 = vmul.f32 %v2494, 1.442695
        %v2705 = vpow.pop %v2704
        %v2706 = vmul.f32 %v2495, 1.442695
        %v2707 = vpow.pop %v2706
        %v2708 = vmul.f32 %v2496, 1.442695
        %v2709 = vpow.pop %v2708
        %v2710 = vmul.f32 %v2497, 1.442695
        %v2711 = vpow.pop %v2710
        %v2712 = vmul.f32 %v2498, 1.442695
        %v2713 = vpow.pop %v2712
        %v2714 = vmul.f32 %v2499, 1.442695
        %v2715 = vpow.pop %v2714
        %v2716 = vmul.f32 %v2500, 1.442695
        %v2717 = vpow.pop %v2716
        %v2718 = vmul.f32 %v2501, 1.442695
        %v2719 = vpow.pop %v2718
        %v2720 = vmul.f32 %v2502, 1.442695
        %v2721 = vpow.pop %v2720
        %v2722 = vmul.f32 %v2503, 1.442695
        %v2723 = vpow.pop %v2722
        %v2724 = vmul.f32 %v2504, 1.442695
        %v2725 = vpow.pop %v2724
        %v2726 = vmul.f32 %v2505, 1.442695
        %v2727 = vpow.pop %v2726
        %v2728 = vmul.f32 %v2506, 1.442695
        %v2729 = vpow.pop %v2728
        %v2730 = vmul.f32 %v2507, 1.442695
        %v2731 = vpow.pop %v2730
        %v2732 = vmul.f32 %v2508, 1.442695
        %v2733 = vpow.pop %v2732
        %v2734 = vmul.f32 %v2509, 1.442695
        %v2735 = vpow.pop %v2734
        %v2736 = vmul.f32 %v2510, 1.442695
        %v2737 = vpow.pop %v2736
        %v2738 = vmul.f32 %v2511, 1.442695
        %v2739 = vpow.pop %v2738
        %v2740 = vmul.f32 %v2512, 1.442695
        %v2741 = vpow.pop %v2740
        %v2742 = vmul.f32 %v2513, 1.442695
        %v2743 = vpow.pop %v2742
        %v2744 = vmul.f32 %v2514, 1.442695
        %v2745 = vpow.pop %v2744
        %v2746 = vmul.f32 %v2515, 1.442695
        %v2747 = vpow.pop %v2746
        %v2748 = vmul.f32 %v2516, 1.442695
        %v2749 = vpow.pop %v2748
        %v2750 = vmul.f32 %v2517, 1.442695
        %v2751 = vpow.pop %v2750
        %v2752 = vmul.f32 %v2518, 1.442695
        %v2753 = vpow.pop %v2752
        %v2754 = vmul.f32 %v2519, 1.442695
        %v2755 = vpow.pop %v2754
        %v2756 = vmul.f32 %v2520, 1.442695
        %v2757 = vpow.pop %v2756
        %v2758 = vmul.f32 %v2521, 1.442695
        %v2759 = vpow.pop %v2758
        %v2760 = vmul.f32 %v2522, 1.442695
        %v2761 = vpow.pop %v2760
        %v2762 = vmul.f32 %v2523, 1.442695
        %v2763 = vpow.pop %v2762
        %v2764 = vmul.f32 %v2524, 1.442695
        %v2765 = vpow.pop %v2764
        %v2766 = vmul.f32 %v2525, 1.442695
        %v2767 = vpow.pop %v2766
        %v2768 = vmul.f32 %v2526, 1.442695
        %v2769 = vpow.pop %v2768
        %v2770 = vmul.f32 %v2527, 1.442695
        %v2771 = vpow.pop %v2770
        %v2772 = vmul.f32 %v2528, 1.442695
        %v2773 = vpow.pop %v2772
        %v2774 = vmul.f32 %v2529, 1.442695
        %v2775 = vpow.pop %v2774
        %v2776 = vmul.f32 %v2530, 1.442695
        %v2777 = vpow.pop %v2776
        %v2778 = vmul.f32 %v2531, 1.442695
        %v2779 = vpow.pop %v2778
        %v2780 = vmul.f32 %v2532, 1.442695
        %v2781 = vpow.pop %v2780
        %v2782 = vmul.f32 %v2533, 1.442695
        %v2783 = vpow.pop %v2782
        %v2784 = vmul.f32 %v2534, 1.442695
        %v2785 = vpow.pop %v2784
        %v2786 = vmul.f32 %v2535, 1.442695
        %v2787 = vpow.pop %v2786
        %v2788 = vmul.f32 %v2536, 1.442695
        %v2789 = vpow.pop %v2788
        %v2790 = vmul.f32 %v2537, 1.442695
        %v2791 = vpow.pop %v2790
        %v2792 = vmul.f32 %v2538, 1.442695
        %v2793 = vpow.pop %v2792
        %v2794 = vmul.f32 %v2539, 1.442695
        %v2795 = vpow.pop %v2794
        %v2796 = vld [vmem:[#allocation4] sm:$0xff]
        %v2797 = vld [vmem:[#allocation4 + $0x8] sm:$0xff]
        %v2798 = vld [vmem:[#allocation4 + $0x10] sm:$0xff]
        %v2799 = vld [vmem:[#allocation4 + $0x18] sm:$0xff]
        %v2800 = vld [vmem:[#allocation4 + $0x20] sm:$0xff]
        %v2801 = vld [vmem:[#allocation4 + $0x28] sm:$0xff]
        %v2802 = vld [vmem:[#allocation4 + $0x30] sm:$0xff]
        %v2803 = vld [vmem:[#allocation4 + $0x38] sm:$0xff]
        %v2804 = vld [vmem:[#allocation4 + $0x40] sm:$0xff]
        %v2805 = vld [vmem:[#allocation4 + $0x48] sm:$0xff]
        %v2806 = vld [vmem:[#allocation4 + $0x50] sm:$0xff]
        %v2807 = vld [vmem:[#allocation4 + $0x58] sm:$0xff]
        %v2808 = vld [vmem:[#allocation4 + $0x60] sm:$0xff]
        %v2809 = vld [vmem:[#allocation4 + $0x68] sm:$0xff]
        %v2810 = vld [vmem:[#allocation4 + $0x70] sm:$0xff]
        %v2811 = vld [vmem:[#allocation4 + $0x78] sm:$0xff]
        %v2812 = vld [vmem:[#allocation4 + $0x80] sm:$0xff]
        %v2813 = vld [vmem:[#allocation4 + $0x88] sm:$0xff]
        %v2814 = vld [vmem:[#allocation4 + $0x90] sm:$0xff]
        %v2815 = vld [vmem:[#allocation4 + $0x98] sm:$0xff]
        %v2816 = vld [vmem:[#allocation4 + $0xa0] sm:$0xff]
        %v2817 = vld [vmem:[#allocation4 + $0xa8] sm:$0xff]
        %v2818 = vld [vmem:[#allocation4 + $0xb0] sm:$0xff]
        %v2819 = vld [vmem:[#allocation4 + $0xb8] sm:$0xff]
        %v2820 = vld [vmem:[#allocation4 + $0xc0] sm:$0xff]
        %v2821 = vld [vmem:[#allocation4 + $0xc8] sm:$0xff]
        %v2822 = vld [vmem:[#allocation4 + $0xd0] sm:$0xff]
        %v2823 = vld [vmem:[#allocation4 + $0xd8] sm:$0xff]
        %v2824 = vld [vmem:[#allocation4 + $0xe0] sm:$0xff]
        %v2825 = vld [vmem:[#allocation4 + $0xe8] sm:$0xff]
        %v2826 = vld [vmem:[#allocation4 + $0xf0] sm:$0xff]
        %v2827 = vld [vmem:[#allocation4 + $0xf8] sm:$0xff]
        %v2828 = vld [vmem:[#allocation4 + $0x100] sm:$0xff]
        %v2829 = vld [vmem:[#allocation4 + $0x108] sm:$0xff]
        %v2830 = vld [vmem:[#allocation4 + $0x110] sm:$0xff]
        %v2831 = vld [vmem:[#allocation4 + $0x118] sm:$0xff]
        %v2832 = vld [vmem:[#allocation4 + $0x120] sm:$0xff]
        %v2833 = vld [vmem:[#allocation4 + $0x128] sm:$0xff]
        %v2834 = vld [vmem:[#allocation4 + $0x130] sm:$0xff]
        %v2835 = vld [vmem:[#allocation4 + $0x138] sm:$0xff]
        %v2836 = vld [vmem:[#allocation4 + $0x140] sm:$0xff]
        %v2837 = vld [vmem:[#allocation4 + $0x148] sm:$0xff]
        %v2838 = vld [vmem:[#allocation4 + $0x150] sm:$0xff]
        %v2839 = vld [vmem:[#allocation4 + $0x158] sm:$0xff]
        %v2840 = vld [vmem:[#allocation4 + $0x160] sm:$0xff]
        %v2841 = vld [vmem:[#allocation4 + $0x168] sm:$0xff]
        %v2842 = vld [vmem:[#allocation4 + $0x170] sm:$0xff]
        %v2843 = vld [vmem:[#allocation4 + $0x178] sm:$0xff]
        %v2844 = vld [vmem:[#allocation4 + $0x180] sm:$0xff]
        %v2845 = vld [vmem:[#allocation4 + $0x188] sm:$0xff]
        %v2846 = vld [vmem:[#allocation4 + $0x190] sm:$0xff]
        %v2847 = vld [vmem:[#allocation4 + $0x198] sm:$0xff]
        %v2848 = vld [vmem:[#allocation4 + $0x1a0] sm:$0xff]
        %v2849 = vld [vmem:[#allocation4 + $0x1a8] sm:$0xff]
        %v2850 = vld [vmem:[#allocation4 + $0x1b0] sm:$0xff]
        %v2851 = vld [vmem:[#allocation4 + $0x1b8] sm:$0xff]
        %v2852 = vld [vmem:[#allocation4 + $0x1c0] sm:$0xff]
        %v2853 = vld [vmem:[#allocation4 + $0x1c8] sm:$0xff]
        %v2854 = vld [vmem:[#allocation4 + $0x1d0] sm:$0xff]
        %v2855 = vld [vmem:[#allocation4 + $0x1d8] sm:$0xff]
        %v2856 = vld [vmem:[#allocation4 + $0x1e0] sm:$0xff]
        %v2857 = vld [vmem:[#allocation4 + $0x1e8] sm:$0xff]
        %v2858 = vld [vmem:[#allocation4 + $0x1f0] sm:$0xff]
        %v2859 = vld [vmem:[#allocation4 + $0x1f8] sm:$0xff]
        %v2860 = vmul.f32 %v1965, %v2796
        %v2861 = vmul.f32 %v1967, %v2797
        %v2862 = vmul.f32 %v1969, %v2798
        %v2863 = vmul.f32 %v1971, %v2799
        %v2864 = vmul.f32 %v1973, %v2800
        %v2865 = vmul.f32 %v1975, %v2801
        %v2866 = vmul.f32 %v1977, %v2802
        %v2867 = vmul.f32 %v1979, %v2803
        %v2868 = vmul.f32 %v1981, %v2804
        %v2869 = vmul.f32 %v1983, %v2805
        %v2870 = vmul.f32 %v1985, %v2806
        %v2871 = vmul.f32 %v1987, %v2807
        %v2872 = vmul.f32 %v1989, %v2808
        %v2873 = vmul.f32 %v1991, %v2809
        %v2874 = vmul.f32 %v1993, %v2810
        %v2875 = vmul.f32 %v1995, %v2811
        %v2876 = vmul.f32 %v1997, %v2812
        %v2877 = vmul.f32 %v1999, %v2813
        %v2878 = vmul.f32 %v2001, %v2814
        %v2879 = vmul.f32 %v2003, %v2815
        %v2880 = vmul.f32 %v2005, %v2816
        %v2881 = vmul.f32 %v2007, %v2817
        %v2882 = vmul.f32 %v2009, %v2818
        %v2883 = vmul.f32 %v2011, %v2819
        %v2884 = vmul.f32 %v2013, %v2820
        %v2885 = vmul.f32 %v2015, %v2821
        %v2886 = vmul.f32 %v2017, %v2822
        %v2887 = vmul.f32 %v2019, %v2823
        %v2888 = vmul.f32 %v2021, %v2824
        %v2889 = vmul.f32 %v2023, %v2825
        %v2890 = vmul.f32 %v2025, %v2826
        %v2891 = vmul.f32 %v2027, %v2827
        %v2892 = vmul.f32 %v2029, %v2828
        %v2893 = vmul.f32 %v2031, %v2829
        %v2894 = vmul.f32 %v2033, %v2830
        %v2895 = vmul.f32 %v2035, %v2831
        %v2896 = vmul.f32 %v2037, %v2832
        %v2897 = vmul.f32 %v2039, %v2833
        %v2898 = vmul.f32 %v2041, %v2834
        %v2899 = vmul.f32 %v2043, %v2835
        %v2900 = vmul.f32 %v2045, %v2836
        %v2901 = vmul.f32 %v2047, %v2837
        %v2902 = vmul.f32 %v2049, %v2838
        %v2903 = vmul.f32 %v2051, %v2839
        %v2904 = vmul.f32 %v2053, %v2840
        %v2905 = vmul.f32 %v2055, %v2841
        %v2906 = vmul.f32 %v2057, %v2842
        %v2907 = vmul.f32 %v2059, %v2843
        %v2908 = vmul.f32 %v2061, %v2844
        %v2909 = vmul.f32 %v2063, %v2845
        %v2910 = vmul.f32 %v2065, %v2846
        %v2911 = vmul.f32 %v2067, %v2847
        %v2912 = vmul.f32 %v2069, %v2848
        %v2913 = vmul.f32 %v2071, %v2849
        %v2914 = vmul.f32 %v2073, %v2850
        %v2915 = vmul.f32 %v2075, %v2851
        %v2916 = vmul.f32 %v2077, %v2852
        %v2917 = vmul.f32 %v2079, %v2853
        %v2918 = vmul.f32 %v2081, %v2854
        %v2919 = vmul.f32 %v2083, %v2855
        %v2920 = vmul.f32 %v2085, %v2856
        %v2921 = vmul.f32 %v2087, %v2857
        %v2922 = vmul.f32 %v2089, %v2858
        %v2923 = vmul.f32 %v2091, %v2859
        %v2924 = vadd.f32 %v2541, %v2543
        %2925 = vadd.xlane.f32.xlu0 %v2924
        %v2926 = vpop.xlane.xlu0 %2925
        %v2927 = vadd.f32 %v2545, %v2547
        %2928 = vadd.xlane.f32.xlu0 %v2927
        %v2929 = vpop.xlane.xlu0 %2928
        %v2930 = vadd.f32 %v2549, %v2551
        %2931 = vadd.xlane.f32.xlu0 %v2930
        %v2932 = vpop.xlane.xlu0 %2931
        %v2933 = vadd.f32 %v2553, %v2555
        %2934 = vadd.xlane.f32.xlu0 %v2933
        %v2935 = vpop.xlane.xlu0 %2934
        %v2936 = vadd.f32 %v2557, %v2559
        %2937 = vadd.xlane.f32.xlu0 %v2936
        %v2938 = vpop.xlane.xlu0 %2937
        %v2939 = vadd.f32 %v2561, %v2563
        %2940 = vadd.xlane.f32.xlu0 %v2939
        %v2941 = vpop.xlane.xlu0 %2940
        %v2942 = vadd.f32 %v2565, %v2567
        %2943 = vadd.xlane.f32.xlu0 %v2942
        %v2944 = vpop.xlane.xlu0 %2943
        %v2945 = vadd.f32 %v2569, %v2571
        %2946 = vadd.xlane.f32.xlu0 %v2945
        %v2947 = vpop.xlane.xlu0 %2946
        %v2948 = vadd.f32 %v2573, %v2575
        %2949 = vadd.xlane.f32.xlu0 %v2948
        %v2950 = vpop.xlane.xlu0 %2949
        %v2951 = vadd.f32 %v2577, %v2579
        %2952 = vadd.xlane.f32.xlu0 %v2951
        %v2953 = vpop.xlane.xlu0 %2952
        %v2954 = vadd.f32 %v2581, %v2583
        %2955 = vadd.xlane.f32.xlu0 %v2954
        %v2956 = vpop.xlane.xlu0 %2955
        %v2957 = vadd.f32 %v2585, %v2587
        %2958 = vadd.xlane.f32.xlu0 %v2957
        %v2959 = vpop.xlane.xlu0 %2958
        %v2960 = vadd.f32 %v2589, %v2591
        %2961 = vadd.xlane.f32.xlu0 %v2960
        %v2962 = vpop.xlane.xlu0 %2961
        %v2963 = vadd.f32 %v2593, %v2595
        %2964 = vadd.xlane.f32.xlu0 %v2963
        %v2965 = vpop.xlane.xlu0 %2964
        %v2966 = vadd.f32 %v2597, %v2599
        %2967 = vadd.xlane.f32.xlu0 %v2966
        %v2968 = vpop.xlane.xlu0 %2967
        %v2969 = vadd.f32 %v2601, %v2603
        %2970 = vadd.xlane.f32.xlu0 %v2969
        %v2971 = vpop.xlane.xlu0 %2970
        %v2972 = vadd.f32 %v2605, %v2607
        %2973 = vadd.xlane.f32.xlu0 %v2972
        %v2974 = vpop.xlane.xlu0 %2973
        %v2975 = vadd.f32 %v2609, %v2611
        %2976 = vadd.xlane.f32.xlu0 %v2975
        %v2977 = vpop.xlane.xlu0 %2976
        %v2978 = vadd.f32 %v2613, %v2615
        %2979 = vadd.xlane.f32.xlu0 %v2978
        %v2980 = vpop.xlane.xlu0 %2979
        %v2981 = vadd.f32 %v2617, %v2619
        %2982 = vadd.xlane.f32.xlu0 %v2981
        %v2983 = vpop.xlane.xlu0 %2982
        %v2984 = vadd.f32 %v2621, %v2623
        %2985 = vadd.xlane.f32.xlu0 %v2984
        %v2986 = vpop.xlane.xlu0 %2985
        %v2987 = vadd.f32 %v2625, %v2627
        %2988 = vadd.xlane.f32.xlu0 %v2987
        %v2989 = vpop.xlane.xlu0 %2988
        %v2990 = vadd.f32 %v2629, %v2631
        %2991 = vadd.xlane.f32.xlu0 %v2990
        %v2992 = vpop.xlane.xlu0 %2991
        %v2993 = vadd.f32 %v2633, %v2635
        %2994 = vadd.xlane.f32.xlu0 %v2993
        %v2995 = vpop.xlane.xlu0 %2994
        %v2996 = vadd.f32 %v2637, %v2639
        %2997 = vadd.xlane.f32.xlu0 %v2996
        %v2998 = vpop.xlane.xlu0 %2997
        %v2999 = vadd.f32 %v2641, %v2643
        %3000 = vadd.xlane.f32.xlu0 %v2999
        %v3001 = vpop.xlane.xlu0 %3000
        %v3002 = vadd.f32 %v2645, %v2647
        %3003 = vadd.xlane.f32.xlu0 %v3002
        %v3004 = vpop.xlane.xlu0 %3003
        %v3005 = vadd.f32 %v2649, %v2651
        %3006 = vadd.xlane.f32.xlu0 %v3005
        %v3007 = vpop.xlane.xlu0 %3006
        %v3008 = vadd.f32 %v2653, %v2655
        %3009 = vadd.xlane.f32.xlu0 %v3008
        %v3010 = vpop.xlane.xlu0 %3009
        %v3011 = vadd.f32 %v2657, %v2659
        %3012 = vadd.xlane.f32.xlu0 %v3011
        %v3013 = vpop.xlane.xlu0 %3012
        %v3014 = vadd.f32 %v2661, %v2663
        %3015 = vadd.xlane.f32.xlu0 %v3014
        %v3016 = vpop.xlane.xlu0 %3015
        %v3017 = vadd.f32 %v2665, %v2667
        %3018 = vadd.xlane.f32.xlu0 %v3017
        %v3019 = vpop.xlane.xlu0 %3018
        %v3020 = vadd.f32 %v2669, %v2671
        %3021 = vadd.xlane.f32.xlu0 %v3020
        %v3022 = vpop.xlane.xlu0 %3021
        %v3023 = vadd.f32 %v2673, %v2675
        %3024 = vadd.xlane.f32.xlu0 %v3023
        %v3025 = vpop.xlane.xlu0 %3024
        %v3026 = vadd.f32 %v2677, %v2679
        %3027 = vadd.xlane.f32.xlu0 %v3026
        %v3028 = vpop.xlane.xlu0 %3027
        %v3029 = vadd.f32 %v2681, %v2683
        %3030 = vadd.xlane.f32.xlu0 %v3029
        %v3031 = vpop.xlane.xlu0 %3030
        %v3032 = vadd.f32 %v2685, %v2687
        %3033 = vadd.xlane.f32.xlu0 %v3032
        %v3034 = vpop.xlane.xlu0 %3033
        %v3035 = vadd.f32 %v2689, %v2691
        %3036 = vadd.xlane.f32.xlu0 %v3035
        %v3037 = vpop.xlane.xlu0 %3036
        %v3038 = vadd.f32 %v2693, %v2695
        %3039 = vadd.xlane.f32.xlu0 %v3038
        %v3040 = vpop.xlane.xlu0 %3039
        %v3041 = vadd.f32 %v2697, %v2699
        %3042 = vadd.xlane.f32.xlu0 %v3041
        %v3043 = vpop.xlane.xlu0 %3042
        %v3044 = vadd.f32 %v2701, %v2703
        %3045 = vadd.xlane.f32.xlu0 %v3044
        %v3046 = vpop.xlane.xlu0 %3045
        %v3047 = vadd.f32 %v2705, %v2707
        %3048 = vadd.xlane.f32.xlu0 %v3047
        %v3049 = vpop.xlane.xlu0 %3048
        %v3050 = vadd.f32 %v2709, %v2711
        %3051 = vadd.xlane.f32.xlu0 %v3050
        %v3052 = vpop.xlane.xlu0 %3051
        %v3053 = vadd.f32 %v2713, %v2715
        %3054 = vadd.xlane.f32.xlu0 %v3053
        %v3055 = vpop.xlane.xlu0 %3054
        %v3056 = vadd.f32 %v2717, %v2719
        %3057 = vadd.xlane.f32.xlu0 %v3056
        %v3058 = vpop.xlane.xlu0 %3057
        %v3059 = vadd.f32 %v2721, %v2723
        %3060 = vadd.xlane.f32.xlu0 %v3059
        %v3061 = vpop.xlane.xlu0 %3060
        %v3062 = vadd.f32 %v2725, %v2727
        %3063 = vadd.xlane.f32.xlu0 %v3062
        %v3064 = vpop.xlane.xlu0 %3063
        %v3065 = vadd.f32 %v2729, %v2731
        %3066 = vadd.xlane.f32.xlu0 %v3065
        %v3067 = vpop.xlane.xlu0 %3066
        %v3068 = vadd.f32 %v2733, %v2735
        %3069 = vadd.xlane.f32.xlu0 %v3068
        %v3070 = vpop.xlane.xlu0 %3069
        %v3071 = vadd.f32 %v2737, %v2739
        %3072 = vadd.xlane.f32.xlu0 %v3071
        %v3073 = vpop.xlane.xlu0 %3072
        %v3074 = vadd.f32 %v2741, %v2743
        %3075 = vadd.xlane.f32.xlu0 %v3074
        %v3076 = vpop.xlane.xlu0 %3075
        %v3077 = vadd.f32 %v2745, %v2747
        %3078 = vadd.xlane.f32.xlu0 %v3077
        %v3079 = vpop.xlane.xlu0 %3078
        %v3080 = vadd.f32 %v2749, %v2751
        %3081 = vadd.xlane.f32.xlu0 %v3080
        %v3082 = vpop.xlane.xlu0 %3081
        %v3083 = vadd.f32 %v2753, %v2755
        %3084 = vadd.xlane.f32.xlu0 %v3083
        %v3085 = vpop.xlane.xlu0 %3084
        %v3086 = vadd.f32 %v2757, %v2759
        %3087 = vadd.xlane.f32.xlu0 %v3086
        %v3088 = vpop.xlane.xlu0 %3087
        %v3089 = vadd.f32 %v2761, %v2763
        %3090 = vadd.xlane.f32.xlu0 %v3089
        %v3091 = vpop.xlane.xlu0 %3090
        %v3092 = vadd.f32 %v2765, %v2767
        %3093 = vadd.xlane.f32.xlu0 %v3092
        %v3094 = vpop.xlane.xlu0 %3093
        %v3095 = vadd.f32 %v2769, %v2771
        %3096 = vadd.xlane.f32.xlu0 %v3095
        %v3097 = vpop.xlane.xlu0 %3096
        %v3098 = vadd.f32 %v2773, %v2775
        %3099 = vadd.xlane.f32.xlu0 %v3098
        %v3100 = vpop.xlane.xlu0 %3099
        %v3101 = vadd.f32 %v2777, %v2779
        %3102 = vadd.xlane.f32.xlu0 %v3101
        %v3103 = vpop.xlane.xlu0 %3102
        %v3104 = vadd.f32 %v2781, %v2783
        %3105 = vadd.xlane.f32.xlu0 %v3104
        %v3106 = vpop.xlane.xlu0 %3105
        %v3107 = vadd.f32 %v2785, %v2787
        %3108 = vadd.xlane.f32.xlu0 %v3107
        %v3109 = vpop.xlane.xlu0 %3108
        %v3110 = vadd.f32 %v2789, %v2791
        %3111 = vadd.xlane.f32.xlu0 %v3110
        %v3112 = vpop.xlane.xlu0 %3111
        %v3113 = vadd.f32 %v2793, %v2795
        %3114 = vadd.xlane.f32.xlu0 %v3113
        %v3115 = vpop.xlane.xlu0 %3114
        %v3116 = vadd.f32 %v2860, %v2926
        %v3117 = vadd.f32 %v2861, %v2929
        %v3118 = vadd.f32 %v2862, %v2932
        %v3119 = vadd.f32 %v2863, %v2935
        %v3120 = vadd.f32 %v2864, %v2938
        %v3121 = vadd.f32 %v2865, %v2941
        %v3122 = vadd.f32 %v2866, %v2944
        %v3123 = vadd.f32 %v2867, %v2947
        %v3124 = vadd.f32 %v2868, %v2950
        %v3125 = vadd.f32 %v2869, %v2953
        %v3126 = vadd.f32 %v2870, %v2956
        %v3127 = vadd.f32 %v2871, %v2959
        %v3128 = vadd.f32 %v2872, %v2962
        %v3129 = vadd.f32 %v2873, %v2965
        %v3130 = vadd.f32 %v2874, %v2968
        %v3131 = vadd.f32 %v2875, %v2971
        %v3132 = vadd.f32 %v2876, %v2974
        %v3133 = vadd.f32 %v2877, %v2977
        %v3134 = vadd.f32 %v2878, %v2980
        %v3135 = vadd.f32 %v2879, %v2983
        %v3136 = vadd.f32 %v2880, %v2986
        %v3137 = vadd.f32 %v2881, %v2989
        %v3138 = vadd.f32 %v2882, %v2992
        %v3139 = vadd.f32 %v2883, %v2995
        %v3140 = vadd.f32 %v2884, %v2998
        %v3141 = vadd.f32 %v2885, %v3001
        %v3142 = vadd.f32 %v2886, %v3004
        %v3143 = vadd.f32 %v2887, %v3007
        %v3144 = vadd.f32 %v2888, %v3010
        %v3145 = vadd.f32 %v2889, %v3013
        %v3146 = vadd.f32 %v2890, %v3016
        %v3147 = vadd.f32 %v2891, %v3019
        %v3148 = vadd.f32 %v2892, %v3022
        %v3149 = vadd.f32 %v2893, %v3025
        %v3150 = vadd.f32 %v2894, %v3028
        %v3151 = vadd.f32 %v2895, %v3031
        %v3152 = vadd.f32 %v2896, %v3034
        %v3153 = vadd.f32 %v2897, %v3037
        %v3154 = vadd.f32 %v2898, %v3040
        %v3155 = vadd.f32 %v2899, %v3043
        %v3156 = vadd.f32 %v2900, %v3046
        %v3157 = vadd.f32 %v2901, %v3049
        %v3158 = vadd.f32 %v2902, %v3052
        %v3159 = vadd.f32 %v2903, %v3055
        %v3160 = vadd.f32 %v2904, %v3058
        %v3161 = vadd.f32 %v2905, %v3061
        %v3162 = vadd.f32 %v2906, %v3064
        %v3163 = vadd.f32 %v2907, %v3067
        %v3164 = vadd.f32 %v2908, %v3070
        %v3165 = vadd.f32 %v2909, %v3073
        %v3166 = vadd.f32 %v2910, %v3076
        %v3167 = vadd.f32 %v2911, %v3079
        %v3168 = vadd.f32 %v2912, %v3082
        %v3169 = vadd.f32 %v2913, %v3085
        %v3170 = vadd.f32 %v2914, %v3088
        %v3171 = vadd.f32 %v2915, %v3091
        %v3172 = vadd.f32 %v2916, %v3094
        %v3173 = vadd.f32 %v2917, %v3097
        %v3174 = vadd.f32 %v2918, %v3100
        %v3175 = vadd.f32 %v2919, %v3103
        %v3176 = vadd.f32 %v2920, %v3106
        %v3177 = vadd.f32 %v2921, %v3109
        %v3178 = vadd.f32 %v2922, %v3112
        %v3179 = vadd.f32 %v2923, %v3115
        %vm3180 = vcmask 7168
        %3181 = vst.msk [vmem:[#allocation4] sm:$0xff] %vm3180, %v3116
        %3182 = vst.msk [vmem:[#allocation4 + $0x8] sm:$0xff] %vm3180, %v3117
        %3183 = vst.msk [vmem:[#allocation4 + $0x10] sm:$0xff] %vm3180, %v3118
        %3184 = vst.msk [vmem:[#allocation4 + $0x18] sm:$0xff] %vm3180, %v3119
        %3185 = vst.msk [vmem:[#allocation4 + $0x20] sm:$0xff] %vm3180, %v3120
        %3186 = vst.msk [vmem:[#allocation4 + $0x28] sm:$0xff] %vm3180, %v3121
        %3187 = vst.msk [vmem:[#allocation4 + $0x30] sm:$0xff] %vm3180, %v3122
        %3188 = vst.msk [vmem:[#allocation4 + $0x38] sm:$0xff] %vm3180, %v3123
        %3189 = vst.msk [vmem:[#allocation4 + $0x40] sm:$0xff] %vm3180, %v3124
        %3190 = vst.msk [vmem:[#allocation4 + $0x48] sm:$0xff] %vm3180, %v3125
        %3191 = vst.msk [vmem:[#allocation4 + $0x50] sm:$0xff] %vm3180, %v3126
        %3192 = vst.msk [vmem:[#allocation4 + $0x58] sm:$0xff] %vm3180, %v3127
        %3193 = vst.msk [vmem:[#allocation4 + $0x60] sm:$0xff] %vm3180, %v3128
        %3194 = vst.msk [vmem:[#allocation4 + $0x68] sm:$0xff] %vm3180, %v3129
        %3195 = vst.msk [vmem:[#allocation4 + $0x70] sm:$0xff] %vm3180, %v3130
        %3196 = vst.msk [vmem:[#allocation4 + $0x78] sm:$0xff] %vm3180, %v3131
        %3197 = vst.msk [vmem:[#allocation4 + $0x80] sm:$0xff] %vm3180, %v3132
        %3198 = vst.msk [vmem:[#allocation4 + $0x88] sm:$0xff] %vm3180, %v3133
        %3199 = vst.msk [vmem:[#allocation4 + $0x90] sm:$0xff] %vm3180, %v3134
        %3200 = vst.msk [vmem:[#allocation4 + $0x98] sm:$0xff] %vm3180, %v3135
        %3201 = vst.msk [vmem:[#allocation4 + $0xa0] sm:$0xff] %vm3180, %v3136
        %3202 = vst.msk [vmem:[#allocation4 + $0xa8] sm:$0xff] %vm3180, %v3137
        %3203 = vst.msk [vmem:[#allocation4 + $0xb0] sm:$0xff] %vm3180, %v3138
        %3204 = vst.msk [vmem:[#allocation4 + $0xb8] sm:$0xff] %vm3180, %v3139
        %3205 = vst.msk [vmem:[#allocation4 + $0xc0] sm:$0xff] %vm3180, %v3140
        %3206 = vst.msk [vmem:[#allocation4 + $0xc8] sm:$0xff] %vm3180, %v3141
        %3207 = vst.msk [vmem:[#allocation4 + $0xd0] sm:$0xff] %vm3180, %v3142
        %3208 = vst.msk [vmem:[#allocation4 + $0xd8] sm:$0xff] %vm3180, %v3143
        %3209 = vst.msk [vmem:[#allocation4 + $0xe0] sm:$0xff] %vm3180, %v3144
        %3210 = vst.msk [vmem:[#allocation4 + $0xe8] sm:$0xff] %vm3180, %v3145
        %3211 = vst.msk [vmem:[#allocation4 + $0xf0] sm:$0xff] %vm3180, %v3146
        %3212 = vst.msk [vmem:[#allocation4 + $0xf8] sm:$0xff] %vm3180, %v3147
        %3213 = vst.msk [vmem:[#allocation4 + $0x100] sm:$0xff] %vm3180, %v3148
        %3214 = vst.msk [vmem:[#allocation4 + $0x108] sm:$0xff] %vm3180, %v3149
        %3215 = vst.msk [vmem:[#allocation4 + $0x110] sm:$0xff] %vm3180, %v3150
        %3216 = vst.msk [vmem:[#allocation4 + $0x118] sm:$0xff] %vm3180, %v3151
        %3217 = vst.msk [vmem:[#allocation4 + $0x120] sm:$0xff] %vm3180, %v3152
        %3218 = vst.msk [vmem:[#allocation4 + $0x128] sm:$0xff] %vm3180, %v3153
        %3219 = vst.msk [vmem:[#allocation4 + $0x130] sm:$0xff] %vm3180, %v3154
        %3220 = vst.msk [vmem:[#allocation4 + $0x138] sm:$0xff] %vm3180, %v3155
        %3221 = vst.msk [vmem:[#allocation4 + $0x140] sm:$0xff] %vm3180, %v3156
        %3222 = vst.msk [vmem:[#allocation4 + $0x148] sm:$0xff] %vm3180, %v3157
        %3223 = vst.msk [vmem:[#allocation4 + $0x150] sm:$0xff] %vm3180, %v3158
        %3224 = vst.msk [vmem:[#allocation4 + $0x158] sm:$0xff] %vm3180, %v3159
        %3225 = vst.msk [vmem:[#allocation4 + $0x160] sm:$0xff] %vm3180, %v3160
        %3226 = vst.msk [vmem:[#allocation4 + $0x168] sm:$0xff] %vm3180, %v3161
        %3227 = vst.msk [vmem:[#allocation4 + $0x170] sm:$0xff] %vm3180, %v3162
        %3228 = vst.msk [vmem:[#allocation4 + $0x178] sm:$0xff] %vm3180, %v3163
        %3229 = vst.msk [vmem:[#allocation4 + $0x180] sm:$0xff] %vm3180, %v3164
        %3230 = vst.msk [vmem:[#allocation4 + $0x188] sm:$0xff] %vm3180, %v3165
        %3231 = vst.msk [vmem:[#allocation4 + $0x190] sm:$0xff] %vm3180, %v3166
        %3232 = vst.msk [vmem:[#allocation4 + $0x198] sm:$0xff] %vm3180, %v3167
        %3233 = vst.msk [vmem:[#allocation4 + $0x1a0] sm:$0xff] %vm3180, %v3168
        %3234 = vst.msk [vmem:[#allocation4 + $0x1a8] sm:$0xff] %vm3180, %v3169
        %3235 = vst.msk [vmem:[#allocation4 + $0x1b0] sm:$0xff] %vm3180, %v3170
        %3236 = vst.msk [vmem:[#allocation4 + $0x1b8] sm:$0xff] %vm3180, %v3171
        %3237 = vst.msk [vmem:[#allocation4 + $0x1c0] sm:$0xff] %vm3180, %v3172
        %3238 = vst.msk [vmem:[#allocation4 + $0x1c8] sm:$0xff] %vm3180, %v3173
        %3239 = vst.msk [vmem:[#allocation4 + $0x1d0] sm:$0xff] %vm3180, %v3174
        %3240 = vst.msk [vmem:[#allocation4 + $0x1d8] sm:$0xff] %vm3180, %v3175
        %3241 = vst.msk [vmem:[#allocation4 + $0x1e0] sm:$0xff] %vm3180, %v3176
        %3242 = vst.msk [vmem:[#allocation4 + $0x1e8] sm:$0xff] %vm3180, %v3177
        %3243 = vst.msk [vmem:[#allocation4 + $0x1f0] sm:$0xff] %vm3180, %v3178
        %3244 = vst.msk [vmem:[#allocation4 + $0x1f8] sm:$0xff] %vm3180, %v3179
        %v3245 = vld [vmem:[#allocation5] sm:$0xff]
        %v3246 = vld [vmem:[#allocation5 + $0x8] sm:$0xff]
        %v3247 = vld [vmem:[#allocation5 + $0x10] sm:$0xff]
        %v3248 = vld [vmem:[#allocation5 + $0x18] sm:$0xff]
        %v3249 = vld [vmem:[#allocation5 + $0x20] sm:$0xff]
        %v3250 = vld [vmem:[#allocation5 + $0x28] sm:$0xff]
        %v3251 = vld [vmem:[#allocation5 + $0x30] sm:$0xff]
        %v3252 = vld [vmem:[#allocation5 + $0x38] sm:$0xff]
        %v3253 = vld [vmem:[#allocation5 + $0x40] sm:$0xff]
        %v3254 = vld [vmem:[#allocation5 + $0x48] sm:$0xff]
        %v3255 = vld [vmem:[#allocation5 + $0x50] sm:$0xff]
        %v3256 = vld [vmem:[#allocation5 + $0x58] sm:$0xff]
        %v3257 = vld [vmem:[#allocation5 + $0x60] sm:$0xff]
        %v3258 = vld [vmem:[#allocation5 + $0x68] sm:$0xff]
        %v3259 = vld [vmem:[#allocation5 + $0x70] sm:$0xff]
        %v3260 = vld [vmem:[#allocation5 + $0x78] sm:$0xff]
        %v3261 = vld [vmem:[#allocation5 + $0x80] sm:$0xff]
        %v3262 = vld [vmem:[#allocation5 + $0x88] sm:$0xff]
        %v3263 = vld [vmem:[#allocation5 + $0x90] sm:$0xff]
        %v3264 = vld [vmem:[#allocation5 + $0x98] sm:$0xff]
        %v3265 = vld [vmem:[#allocation5 + $0xa0] sm:$0xff]
        %v3266 = vld [vmem:[#allocation5 + $0xa8] sm:$0xff]
        %v3267 = vld [vmem:[#allocation5 + $0xb0] sm:$0xff]
        %v3268 = vld [vmem:[#allocation5 + $0xb8] sm:$0xff]
        %v3269 = vld [vmem:[#allocation5 + $0xc0] sm:$0xff]
        %v3270 = vld [vmem:[#allocation5 + $0xc8] sm:$0xff]
        %v3271 = vld [vmem:[#allocation5 + $0xd0] sm:$0xff]
        %v3272 = vld [vmem:[#allocation5 + $0xd8] sm:$0xff]
        %v3273 = vld [vmem:[#allocation5 + $0xe0] sm:$0xff]
        %v3274 = vld [vmem:[#allocation5 + $0xe8] sm:$0xff]
        %v3275 = vld [vmem:[#allocation5 + $0xf0] sm:$0xff]
        %v3276 = vld [vmem:[#allocation5 + $0xf8] sm:$0xff]
        %v3277 = vld [vmem:[#allocation5 + $0x100] sm:$0xff]
        %v3278 = vld [vmem:[#allocation5 + $0x108] sm:$0xff]
        %v3279 = vld [vmem:[#allocation5 + $0x110] sm:$0xff]
        %v3280 = vld [vmem:[#allocation5 + $0x118] sm:$0xff]
        %v3281 = vld [vmem:[#allocation5 + $0x120] sm:$0xff]
        %v3282 = vld [vmem:[#allocation5 + $0x128] sm:$0xff]
        %v3283 = vld [vmem:[#allocation5 + $0x130] sm:$0xff]
        %v3284 = vld [vmem:[#allocation5 + $0x138] sm:$0xff]
        %v3285 = vld [vmem:[#allocation5 + $0x140] sm:$0xff]
        %v3286 = vld [vmem:[#allocation5 + $0x148] sm:$0xff]
        %v3287 = vld [vmem:[#allocation5 + $0x150] sm:$0xff]
        %v3288 = vld [vmem:[#allocation5 + $0x158] sm:$0xff]
        %v3289 = vld [vmem:[#allocation5 + $0x160] sm:$0xff]
        %v3290 = vld [vmem:[#allocation5 + $0x168] sm:$0xff]
        %v3291 = vld [vmem:[#allocation5 + $0x170] sm:$0xff]
        %v3292 = vld [vmem:[#allocation5 + $0x178] sm:$0xff]
        %v3293 = vld [vmem:[#allocation5 + $0x180] sm:$0xff]
        %v3294 = vld [vmem:[#allocation5 + $0x188] sm:$0xff]
        %v3295 = vld [vmem:[#allocation5 + $0x190] sm:$0xff]
        %v3296 = vld [vmem:[#allocation5 + $0x198] sm:$0xff]
        %v3297 = vld [vmem:[#allocation5 + $0x1a0] sm:$0xff]
        %v3298 = vld [vmem:[#allocation5 + $0x1a8] sm:$0xff]
        %v3299 = vld [vmem:[#allocation5 + $0x1b0] sm:$0xff]
        %v3300 = vld [vmem:[#allocation5 + $0x1b8] sm:$0xff]
        %v3301 = vld [vmem:[#allocation5 + $0x1c0] sm:$0xff]
        %v3302 = vld [vmem:[#allocation5 + $0x1c8] sm:$0xff]
        %v3303 = vld [vmem:[#allocation5 + $0x1d0] sm:$0xff]
        %v3304 = vld [vmem:[#allocation5 + $0x1d8] sm:$0xff]
        %v3305 = vld [vmem:[#allocation5 + $0x1e0] sm:$0xff]
        %v3306 = vld [vmem:[#allocation5 + $0x1e8] sm:$0xff]
        %v3307 = vld [vmem:[#allocation5 + $0x1f0] sm:$0xff]
        %v3308 = vld [vmem:[#allocation5 + $0x1f8] sm:$0xff]
        %3310 = vset.pattern.permute.xlu0 0
        %3311 = vperm.xlu0 %3310, %v1965
        %v3312 = vpop.permute.xlu0 %3311
        %3315 = vset.pattern.permute.xlu0 0
        %3316 = vperm.xlu0 %3315, %v1967
        %v3317 = vpop.permute.xlu0 %3316
        %3320 = vset.pattern.permute.xlu0 0
        %3321 = vperm.xlu0 %3320, %v1969
        %v3322 = vpop.permute.xlu0 %3321
        %3325 = vset.pattern.permute.xlu0 0
        %3326 = vperm.xlu0 %3325, %v1971
        %v3327 = vpop.permute.xlu0 %3326
        %3330 = vset.pattern.permute.xlu0 0
        %3331 = vperm.xlu0 %3330, %v1973
        %v3332 = vpop.permute.xlu0 %3331
        %3335 = vset.pattern.permute.xlu0 0
        %3336 = vperm.xlu0 %3335, %v1975
        %v3337 = vpop.permute.xlu0 %3336
        %3340 = vset.pattern.permute.xlu0 0
        %3341 = vperm.xlu0 %3340, %v1977
        %v3342 = vpop.permute.xlu0 %3341
        %3345 = vset.pattern.permute.xlu0 0
        %3346 = vperm.xlu0 %3345, %v1979
        %v3347 = vpop.permute.xlu0 %3346
        %3350 = vset.pattern.permute.xlu0 0
        %3351 = vperm.xlu0 %3350, %v1981
        %v3352 = vpop.permute.xlu0 %3351
        %3355 = vset.pattern.permute.xlu0 0
        %3356 = vperm.xlu0 %3355, %v1983
        %v3357 = vpop.permute.xlu0 %3356
        %3360 = vset.pattern.permute.xlu0 0
        %3361 = vperm.xlu0 %3360, %v1985
        %v3362 = vpop.permute.xlu0 %3361
        %3365 = vset.pattern.permute.xlu0 0
        %3366 = vperm.xlu0 %3365, %v1987
        %v3367 = vpop.permute.xlu0 %3366
        %3370 = vset.pattern.permute.xlu0 0
        %3371 = vperm.xlu0 %3370, %v1989
        %v3372 = vpop.permute.xlu0 %3371
        %3375 = vset.pattern.permute.xlu0 0
        %3376 = vperm.xlu0 %3375, %v1991
        %v3377 = vpop.permute.xlu0 %3376
        %3380 = vset.pattern.permute.xlu0 0
        %3381 = vperm.xlu0 %3380, %v1993
        %v3382 = vpop.permute.xlu0 %3381
        %3385 = vset.pattern.permute.xlu0 0
        %3386 = vperm.xlu0 %3385, %v1995
        %v3387 = vpop.permute.xlu0 %3386
        %3390 = vset.pattern.permute.xlu0 0
        %3391 = vperm.xlu0 %3390, %v1997
        %v3392 = vpop.permute.xlu0 %3391
        %3395 = vset.pattern.permute.xlu0 0
        %3396 = vperm.xlu0 %3395, %v1999
        %v3397 = vpop.permute.xlu0 %3396
        %3400 = vset.pattern.permute.xlu0 0
        %3401 = vperm.xlu0 %3400, %v2001
        %v3402 = vpop.permute.xlu0 %3401
        %3405 = vset.pattern.permute.xlu0 0
        %3406 = vperm.xlu0 %3405, %v2003
        %v3407 = vpop.permute.xlu0 %3406
        %3410 = vset.pattern.permute.xlu0 0
        %3411 = vperm.xlu0 %3410, %v2005
        %v3412 = vpop.permute.xlu0 %3411
        %3415 = vset.pattern.permute.xlu0 0
        %3416 = vperm.xlu0 %3415, %v2007
        %v3417 = vpop.permute.xlu0 %3416
        %3420 = vset.pattern.permute.xlu0 0
        %3421 = vperm.xlu0 %3420, %v2009
        %v3422 = vpop.permute.xlu0 %3421
        %3425 = vset.pattern.permute.xlu0 0
        %3426 = vperm.xlu0 %3425, %v2011
        %v3427 = vpop.permute.xlu0 %3426
        %3430 = vset.pattern.permute.xlu0 0
        %3431 = vperm.xlu0 %3430, %v2013
        %v3432 = vpop.permute.xlu0 %3431
        %3435 = vset.pattern.permute.xlu0 0
        %3436 = vperm.xlu0 %3435, %v2015
        %v3437 = vpop.permute.xlu0 %3436
        %3440 = vset.pattern.permute.xlu0 0
        %3441 = vperm.xlu0 %3440, %v2017
        %v3442 = vpop.permute.xlu0 %3441
        %3445 = vset.pattern.permute.xlu0 0
        %3446 = vperm.xlu0 %3445, %v2019
        %v3447 = vpop.permute.xlu0 %3446
        %3450 = vset.pattern.permute.xlu0 0
        %3451 = vperm.xlu0 %3450, %v2021
        %v3452 = vpop.permute.xlu0 %3451
        %3455 = vset.pattern.permute.xlu0 0
        %3456 = vperm.xlu0 %3455, %v2023
        %v3457 = vpop.permute.xlu0 %3456
        %3460 = vset.pattern.permute.xlu0 0
        %3461 = vperm.xlu0 %3460, %v2025
        %v3462 = vpop.permute.xlu0 %3461
        %3465 = vset.pattern.permute.xlu0 0
        %3466 = vperm.xlu0 %3465, %v2027
        %v3467 = vpop.permute.xlu0 %3466
        %3470 = vset.pattern.permute.xlu0 0
        %3471 = vperm.xlu0 %3470, %v2029
        %v3472 = vpop.permute.xlu0 %3471
        %3475 = vset.pattern.permute.xlu0 0
        %3476 = vperm.xlu0 %3475, %v2031
        %v3477 = vpop.permute.xlu0 %3476
        %3480 = vset.pattern.permute.xlu0 0
        %3481 = vperm.xlu0 %3480, %v2033
        %v3482 = vpop.permute.xlu0 %3481
        %3485 = vset.pattern.permute.xlu0 0
        %3486 = vperm.xlu0 %3485, %v2035
        %v3487 = vpop.permute.xlu0 %3486
        %3490 = vset.pattern.permute.xlu0 0
        %3491 = vperm.xlu0 %3490, %v2037
        %v3492 = vpop.permute.xlu0 %3491
        %3495 = vset.pattern.permute.xlu0 0
        %3496 = vperm.xlu0 %3495, %v2039
        %v3497 = vpop.permute.xlu0 %3496
        %3500 = vset.pattern.permute.xlu0 0
        %3501 = vperm.xlu0 %3500, %v2041
        %v3502 = vpop.permute.xlu0 %3501
        %3505 = vset.pattern.permute.xlu0 0
        %3506 = vperm.xlu0 %3505, %v2043
        %v3507 = vpop.permute.xlu0 %3506
        %3510 = vset.pattern.permute.xlu0 0
        %3511 = vperm.xlu0 %3510, %v2045
        %v3512 = vpop.permute.xlu0 %3511
        %3515 = vset.pattern.permute.xlu0 0
        %3516 = vperm.xlu0 %3515, %v2047
        %v3517 = vpop.permute.xlu0 %3516
        %3520 = vset.pattern.permute.xlu0 0
        %3521 = vperm.xlu0 %3520, %v2049
        %v3522 = vpop.permute.xlu0 %3521
        %3525 = vset.pattern.permute.xlu0 0
        %3526 = vperm.xlu0 %3525, %v2051
        %v3527 = vpop.permute.xlu0 %3526
        %3530 = vset.pattern.permute.xlu0 0
        %3531 = vperm.xlu0 %3530, %v2053
        %v3532 = vpop.permute.xlu0 %3531
        %3535 = vset.pattern.permute.xlu0 0
        %3536 = vperm.xlu0 %3535, %v2055
        %v3537 = vpop.permute.xlu0 %3536
        %3540 = vset.pattern.permute.xlu0 0
        %3541 = vperm.xlu0 %3540, %v2057
        %v3542 = vpop.permute.xlu0 %3541
        %3545 = vset.pattern.permute.xlu0 0
        %3546 = vperm.xlu0 %3545, %v2059
        %v3547 = vpop.permute.xlu0 %3546
        %3550 = vset.pattern.permute.xlu0 0
        %3551 = vperm.xlu0 %3550, %v2061
        %v3552 = vpop.permute.xlu0 %3551
        %3555 = vset.pattern.permute.xlu0 0
        %3556 = vperm.xlu0 %3555, %v2063
        %v3557 = vpop.permute.xlu0 %3556
        %3560 = vset.pattern.permute.xlu0 0
        %3561 = vperm.xlu0 %3560, %v2065
        %v3562 = vpop.permute.xlu0 %3561
        %3565 = vset.pattern.permute.xlu0 0
        %3566 = vperm.xlu0 %3565, %v2067
        %v3567 = vpop.permute.xlu0 %3566
        %3570 = vset.pattern.permute.xlu0 0
        %3571 = vperm.xlu0 %3570, %v2069
        %v3572 = vpop.permute.xlu0 %3571
        %3575 = vset.pattern.permute.xlu0 0
        %3576 = vperm.xlu0 %3575, %v2071
        %v3577 = vpop.permute.xlu0 %3576
        %3580 = vset.pattern.permute.xlu0 0
        %3581 = vperm.xlu0 %3580, %v2073
        %v3582 = vpop.permute.xlu0 %3581
        %3585 = vset.pattern.permute.xlu0 0
        %3586 = vperm.xlu0 %3585, %v2075
        %v3587 = vpop.permute.xlu0 %3586
        %3590 = vset.pattern.permute.xlu0 0
        %3591 = vperm.xlu0 %3590, %v2077
        %v3592 = vpop.permute.xlu0 %3591
        %3595 = vset.pattern.permute.xlu0 0
        %3596 = vperm.xlu0 %3595, %v2079
        %v3597 = vpop.permute.xlu0 %3596
        %3600 = vset.pattern.permute.xlu0 0
        %3601 = vperm.xlu0 %3600, %v2081
        %v3602 = vpop.permute.xlu0 %3601
        %3605 = vset.pattern.permute.xlu0 0
        %3606 = vperm.xlu0 %3605, %v2083
        %v3607 = vpop.permute.xlu0 %3606
        %3610 = vset.pattern.permute.xlu0 0
        %3611 = vperm.xlu0 %3610, %v2085
        %v3612 = vpop.permute.xlu0 %3611
        %3615 = vset.pattern.permute.xlu0 0
        %3616 = vperm.xlu0 %3615, %v2087
        %v3617 = vpop.permute.xlu0 %3616
        %3620 = vset.pattern.permute.xlu0 0
        %3621 = vperm.xlu0 %3620, %v2089
        %v3622 = vpop.permute.xlu0 %3621
        %3625 = vset.pattern.permute.xlu0 0
        %3626 = vperm.xlu0 %3625, %v2091
        %v3627 = vpop.permute.xlu0 %3626
        %v3629 = vmul.f32 %v3312, %v3245
        %v3630 = vmul.f32 %v3317, %v3246
        %v3631 = vmul.f32 %v3322, %v3247
        %v3632 = vmul.f32 %v3327, %v3248
        %v3633 = vmul.f32 %v3332, %v3249
        %v3634 = vmul.f32 %v3337, %v3250
        %v3635 = vmul.f32 %v3342, %v3251
        %v3636 = vmul.f32 %v3347, %v3252
        %v3637 = vmul.f32 %v3352, %v3253
        %v3638 = vmul.f32 %v3357, %v3254
        %v3639 = vmul.f32 %v3362, %v3255
        %v3640 = vmul.f32 %v3367, %v3256
        %v3641 = vmul.f32 %v3372, %v3257
        %v3642 = vmul.f32 %v3377, %v3258
        %v3643 = vmul.f32 %v3382, %v3259
        %v3644 = vmul.f32 %v3387, %v3260
        %v3645 = vmul.f32 %v3392, %v3261
        %v3646 = vmul.f32 %v3397, %v3262
        %v3647 = vmul.f32 %v3402, %v3263
        %v3648 = vmul.f32 %v3407, %v3264
        %v3649 = vmul.f32 %v3412, %v3265
        %v3650 = vmul.f32 %v3417, %v3266
        %v3651 = vmul.f32 %v3422, %v3267
        %v3652 = vmul.f32 %v3427, %v3268
        %v3653 = vmul.f32 %v3432, %v3269
        %v3654 = vmul.f32 %v3437, %v3270
        %v3655 = vmul.f32 %v3442, %v3271
        %v3656 = vmul.f32 %v3447, %v3272
        %v3657 = vmul.f32 %v3452, %v3273
        %v3658 = vmul.f32 %v3457, %v3274
        %v3659 = vmul.f32 %v3462, %v3275
        %v3660 = vmul.f32 %v3467, %v3276
        %v3661 = vmul.f32 %v3472, %v3277
        %v3662 = vmul.f32 %v3477, %v3278
        %v3663 = vmul.f32 %v3482, %v3279
        %v3664 = vmul.f32 %v3487, %v3280
        %v3665 = vmul.f32 %v3492, %v3281
        %v3666 = vmul.f32 %v3497, %v3282
        %v3667 = vmul.f32 %v3502, %v3283
        %v3668 = vmul.f32 %v3507, %v3284
        %v3669 = vmul.f32 %v3512, %v3285
        %v3670 = vmul.f32 %v3517, %v3286
        %v3671 = vmul.f32 %v3522, %v3287
        %v3672 = vmul.f32 %v3527, %v3288
        %v3673 = vmul.f32 %v3532, %v3289
        %v3674 = vmul.f32 %v3537, %v3290
        %v3675 = vmul.f32 %v3542, %v3291
        %v3676 = vmul.f32 %v3547, %v3292
        %v3677 = vmul.f32 %v3552, %v3293
        %v3678 = vmul.f32 %v3557, %v3294
        %v3679 = vmul.f32 %v3562, %v3295
        %v3680 = vmul.f32 %v3567, %v3296
        %v3681 = vmul.f32 %v3572, %v3297
        %v3682 = vmul.f32 %v3577, %v3298
        %v3683 = vmul.f32 %v3582, %v3299
        %v3684 = vmul.f32 %v3587, %v3300
        %v3685 = vmul.f32 %v3592, %v3301
        %v3686 = vmul.f32 %v3597, %v3302
        %v3687 = vmul.f32 %v3602, %v3303
        %v3688 = vmul.f32 %v3607, %v3304
        %v3689 = vmul.f32 %v3612, %v3305
        %v3690 = vmul.f32 %v3617, %v3306
        %v3691 = vmul.f32 %v3622, %v3307
        %v3692 = vmul.f32 %v3627, %v3308
        %v3693 = vpack.c.bf16 %v2545, %v2541
        %v3694 = vpack.c.bf16 %v2547, %v2543
        %v3695 = vpack.c.bf16 %v2553, %v2549
        %v3696 = vpack.c.bf16 %v2555, %v2551
        %v3697 = vpack.c.bf16 %v2561, %v2557
        %v3698 = vpack.c.bf16 %v2563, %v2559
        %v3699 = vpack.c.bf16 %v2569, %v2565
        %v3700 = vpack.c.bf16 %v2571, %v2567
        %v3701 = vpack.c.bf16 %v2577, %v2573
        %v3702 = vpack.c.bf16 %v2579, %v2575
        %v3703 = vpack.c.bf16 %v2585, %v2581
        %v3704 = vpack.c.bf16 %v2587, %v2583
        %v3705 = vpack.c.bf16 %v2593, %v2589
        %v3706 = vpack.c.bf16 %v2595, %v2591
        %v3707 = vpack.c.bf16 %v2601, %v2597
        %v3708 = vpack.c.bf16 %v2603, %v2599
        %v3709 = vpack.c.bf16 %v2609, %v2605
        %v3710 = vpack.c.bf16 %v2611, %v2607
        %v3711 = vpack.c.bf16 %v2617, %v2613
        %v3712 = vpack.c.bf16 %v2619, %v2615
        %v3713 = vpack.c.bf16 %v2625, %v2621
        %v3714 = vpack.c.bf16 %v2627, %v2623
        %v3715 = vpack.c.bf16 %v2633, %v2629
        %v3716 = vpack.c.bf16 %v2635, %v2631
        %v3717 = vpack.c.bf16 %v2641, %v2637
        %v3718 = vpack.c.bf16 %v2643, %v2639
        %v3719 = vpack.c.bf16 %v2649, %v2645
        %v3720 = vpack.c.bf16 %v2651, %v2647
        %v3721 = vpack.c.bf16 %v2657, %v2653
        %v3722 = vpack.c.bf16 %v2659, %v2655
        %v3723 = vpack.c.bf16 %v2665, %v2661
        %v3724 = vpack.c.bf16 %v2667, %v2663
        %v3725 = vpack.c.bf16 %v2673, %v2669
        %v3726 = vpack.c.bf16 %v2675, %v2671
        %v3727 = vpack.c.bf16 %v2681, %v2677
        %v3728 = vpack.c.bf16 %v2683, %v2679
        %v3729 = vpack.c.bf16 %v2689, %v2685
        %v3730 = vpack.c.bf16 %v2691, %v2687
        %v3731 = vpack.c.bf16 %v2697, %v2693
        %v3732 = vpack.c.bf16 %v2699, %v2695
        %v3733 = vpack.c.bf16 %v2705, %v2701
        %v3734 = vpack.c.bf16 %v2707, %v2703
        %v3735 = vpack.c.bf16 %v2713, %v2709
        %v3736 = vpack.c.bf16 %v2715, %v2711
        %v3737 = vpack.c.bf16 %v2721, %v2717
        %v3738 = vpack.c.bf16 %v2723, %v2719
        %v3739 = vpack.c.bf16 %v2729, %v2725
        %v3740 = vpack.c.bf16 %v2731, %v2727
        %v3741 = vpack.c.bf16 %v2737, %v2733
        %v3742 = vpack.c.bf16 %v2739, %v2735
        %v3743 = vpack.c.bf16 %v2745, %v2741
        %v3744 = vpack.c.bf16 %v2747, %v2743
        %v3745 = vpack.c.bf16 %v2753, %v2749
        %v3746 = vpack.c.bf16 %v2755, %v2751
        %v3747 = vpack.c.bf16 %v2761, %v2757
        %v3748 = vpack.c.bf16 %v2763, %v2759
        %v3749 = vpack.c.bf16 %v2769, %v2765
        %v3750 = vpack.c.bf16 %v2771, %v2767
        %v3751 = vpack.c.bf16 %v2777, %v2773
        %v3752 = vpack.c.bf16 %v2779, %v2775
        %v3753 = vpack.c.bf16 %v2785, %v2781
        %v3754 = vpack.c.bf16 %v2787, %v2783
        %v3755 = vpack.c.bf16 %v2793, %v2789
        %v3756 = vpack.c.bf16 %v2795, %v2791
        %v3789 = vunpack.c.l.b16 %v858
        %v3790 = vunpack.c.l.b16 %v859
        %v3791 = vunpack.c.l.b16 %v860
        %v3792 = vunpack.c.l.b16 %v861
        %v3793 = vunpack.c.l.b16 %v862
        %v3794 = vunpack.c.l.b16 %v863
        %v3795 = vunpack.c.l.b16 %v864
        %v3796 = vunpack.c.l.b16 %v865
        %v3797 = vunpack.c.l.b16 %v866
        %v3798 = vunpack.c.l.b16 %v867
        %v3799 = vunpack.c.l.b16 %v868
        %v3800 = vunpack.c.l.b16 %v869
        %v3801 = vunpack.c.l.b16 %v870
        %v3802 = vunpack.c.l.b16 %v871
        %v3803 = vunpack.c.l.b16 %v872
        %v3804 = vunpack.c.l.b16 %v873
        %v3805 = vunpack.c.l.b16 %v874
        %v3806 = vunpack.c.l.b16 %v875
        %v3807 = vunpack.c.l.b16 %v876
        %v3808 = vunpack.c.l.b16 %v877
        %v3809 = vunpack.c.l.b16 %v878
        %v3810 = vunpack.c.l.b16 %v879
        %v3811 = vunpack.c.l.b16 %v880
        %v3812 = vunpack.c.l.b16 %v881
        %v3813 = vunpack.c.l.b16 %v882
        %v3814 = vunpack.c.l.b16 %v883
        %v3815 = vunpack.c.l.b16 %v884
        %v3816 = vunpack.c.l.b16 %v885
        %v3817 = vunpack.c.l.b16 %v886
        %v3818 = vunpack.c.l.b16 %v887
        %v3819 = vunpack.c.l.b16 %v888
        %v3820 = vunpack.c.l.b16 %v889
        %v3821 = vpack.c.b16 %v3790, %v3789
        %v3822 = vpack.c.b16 %v3792, %v3791
        %v3823 = vpack.c.b16 %v3794, %v3793
        %v3824 = vpack.c.b16 %v3796, %v3795
        %v3825 = vpack.c.b16 %v3798, %v3797
        %v3826 = vpack.c.b16 %v3800, %v3799
        %v3827 = vpack.c.b16 %v3802, %v3801
        %v3828 = vpack.c.b16 %v3804, %v3803
        %v3829 = vpack.c.b16 %v3806, %v3805
        %v3830 = vpack.c.b16 %v3808, %v3807
        %v3831 = vpack.c.b16 %v3810, %v3809
        %v3832 = vpack.c.b16 %v3812, %v3811
        %v3833 = vpack.c.b16 %v3814, %v3813
        %v3834 = vpack.c.b16 %v3816, %v3815
        %v3835 = vpack.c.b16 %v3818, %v3817
        %v3836 = vpack.c.b16 %v3820, %v3819
        %3853 = vmatpush.bf16.msra.mxu0 %v3828
        %3854 = vmatpush.bf16.msra.mxu0 %v3827
        %3855 = vmatpush.bf16.msra.mxu0 %v3826
        %3856 = vmatpush.bf16.msra.mxu0 %v3825
        %3857 = vmatpush.bf16.msra.mxu0 %v3824
        %3858 = vmatpush.bf16.msra.mxu0 %v3823
        %3859 = vmatpush.bf16.msra.mxu0 %v3822
        %3860 = vmatpush.bf16.msra.mxu0 %v3821
        %3861 = vmatmul.bf16.gmra.mxu0 %v3693
        %v3862 = vpop.f32.mrf.mxu0
        %v3863 = vadd.f32 0.0, %v3862
        %v3864 = vpop.f32.mrf.mxu0
        %v3865 = vadd.f32 0.0, %v3864
        %3866 = vmatmul.bf16.gmra.mxu0 %v3695
        %v3867 = vpop.f32.mrf.mxu0
        %v3868 = vadd.f32 0.0, %v3867
        %v3869 = vpop.f32.mrf.mxu0
        %v3870 = vadd.f32 0.0, %v3869
        %3871 = vmatmul.bf16.gmra.mxu0 %v3697
        %v3872 = vpop.f32.mrf.mxu0
        %v3873 = vadd.f32 0.0, %v3872
        %v3874 = vpop.f32.mrf.mxu0
        %v3875 = vadd.f32 0.0, %v3874
        %3876 = vmatmul.bf16.gmra.mxu0 %v3699
        %v3877 = vpop.f32.mrf.mxu0
        %v3878 = vadd.f32 0.0, %v3877
        %v3879 = vpop.f32.mrf.mxu0
        %v3880 = vadd.f32 0.0, %v3879
        %3881 = vmatmul.bf16.gmra.mxu0 %v3701
        %v3882 = vpop.f32.mrf.mxu0
        %v3883 = vadd.f32 0.0, %v3882
        %v3884 = vpop.f32.mrf.mxu0
        %v3885 = vadd.f32 0.0, %v3884
        %3886 = vmatmul.bf16.gmra.mxu0 %v3703
        %v3887 = vpop.f32.mrf.mxu0
        %v3888 = vadd.f32 0.0, %v3887
        %v3889 = vpop.f32.mrf.mxu0
        %v3890 = vadd.f32 0.0, %v3889
        %3891 = vmatmul.bf16.gmra.mxu0 %v3705
        %v3892 = vpop.f32.mrf.mxu0
        %v3893 = vadd.f32 0.0, %v3892
        %v3894 = vpop.f32.mrf.mxu0
        %v3895 = vadd.f32 0.0, %v3894
        %3896 = vmatmul.bf16.gmra.mxu0 %v3707
        %v3897 = vpop.f32.mrf.mxu0
        %v3898 = vadd.f32 0.0, %v3897
        %v3899 = vpop.f32.mrf.mxu0
        %v3900 = vadd.f32 0.0, %v3899
        %3901 = vmatmul.bf16.gmra.mxu0 %v3709
        %v3902 = vpop.f32.mrf.mxu0
        %v3903 = vadd.f32 0.0, %v3902
        %v3904 = vpop.f32.mrf.mxu0
        %v3905 = vadd.f32 0.0, %v3904
        %3906 = vmatmul.bf16.gmra.mxu0 %v3711
        %v3907 = vpop.f32.mrf.mxu0
        %v3908 = vadd.f32 0.0, %v3907
        %v3909 = vpop.f32.mrf.mxu0
        %v3910 = vadd.f32 0.0, %v3909
        %3911 = vmatmul.bf16.gmra.mxu0 %v3713
        %v3912 = vpop.f32.mrf.mxu0
        %v3913 = vadd.f32 0.0, %v3912
        %v3914 = vpop.f32.mrf.mxu0
        %v3915 = vadd.f32 0.0, %v3914
        %3916 = vmatmul.bf16.gmra.mxu0 %v3715
        %v3917 = vpop.f32.mrf.mxu0
        %v3918 = vadd.f32 0.0, %v3917
        %v3919 = vpop.f32.mrf.mxu0
        %v3920 = vadd.f32 0.0, %v3919
        %3921 = vmatmul.bf16.gmra.mxu0 %v3717
        %v3922 = vpop.f32.mrf.mxu0
        %v3923 = vadd.f32 0.0, %v3922
        %v3924 = vpop.f32.mrf.mxu0
        %v3925 = vadd.f32 0.0, %v3924
        %3926 = vmatmul.bf16.gmra.mxu0 %v3719
        %v3927 = vpop.f32.mrf.mxu0
        %v3928 = vadd.f32 0.0, %v3927
        %v3929 = vpop.f32.mrf.mxu0
        %v3930 = vadd.f32 0.0, %v3929
        %3931 = vmatmul.bf16.gmra.mxu0 %v3721
        %v3932 = vpop.f32.mrf.mxu0
        %v3933 = vadd.f32 0.0, %v3932
        %v3934 = vpop.f32.mrf.mxu0
        %v3935 = vadd.f32 0.0, %v3934
        %3936 = vmatmul.bf16.gmra.mxu0 %v3723
        %v3937 = vpop.f32.mrf.mxu0
        %v3938 = vadd.f32 0.0, %v3937
        %v3939 = vpop.f32.mrf.mxu0
        %v3940 = vadd.f32 0.0, %v3939
        %3941 = vmatmul.bf16.gmra.mxu0 %v3725
        %v3942 = vpop.f32.mrf.mxu0
        %v3943 = vadd.f32 0.0, %v3942
        %v3944 = vpop.f32.mrf.mxu0
        %v3945 = vadd.f32 0.0, %v3944
        %3946 = vmatmul.bf16.gmra.mxu0 %v3727
        %v3947 = vpop.f32.mrf.mxu0
        %v3948 = vadd.f32 0.0, %v3947
        %v3949 = vpop.f32.mrf.mxu0
        %v3950 = vadd.f32 0.0, %v3949
        %3951 = vmatmul.bf16.gmra.mxu0 %v3729
        %v3952 = vpop.f32.mrf.mxu0
        %v3953 = vadd.f32 0.0, %v3952
        %v3954 = vpop.f32.mrf.mxu0
        %v3955 = vadd.f32 0.0, %v3954
        %3956 = vmatmul.bf16.gmra.mxu0 %v3731
        %v3957 = vpop.f32.mrf.mxu0
        %v3958 = vadd.f32 0.0, %v3957
        %v3959 = vpop.f32.mrf.mxu0
        %v3960 = vadd.f32 0.0, %v3959
        %3961 = vmatmul.bf16.gmra.mxu0 %v3733
        %v3962 = vpop.f32.mrf.mxu0
        %v3963 = vadd.f32 0.0, %v3962
        %v3964 = vpop.f32.mrf.mxu0
        %v3965 = vadd.f32 0.0, %v3964
        %3966 = vmatmul.bf16.gmra.mxu0 %v3735
        %v3967 = vpop.f32.mrf.mxu0
        %v3968 = vadd.f32 0.0, %v3967
        %v3969 = vpop.f32.mrf.mxu0
        %v3970 = vadd.f32 0.0, %v3969
        %3971 = vmatmul.bf16.gmra.mxu0 %v3737
        %v3972 = vpop.f32.mrf.mxu0
        %v3973 = vadd.f32 0.0, %v3972
        %v3974 = vpop.f32.mrf.mxu0
        %v3975 = vadd.f32 0.0, %v3974
        %3976 = vmatmul.bf16.gmra.mxu0 %v3739
        %v3977 = vpop.f32.mrf.mxu0
        %v3978 = vadd.f32 0.0, %v3977
        %v3979 = vpop.f32.mrf.mxu0
        %v3980 = vadd.f32 0.0, %v3979
        %3981 = vmatmul.bf16.gmra.mxu0 %v3741
        %v3982 = vpop.f32.mrf.mxu0
        %v3983 = vadd.f32 0.0, %v3982
        %v3984 = vpop.f32.mrf.mxu0
        %v3985 = vadd.f32 0.0, %v3984
        %3986 = vmatmul.bf16.gmra.mxu0 %v3743
        %v3987 = vpop.f32.mrf.mxu0
        %v3988 = vadd.f32 0.0, %v3987
        %v3989 = vpop.f32.mrf.mxu0
        %v3990 = vadd.f32 0.0, %v3989
        %3991 = vmatmul.bf16.gmra.mxu0 %v3745
        %v3992 = vpop.f32.mrf.mxu0
        %v3993 = vadd.f32 0.0, %v3992
        %v3994 = vpop.f32.mrf.mxu0
        %v3995 = vadd.f32 0.0, %v3994
        %3996 = vmatmul.bf16.gmra.mxu0 %v3747
        %v3997 = vpop.f32.mrf.mxu0
        %v3998 = vadd.f32 0.0, %v3997
        %v3999 = vpop.f32.mrf.mxu0
        %v4000 = vadd.f32 0.0, %v3999
        %4001 = vmatmul.bf16.gmra.mxu0 %v3749
        %v4002 = vpop.f32.mrf.mxu0
        %v4003 = vadd.f32 0.0, %v4002
        %v4004 = vpop.f32.mrf.mxu0
        %v4005 = vadd.f32 0.0, %v4004
        %4006 = vmatmul.bf16.gmra.mxu0 %v3751
        %v4007 = vpop.f32.mrf.mxu0
        %v4008 = vadd.f32 0.0, %v4007
        %v4009 = vpop.f32.mrf.mxu0
        %v4010 = vadd.f32 0.0, %v4009
        %4011 = vmatmul.bf16.gmra.mxu0 %v3753
        %v4012 = vpop.f32.mrf.mxu0
        %v4013 = vadd.f32 0.0, %v4012
        %v4014 = vpop.f32.mrf.mxu0
        %v4015 = vadd.f32 0.0, %v4014
        %4016 = vmatmul.bf16.gmra.mxu0 %v3755
        %v4017 = vpop.f32.mrf.mxu0
        %v4018 = vadd.f32 0.0, %v4017
        %v4019 = vpop.f32.mrf.mxu0
        %v4020 = vadd.f32 0.0, %v4019
        %4021 = vdwg.mxu0
        %4022 = vmatpush.bf16.msra.mxu0 %v3836
        %4023 = vmatpush.bf16.msra.mxu0 %v3835
        %4024 = vmatpush.bf16.msra.mxu0 %v3834
        %4025 = vmatpush.bf16.msra.mxu0 %v3833
        %4026 = vmatpush.bf16.msra.mxu0 %v3832
        %4027 = vmatpush.bf16.msra.mxu0 %v3831
        %4028 = vmatpush.bf16.msra.mxu0 %v3830
        %4029 = vmatpush.bf16.msra.mxu0 %v3829
        %4030 = vmatmul.bf16.gmra.mxu0 %v3694
        %v4031 = vpop.f32.mrf.mxu0
        %v4032 = vadd.f32 %v3863, %v4031
        %v4033 = vpop.f32.mrf.mxu0
        %v4034 = vadd.f32 %v3865, %v4033
        %4035 = vmatmul.bf16.gmra.mxu0 %v3696
        %v4036 = vpop.f32.mrf.mxu0
        %v4037 = vadd.f32 %v3868, %v4036
        %v4038 = vpop.f32.mrf.mxu0
        %v4039 = vadd.f32 %v3870, %v4038
        %4040 = vmatmul.bf16.gmra.mxu0 %v3698
        %v4041 = vpop.f32.mrf.mxu0
        %v4042 = vadd.f32 %v3873, %v4041
        %v4043 = vpop.f32.mrf.mxu0
        %v4044 = vadd.f32 %v3875, %v4043
        %4045 = vmatmul.bf16.gmra.mxu0 %v3700
        %v4046 = vpop.f32.mrf.mxu0
        %v4047 = vadd.f32 %v3878, %v4046
        %v4048 = vpop.f32.mrf.mxu0
        %v4049 = vadd.f32 %v3880, %v4048
        %4050 = vmatmul.bf16.gmra.mxu0 %v3702
        %v4051 = vpop.f32.mrf.mxu0
        %v4052 = vadd.f32 %v3883, %v4051
        %v4053 = vpop.f32.mrf.mxu0
        %v4054 = vadd.f32 %v3885, %v4053
        %4055 = vmatmul.bf16.gmra.mxu0 %v3704
        %v4056 = vpop.f32.mrf.mxu0
        %v4057 = vadd.f32 %v3888, %v4056
        %v4058 = vpop.f32.mrf.mxu0
        %v4059 = vadd.f32 %v3890, %v4058
        %4060 = vmatmul.bf16.gmra.mxu0 %v3706
        %v4061 = vpop.f32.mrf.mxu0
        %v4062 = vadd.f32 %v3893, %v4061
        %v4063 = vpop.f32.mrf.mxu0
        %v4064 = vadd.f32 %v3895, %v4063
        %4065 = vmatmul.bf16.gmra.mxu0 %v3708
        %v4066 = vpop.f32.mrf.mxu0
        %v4067 = vadd.f32 %v3898, %v4066
        %v4068 = vpop.f32.mrf.mxu0
        %v4069 = vadd.f32 %v3900, %v4068
        %4070 = vmatmul.bf16.gmra.mxu0 %v3710
        %v4071 = vpop.f32.mrf.mxu0
        %v4072 = vadd.f32 %v3903, %v4071
        %v4073 = vpop.f32.mrf.mxu0
        %v4074 = vadd.f32 %v3905, %v4073
        %4075 = vmatmul.bf16.gmra.mxu0 %v3712
        %v4076 = vpop.f32.mrf.mxu0
        %v4077 = vadd.f32 %v3908, %v4076
        %v4078 = vpop.f32.mrf.mxu0
        %v4079 = vadd.f32 %v3910, %v4078
        %4080 = vmatmul.bf16.gmra.mxu0 %v3714
        %v4081 = vpop.f32.mrf.mxu0
        %v4082 = vadd.f32 %v3913, %v4081
        %v4083 = vpop.f32.mrf.mxu0
        %v4084 = vadd.f32 %v3915, %v4083
        %4085 = vmatmul.bf16.gmra.mxu0 %v3716
        %v4086 = vpop.f32.mrf.mxu0
        %v4087 = vadd.f32 %v3918, %v4086
        %v4088 = vpop.f32.mrf.mxu0
        %v4089 = vadd.f32 %v3920, %v4088
        %4090 = vmatmul.bf16.gmra.mxu0 %v3718
        %v4091 = vpop.f32.mrf.mxu0
        %v4092 = vadd.f32 %v3923, %v4091
        %v4093 = vpop.f32.mrf.mxu0
        %v4094 = vadd.f32 %v3925, %v4093
        %4095 = vmatmul.bf16.gmra.mxu0 %v3720
        %v4096 = vpop.f32.mrf.mxu0
        %v4097 = vadd.f32 %v3928, %v4096
        %v4098 = vpop.f32.mrf.mxu0
        %v4099 = vadd.f32 %v3930, %v4098
        %4100 = vmatmul.bf16.gmra.mxu0 %v3722
        %v4101 = vpop.f32.mrf.mxu0
        %v4102 = vadd.f32 %v3933, %v4101
        %v4103 = vpop.f32.mrf.mxu0
        %v4104 = vadd.f32 %v3935, %v4103
        %4105 = vmatmul.bf16.gmra.mxu0 %v3724
        %v4106 = vpop.f32.mrf.mxu0
        %v4107 = vadd.f32 %v3938, %v4106
        %v4108 = vpop.f32.mrf.mxu0
        %v4109 = vadd.f32 %v3940, %v4108
        %4110 = vmatmul.bf16.gmra.mxu0 %v3726
        %v4111 = vpop.f32.mrf.mxu0
        %v4112 = vadd.f32 %v3943, %v4111
        %v4113 = vpop.f32.mrf.mxu0
        %v4114 = vadd.f32 %v3945, %v4113
        %4115 = vmatmul.bf16.gmra.mxu0 %v3728
        %v4116 = vpop.f32.mrf.mxu0
        %v4117 = vadd.f32 %v3948, %v4116
        %v4118 = vpop.f32.mrf.mxu0
        %v4119 = vadd.f32 %v3950, %v4118
        %4120 = vmatmul.bf16.gmra.mxu0 %v3730
        %v4121 = vpop.f32.mrf.mxu0
        %v4122 = vadd.f32 %v3953, %v4121
        %v4123 = vpop.f32.mrf.mxu0
        %v4124 = vadd.f32 %v3955, %v4123
        %4125 = vmatmul.bf16.gmra.mxu0 %v3732
        %v4126 = vpop.f32.mrf.mxu0
        %v4127 = vadd.f32 %v3958, %v4126
        %v4128 = vpop.f32.mrf.mxu0
        %v4129 = vadd.f32 %v3960, %v4128
        %4130 = vmatmul.bf16.gmra.mxu0 %v3734
        %v4131 = vpop.f32.mrf.mxu0
        %v4132 = vadd.f32 %v3963, %v4131
        %v4133 = vpop.f32.mrf.mxu0
        %v4134 = vadd.f32 %v3965, %v4133
        %4135 = vmatmul.bf16.gmra.mxu0 %v3736
        %v4136 = vpop.f32.mrf.mxu0
        %v4137 = vadd.f32 %v3968, %v4136
        %v4138 = vpop.f32.mrf.mxu0
        %v4139 = vadd.f32 %v3970, %v4138
        %4140 = vmatmul.bf16.gmra.mxu0 %v3738
        %v4141 = vpop.f32.mrf.mxu0
        %v4142 = vadd.f32 %v3973, %v4141
        %v4143 = vpop.f32.mrf.mxu0
        %v4144 = vadd.f32 %v3975, %v4143
        %4145 = vmatmul.bf16.gmra.mxu0 %v3740
        %v4146 = vpop.f32.mrf.mxu0
        %v4147 = vadd.f32 %v3978, %v4146
        %v4148 = vpop.f32.mrf.mxu0
        %v4149 = vadd.f32 %v3980, %v4148
        %4150 = vmatmul.bf16.gmra.mxu0 %v3742
        %v4151 = vpop.f32.mrf.mxu0
        %v4152 = vadd.f32 %v3983, %v4151
        %v4153 = vpop.f32.mrf.mxu0
        %v4154 = vadd.f32 %v3985, %v4153
        %4155 = vmatmul.bf16.gmra.mxu0 %v3744
        %v4156 = vpop.f32.mrf.mxu0
        %v4157 = vadd.f32 %v3988, %v4156
        %v4158 = vpop.f32.mrf.mxu0
        %v4159 = vadd.f32 %v3990, %v4158
        %4160 = vmatmul.bf16.gmra.mxu0 %v3746
        %v4161 = vpop.f32.mrf.mxu0
        %v4162 = vadd.f32 %v3993, %v4161
        %v4163 = vpop.f32.mrf.mxu0
        %v4164 = vadd.f32 %v3995, %v4163
        %4165 = vmatmul.bf16.gmra.mxu0 %v3748
        %v4166 = vpop.f32.mrf.mxu0
        %v4167 = vadd.f32 %v3998, %v4166
        %v4168 = vpop.f32.mrf.mxu0
        %v4169 = vadd.f32 %v4000, %v4168
        %4170 = vmatmul.bf16.gmra.mxu0 %v3750
        %v4171 = vpop.f32.mrf.mxu0
        %v4172 = vadd.f32 %v4003, %v4171
        %v4173 = vpop.f32.mrf.mxu0
        %v4174 = vadd.f32 %v4005, %v4173
        %4175 = vmatmul.bf16.gmra.mxu0 %v3752
        %v4176 = vpop.f32.mrf.mxu0
        %v4177 = vadd.f32 %v4008, %v4176
        %v4178 = vpop.f32.mrf.mxu0
        %v4179 = vadd.f32 %v4010, %v4178
        %4180 = vmatmul.bf16.gmra.mxu0 %v3754
        %v4181 = vpop.f32.mrf.mxu0
        %v4182 = vadd.f32 %v4013, %v4181
        %v4183 = vpop.f32.mrf.mxu0
        %v4184 = vadd.f32 %v4015, %v4183
        %4185 = vmatmul.bf16.gmra.mxu0 %v3756
        %v4186 = vpop.f32.mrf.mxu0
        %v4187 = vadd.f32 %v4018, %v4186
        %v4188 = vpop.f32.mrf.mxu0
        %v4189 = vadd.f32 %v4020, %v4188
        %4190 = vdwg.mxu0
        %v4191 = vadd.f32 %v3629, %v4032
        %v4192 = vadd.f32 %v3630, %v4034
        %v4193 = vadd.f32 %v3631, %v4037
        %v4194 = vadd.f32 %v3632, %v4039
        %v4195 = vadd.f32 %v3633, %v4042
        %v4196 = vadd.f32 %v3634, %v4044
        %v4197 = vadd.f32 %v3635, %v4047
        %v4198 = vadd.f32 %v3636, %v4049
        %v4199 = vadd.f32 %v3637, %v4052
        %v4200 = vadd.f32 %v3638, %v4054
        %v4201 = vadd.f32 %v3639, %v4057
        %v4202 = vadd.f32 %v3640, %v4059
        %v4203 = vadd.f32 %v3641, %v4062
        %v4204 = vadd.f32 %v3642, %v4064
        %v4205 = vadd.f32 %v3643, %v4067
        %v4206 = vadd.f32 %v3644, %v4069
        %v4207 = vadd.f32 %v3645, %v4072
        %v4208 = vadd.f32 %v3646, %v4074
        %v4209 = vadd.f32 %v3647, %v4077
        %v4210 = vadd.f32 %v3648, %v4079
        %v4211 = vadd.f32 %v3649, %v4082
        %v4212 = vadd.f32 %v3650, %v4084
        %v4213 = vadd.f32 %v3651, %v4087
        %v4214 = vadd.f32 %v3652, %v4089
        %v4215 = vadd.f32 %v3653, %v4092
        %v4216 = vadd.f32 %v3654, %v4094
        %v4217 = vadd.f32 %v3655, %v4097
        %v4218 = vadd.f32 %v3656, %v4099
        %v4219 = vadd.f32 %v3657, %v4102
        %v4220 = vadd.f32 %v3658, %v4104
        %v4221 = vadd.f32 %v3659, %v4107
        %v4222 = vadd.f32 %v3660, %v4109
        %v4223 = vadd.f32 %v3661, %v4112
        %v4224 = vadd.f32 %v3662, %v4114
        %v4225 = vadd.f32 %v3663, %v4117
        %v4226 = vadd.f32 %v3664, %v4119
        %v4227 = vadd.f32 %v3665, %v4122
        %v4228 = vadd.f32 %v3666, %v4124
        %v4229 = vadd.f32 %v3667, %v4127
        %v4230 = vadd.f32 %v3668, %v4129
        %v4231 = vadd.f32 %v3669, %v4132
        %v4232 = vadd.f32 %v3670, %v4134
        %v4233 = vadd.f32 %v3671, %v4137
        %v4234 = vadd.f32 %v3672, %v4139
        %v4235 = vadd.f32 %v3673, %v4142
        %v4236 = vadd.f32 %v3674, %v4144
        %v4237 = vadd.f32 %v3675, %v4147
        %v4238 = vadd.f32 %v3676, %v4149
        %v4239 = vadd.f32 %v3677, %v4152
        %v4240 = vadd.f32 %v3678, %v4154
        %v4241 = vadd.f32 %v3679, %v4157
        %v4242 = vadd.f32 %v3680, %v4159
        %v4243 = vadd.f32 %v3681, %v4162
        %v4244 = vadd.f32 %v3682, %v4164
        %v4245 = vadd.f32 %v3683, %v4167
        %v4246 = vadd.f32 %v3684, %v4169
        %v4247 = vadd.f32 %v3685, %v4172
        %v4248 = vadd.f32 %v3686, %v4174
        %v4249 = vadd.f32 %v3687, %v4177
        %v4250 = vadd.f32 %v3688, %v4179
        %v4251 = vadd.f32 %v3689, %v4182
        %v4252 = vadd.f32 %v3690, %v4184
        %v4253 = vadd.f32 %v3691, %v4187
        %v4254 = vadd.f32 %v3692, %v4189
        %4255 = vst [vmem:[#allocation5] sm:$0xff] %v4191
        %4256 = vst [vmem:[#allocation5 + $0x8] sm:$0xff] %v4192
        %4257 = vst [vmem:[#allocation5 + $0x10] sm:$0xff] %v4193
        %4258 = vst [vmem:[#allocation5 + $0x18] sm:$0xff] %v4194
        %4259 = vst [vmem:[#allocation5 + $0x20] sm:$0xff] %v4195
        %4260 = vst [vmem:[#allocation5 + $0x28] sm:$0xff] %v4196
        %4261 = vst [vmem:[#allocation5 + $0x30] sm:$0xff] %v4197
        %4262 = vst [vmem:[#allocation5 + $0x38] sm:$0xff] %v4198
        %4263 = vst [vmem:[#allocation5 + $0x40] sm:$0xff] %v4199
        %4264 = vst [vmem:[#allocation5 + $0x48] sm:$0xff] %v4200
        %4265 = vst [vmem:[#allocation5 + $0x50] sm:$0xff] %v4201
        %4266 = vst [vmem:[#allocation5 + $0x58] sm:$0xff] %v4202
        %4267 = vst [vmem:[#allocation5 + $0x60] sm:$0xff] %v4203
        %4268 = vst [vmem:[#allocation5 + $0x68] sm:$0xff] %v4204
        %4269 = vst [vmem:[#allocation5 + $0x70] sm:$0xff] %v4205
        %4270 = vst [vmem:[#allocation5 + $0x78] sm:$0xff] %v4206
        %4271 = vst [vmem:[#allocation5 + $0x80] sm:$0xff] %v4207
        %4272 = vst [vmem:[#allocation5 + $0x88] sm:$0xff] %v4208
        %4273 = vst [vmem:[#allocation5 + $0x90] sm:$0xff] %v4209
        %4274 = vst [vmem:[#allocation5 + $0x98] sm:$0xff] %v4210
        %4275 = vst [vmem:[#allocation5 + $0xa0] sm:$0xff] %v4211
        %4276 = vst [vmem:[#allocation5 + $0xa8] sm:$0xff] %v4212
        %4277 = vst [vmem:[#allocation5 + $0xb0] sm:$0xff] %v4213
        %4278 = vst [vmem:[#allocation5 + $0xb8] sm:$0xff] %v4214
        %4279 = vst [vmem:[#allocation5 + $0xc0] sm:$0xff] %v4215
        %4280 = vst [vmem:[#allocation5 + $0xc8] sm:$0xff] %v4216
        %4281 = vst [vmem:[#allocation5 + $0xd0] sm:$0xff] %v4217
        %4282 = vst [vmem:[#allocation5 + $0xd8] sm:$0xff] %v4218
        %4283 = vst [vmem:[#allocation5 + $0xe0] sm:$0xff] %v4219
        %4284 = vst [vmem:[#allocation5 + $0xe8] sm:$0xff] %v4220
        %4285 = vst [vmem:[#allocation5 + $0xf0] sm:$0xff] %v4221
        %4286 = vst [vmem:[#allocation5 + $0xf8] sm:$0xff] %v4222
        %4287 = vst [vmem:[#allocation5 + $0x100] sm:$0xff] %v4223
        %4288 = vst [vmem:[#allocation5 + $0x108] sm:$0xff] %v4224
        %4289 = vst [vmem:[#allocation5 + $0x110] sm:$0xff] %v4225
        %4290 = vst [vmem:[#allocation5 + $0x118] sm:$0xff] %v4226
        %4291 = vst [vmem:[#allocation5 + $0x120] sm:$0xff] %v4227
        %4292 = vst [vmem:[#allocation5 + $0x128] sm:$0xff] %v4228
        %4293 = vst [vmem:[#allocation5 + $0x130] sm:$0xff] %v4229
        %4294 = vst [vmem:[#allocation5 + $0x138] sm:$0xff] %v4230
        %4295 = vst [vmem:[#allocation5 + $0x140] sm:$0xff] %v4231
        %4296 = vst [vmem:[#allocation5 + $0x148] sm:$0xff] %v4232
        %4297 = vst [vmem:[#allocation5 + $0x150] sm:$0xff] %v4233
        %4298 = vst [vmem:[#allocation5 + $0x158] sm:$0xff] %v4234
        %4299 = vst [vmem:[#allocation5 + $0x160] sm:$0xff] %v4235
        %4300 = vst [vmem:[#allocation5 + $0x168] sm:$0xff] %v4236
        %4301 = vst [vmem:[#allocation5 + $0x170] sm:$0xff] %v4237
        %4302 = vst [vmem:[#allocation5 + $0x178] sm:$0xff] %v4238
        %4303 = vst [vmem:[#allocation5 + $0x180] sm:$0xff] %v4239
        %4304 = vst [vmem:[#allocation5 + $0x188] sm:$0xff] %v4240
        %4305 = vst [vmem:[#allocation5 + $0x190] sm:$0xff] %v4241
        %4306 = vst [vmem:[#allocation5 + $0x198] sm:$0xff] %v4242
        %4307 = vst [vmem:[#allocation5 + $0x1a0] sm:$0xff] %v4243
        %4308 = vst [vmem:[#allocation5 + $0x1a8] sm:$0xff] %v4244
        %4309 = vst [vmem:[#allocation5 + $0x1b0] sm:$0xff] %v4245
        %4310 = vst [vmem:[#allocation5 + $0x1b8] sm:$0xff] %v4246
        %4311 = vst [vmem:[#allocation5 + $0x1c0] sm:$0xff] %v4247
        %4312 = vst [vmem:[#allocation5 + $0x1c8] sm:$0xff] %v4248
        %4313 = vst [vmem:[#allocation5 + $0x1d0] sm:$0xff] %v4249
        %4314 = vst [vmem:[#allocation5 + $0x1d8] sm:$0xff] %v4250
        %4315 = vst [vmem:[#allocation5 + $0x1e0] sm:$0xff] %v4251
        %4316 = vst [vmem:[#allocation5 + $0x1e8] sm:$0xff] %v4252
        %4317 = vst [vmem:[#allocation5 + $0x1f0] sm:$0xff] %v4253
        %4318 = vst [vmem:[#allocation5 + $0x1f8] sm:$0xff] %v4254
        %4319 = vst.msk [vmem:[#allocation3] sm:$0xff] %vm3180, %v1836
        %4320 = vst.msk [vmem:[#allocation3 + $0x8] sm:$0xff] %vm3180, %v1837
        %4321 = vst.msk [vmem:[#allocation3 + $0x10] sm:$0xff] %vm3180, %v1838
        %4322 = vst.msk [vmem:[#allocation3 + $0x18] sm:$0xff] %vm3180, %v1839
        %4323 = vst.msk [vmem:[#allocation3 + $0x20] sm:$0xff] %vm3180, %v1840
        %4324 = vst.msk [vmem:[#allocation3 + $0x28] sm:$0xff] %vm3180, %v1841
        %4325 = vst.msk [vmem:[#allocation3 + $0x30] sm:$0xff] %vm3180, %v1842
        %4326 = vst.msk [vmem:[#allocation3 + $0x38] sm:$0xff] %vm3180, %v1843
        %4327 = vst.msk [vmem:[#allocation3 + $0x40] sm:$0xff] %vm3180, %v1844
        %4328 = vst.msk [vmem:[#allocation3 + $0x48] sm:$0xff] %vm3180, %v1845
        %4329 = vst.msk [vmem:[#allocation3 + $0x50] sm:$0xff] %vm3180, %v1846
        %4330 = vst.msk [vmem:[#allocation3 + $0x58] sm:$0xff] %vm3180, %v1847
        %4331 = vst.msk [vmem:[#allocation3 + $0x60] sm:$0xff] %vm3180, %v1848
        %4332 = vst.msk [vmem:[#allocation3 + $0x68] sm:$0xff] %vm3180, %v1849
        %4333 = vst.msk [vmem:[#allocation3 + $0x70] sm:$0xff] %vm3180, %v1850
        %4334 = vst.msk [vmem:[#allocation3 + $0x78] sm:$0xff] %vm3180, %v1851
        %4335 = vst.msk [vmem:[#allocation3 + $0x80] sm:$0xff] %vm3180, %v1852
        %4336 = vst.msk [vmem:[#allocation3 + $0x88] sm:$0xff] %vm3180, %v1853
        %4337 = vst.msk [vmem:[#allocation3 + $0x90] sm:$0xff] %vm3180, %v1854
        %4338 = vst.msk [vmem:[#allocation3 + $0x98] sm:$0xff] %vm3180, %v1855
        %4339 = vst.msk [vmem:[#allocation3 + $0xa0] sm:$0xff] %vm3180, %v1856
        %4340 = vst.msk [vmem:[#allocation3 + $0xa8] sm:$0xff] %vm3180, %v1857
        %4341 = vst.msk [vmem:[#allocation3 + $0xb0] sm:$0xff] %vm3180, %v1858
        %4342 = vst.msk [vmem:[#allocation3 + $0xb8] sm:$0xff] %vm3180, %v1859
        %4343 = vst.msk [vmem:[#allocation3 + $0xc0] sm:$0xff] %vm3180, %v1860
        %4344 = vst.msk [vmem:[#allocation3 + $0xc8] sm:$0xff] %vm3180, %v1861
        %4345 = vst.msk [vmem:[#allocation3 + $0xd0] sm:$0xff] %vm3180, %v1862
        %4346 = vst.msk [vmem:[#allocation3 + $0xd8] sm:$0xff] %vm3180, %v1863
        %4347 = vst.msk [vmem:[#allocation3 + $0xe0] sm:$0xff] %vm3180, %v1864
        %4348 = vst.msk [vmem:[#allocation3 + $0xe8] sm:$0xff] %vm3180, %v1865
        %4349 = vst.msk [vmem:[#allocation3 + $0xf0] sm:$0xff] %vm3180, %v1866
        %4350 = vst.msk [vmem:[#allocation3 + $0xf8] sm:$0xff] %vm3180, %v1867
        %4351 = vst.msk [vmem:[#allocation3 + $0x100] sm:$0xff] %vm3180, %v1868
        %4352 = vst.msk [vmem:[#allocation3 + $0x108] sm:$0xff] %vm3180, %v1869
        %4353 = vst.msk [vmem:[#allocation3 + $0x110] sm:$0xff] %vm3180, %v1870
        %4354 = vst.msk [vmem:[#allocation3 + $0x118] sm:$0xff] %vm3180, %v1871
        %4355 = vst.msk [vmem:[#allocation3 + $0x120] sm:$0xff] %vm3180, %v1872
        %4356 = vst.msk [vmem:[#allocation3 + $0x128] sm:$0xff] %vm3180, %v1873
        %4357 = vst.msk [vmem:[#allocation3 + $0x130] sm:$0xff] %vm3180, %v1874
        %4358 = vst.msk [vmem:[#allocation3 + $0x138] sm:$0xff] %vm3180, %v1875
        %4359 = vst.msk [vmem:[#allocation3 + $0x140] sm:$0xff] %vm3180, %v1876
        %4360 = vst.msk [vmem:[#allocation3 + $0x148] sm:$0xff] %vm3180, %v1877
        %4361 = vst.msk [vmem:[#allocation3 + $0x150] sm:$0xff] %vm3180, %v1878
        %4362 = vst.msk [vmem:[#allocation3 + $0x158] sm:$0xff] %vm3180, %v1879
        %4363 = vst.msk [vmem:[#allocation3 + $0x160] sm:$0xff] %vm3180, %v1880
        %4364 = vst.msk [vmem:[#allocation3 + $0x168] sm:$0xff] %vm3180, %v1881
        %4365 = vst.msk [vmem:[#allocation3 + $0x170] sm:$0xff] %vm3180, %v1882
        %4366 = vst.msk [vmem:[#allocation3 + $0x178] sm:$0xff] %vm3180, %v1883
        %4367 = vst.msk [vmem:[#allocation3 + $0x180] sm:$0xff] %vm3180, %v1884
        %4368 = vst.msk [vmem:[#allocation3 + $0x188] sm:$0xff] %vm3180, %v1885
        %4369 = vst.msk [vmem:[#allocation3 + $0x190] sm:$0xff] %vm3180, %v1886
        %4370 = vst.msk [vmem:[#allocation3 + $0x198] sm:$0xff] %vm3180, %v1887
        %4371 = vst.msk [vmem:[#allocation3 + $0x1a0] sm:$0xff] %vm3180, %v1888
        %4372 = vst.msk [vmem:[#allocation3 + $0x1a8] sm:$0xff] %vm3180, %v1889
        %4373 = vst.msk [vmem:[#allocation3 + $0x1b0] sm:$0xff] %vm3180, %v1890
        %4374 = vst.msk [vmem:[#allocation3 + $0x1b8] sm:$0xff] %vm3180, %v1891
        %4375 = vst.msk [vmem:[#allocation3 + $0x1c0] sm:$0xff] %vm3180, %v1892
        %4376 = vst.msk [vmem:[#allocation3 + $0x1c8] sm:$0xff] %vm3180, %v1893
        %4377 = vst.msk [vmem:[#allocation3 + $0x1d0] sm:$0xff] %vm3180, %v1894
        %4378 = vst.msk [vmem:[#allocation3 + $0x1d8] sm:$0xff] %vm3180, %v1895
        %4379 = vst.msk [vmem:[#allocation3 + $0x1e0] sm:$0xff] %vm3180, %v1896
        %4380 = vst.msk [vmem:[#allocation3 + $0x1e8] sm:$0xff] %vm3180, %v1897
        %4381 = vst.msk [vmem:[#allocation3 + $0x1f0] sm:$0xff] %vm3180, %v1898
        %4382 = vst.msk [vmem:[#allocation3 + $0x1f8] sm:$0xff] %vm3180, %v1899
        %p4383 = scmp.eq.s32.totalorder %s30, 1
        // Predicated region
        $region49: #{tpu_custom_call.1} parent=31 // pred_check
          %p4384 = pneg %p4383
        $region50: #{tpu_custom_call.1} parent=31 // pred_check_branch
          %4386 = sbr.rel (%p4384) target = $region52
        $region51: #{tpu_custom_call.1} parent=31 // pred_region
          %v4387 = vld [vmem:[#allocation5] sm:$0xff]
          %v4388 = vld [vmem:[#allocation5 + $0x8] sm:$0xff]
          %v4389 = vld [vmem:[#allocation5 + $0x10] sm:$0xff]
          %v4390 = vld [vmem:[#allocation5 + $0x18] sm:$0xff]
          %v4391 = vld [vmem:[#allocation5 + $0x20] sm:$0xff]
          %v4392 = vld [vmem:[#allocation5 + $0x28] sm:$0xff]
          %v4393 = vld [vmem:[#allocation5 + $0x30] sm:$0xff]
          %v4394 = vld [vmem:[#allocation5 + $0x38] sm:$0xff]
          %v4395 = vld [vmem:[#allocation5 + $0x40] sm:$0xff]
          %v4396 = vld [vmem:[#allocation5 + $0x48] sm:$0xff]
          %v4397 = vld [vmem:[#allocation5 + $0x50] sm:$0xff]
          %v4398 = vld [vmem:[#allocation5 + $0x58] sm:$0xff]
          %v4399 = vld [vmem:[#allocation5 + $0x60] sm:$0xff]
          %v4400 = vld [vmem:[#allocation5 + $0x68] sm:$0xff]
          %v4401 = vld [vmem:[#allocation5 + $0x70] sm:$0xff]
          %v4402 = vld [vmem:[#allocation5 + $0x78] sm:$0xff]
          %v4403 = vld [vmem:[#allocation5 + $0x80] sm:$0xff]
          %v4404 = vld [vmem:[#allocation5 + $0x88] sm:$0xff]
          %v4405 = vld [vmem:[#allocation5 + $0x90] sm:$0xff]
          %v4406 = vld [vmem:[#allocation5 + $0x98] sm:$0xff]
          %v4407 = vld [vmem:[#allocation5 + $0xa0] sm:$0xff]
          %v4408 = vld [vmem:[#allocation5 + $0xa8] sm:$0xff]
          %v4409 = vld [vmem:[#allocation5 + $0xb0] sm:$0xff]
          %v4410 = vld [vmem:[#allocation5 + $0xb8] sm:$0xff]
          %v4411 = vld [vmem:[#allocation5 + $0xc0] sm:$0xff]
          %v4412 = vld [vmem:[#allocation5 + $0xc8] sm:$0xff]
          %v4413 = vld [vmem:[#allocation5 + $0xd0] sm:$0xff]
          %v4414 = vld [vmem:[#allocation5 + $0xd8] sm:$0xff]
          %v4415 = vld [vmem:[#allocation5 + $0xe0] sm:$0xff]
          %v4416 = vld [vmem:[#allocation5 + $0xe8] sm:$0xff]
          %v4417 = vld [vmem:[#allocation5 + $0xf0] sm:$0xff]
          %v4418 = vld [vmem:[#allocation5 + $0xf8] sm:$0xff]
          %v4419 = vld [vmem:[#allocation5 + $0x100] sm:$0xff]
          %v4420 = vld [vmem:[#allocation5 + $0x108] sm:$0xff]
          %v4421 = vld [vmem:[#allocation5 + $0x110] sm:$0xff]
          %v4422 = vld [vmem:[#allocation5 + $0x118] sm:$0xff]
          %v4423 = vld [vmem:[#allocation5 + $0x120] sm:$0xff]
          %v4424 = vld [vmem:[#allocation5 + $0x128] sm:$0xff]
          %v4425 = vld [vmem:[#allocation5 + $0x130] sm:$0xff]
          %v4426 = vld [vmem:[#allocation5 + $0x138] sm:$0xff]
          %v4427 = vld [vmem:[#allocation5 + $0x140] sm:$0xff]
          %v4428 = vld [vmem:[#allocation5 + $0x148] sm:$0xff]
          %v4429 = vld [vmem:[#allocation5 + $0x150] sm:$0xff]
          %v4430 = vld [vmem:[#allocation5 + $0x158] sm:$0xff]
          %v4431 = vld [vmem:[#allocation5 + $0x160] sm:$0xff]
          %v4432 = vld [vmem:[#allocation5 + $0x168] sm:$0xff]
          %v4433 = vld [vmem:[#allocation5 + $0x170] sm:$0xff]
          %v4434 = vld [vmem:[#allocation5 + $0x178] sm:$0xff]
          %v4435 = vld [vmem:[#allocation5 + $0x180] sm:$0xff]
          %v4436 = vld [vmem:[#allocation5 + $0x188] sm:$0xff]
          %v4437 = vld [vmem:[#allocation5 + $0x190] sm:$0xff]
          %v4438 = vld [vmem:[#allocation5 + $0x198] sm:$0xff]
          %v4439 = vld [vmem:[#allocation5 + $0x1a0] sm:$0xff]
          %v4440 = vld [vmem:[#allocation5 + $0x1a8] sm:$0xff]
          %v4441 = vld [vmem:[#allocation5 + $0x1b0] sm:$0xff]
          %v4442 = vld [vmem:[#allocation5 + $0x1b8] sm:$0xff]
          %v4443 = vld [vmem:[#allocation5 + $0x1c0] sm:$0xff]
          %v4444 = vld [vmem:[#allocation5 + $0x1c8] sm:$0xff]
          %v4445 = vld [vmem:[#allocation5 + $0x1d0] sm:$0xff]
          %v4446 = vld [vmem:[#allocation5 + $0x1d8] sm:$0xff]
          %v4447 = vld [vmem:[#allocation5 + $0x1e0] sm:$0xff]
          %v4448 = vld [vmem:[#allocation5 + $0x1e8] sm:$0xff]
          %v4449 = vld [vmem:[#allocation5 + $0x1f0] sm:$0xff]
          %v4450 = vld [vmem:[#allocation5 + $0x1f8] sm:$0xff]
          %v4451 = vld [vmem:[#allocation4] sm:$0xff]
          %v4452 = vld [vmem:[#allocation4 + $0x8] sm:$0xff]
          %v4453 = vld [vmem:[#allocation4 + $0x10] sm:$0xff]
          %v4454 = vld [vmem:[#allocation4 + $0x18] sm:$0xff]
          %v4455 = vld [vmem:[#allocation4 + $0x20] sm:$0xff]
          %v4456 = vld [vmem:[#allocation4 + $0x28] sm:$0xff]
          %v4457 = vld [vmem:[#allocation4 + $0x30] sm:$0xff]
          %v4458 = vld [vmem:[#allocation4 + $0x38] sm:$0xff]
          %v4459 = vld [vmem:[#allocation4 + $0x40] sm:$0xff]
          %v4460 = vld [vmem:[#allocation4 + $0x48] sm:$0xff]
          %v4461 = vld [vmem:[#allocation4 + $0x50] sm:$0xff]
          %v4462 = vld [vmem:[#allocation4 + $0x58] sm:$0xff]
          %v4463 = vld [vmem:[#allocation4 + $0x60] sm:$0xff]
          %v4464 = vld [vmem:[#allocation4 + $0x68] sm:$0xff]
          %v4465 = vld [vmem:[#allocation4 + $0x70] sm:$0xff]
          %v4466 = vld [vmem:[#allocation4 + $0x78] sm:$0xff]
          %v4467 = vld [vmem:[#allocation4 + $0x80] sm:$0xff]
          %v4468 = vld [vmem:[#allocation4 + $0x88] sm:$0xff]
          %v4469 = vld [vmem:[#allocation4 + $0x90] sm:$0xff]
          %v4470 = vld [vmem:[#allocation4 + $0x98] sm:$0xff]
          %v4471 = vld [vmem:[#allocation4 + $0xa0] sm:$0xff]
          %v4472 = vld [vmem:[#allocation4 + $0xa8] sm:$0xff]
          %v4473 = vld [vmem:[#allocation4 + $0xb0] sm:$0xff]
          %v4474 = vld [vmem:[#allocation4 + $0xb8] sm:$0xff]
          %v4475 = vld [vmem:[#allocation4 + $0xc0] sm:$0xff]
          %v4476 = vld [vmem:[#allocation4 + $0xc8] sm:$0xff]
          %v4477 = vld [vmem:[#allocation4 + $0xd0] sm:$0xff]
          %v4478 = vld [vmem:[#allocation4 + $0xd8] sm:$0xff]
          %v4479 = vld [vmem:[#allocation4 + $0xe0] sm:$0xff]
          %v4480 = vld [vmem:[#allocation4 + $0xe8] sm:$0xff]
          %v4481 = vld [vmem:[#allocation4 + $0xf0] sm:$0xff]
          %v4482 = vld [vmem:[#allocation4 + $0xf8] sm:$0xff]
          %v4483 = vld [vmem:[#allocation4 + $0x100] sm:$0xff]
          %v4484 = vld [vmem:[#allocation4 + $0x108] sm:$0xff]
          %v4485 = vld [vmem:[#allocation4 + $0x110] sm:$0xff]
          %v4486 = vld [vmem:[#allocation4 + $0x118] sm:$0xff]
          %v4487 = vld [vmem:[#allocation4 + $0x120] sm:$0xff]
          %v4488 = vld [vmem:[#allocation4 + $0x128] sm:$0xff]
          %v4489 = vld [vmem:[#allocation4 + $0x130] sm:$0xff]
          %v4490 = vld [vmem:[#allocation4 + $0x138] sm:$0xff]
          %v4491 = vld [vmem:[#allocation4 + $0x140] sm:$0xff]
          %v4492 = vld [vmem:[#allocation4 + $0x148] sm:$0xff]
          %v4493 = vld [vmem:[#allocation4 + $0x150] sm:$0xff]
          %v4494 = vld [vmem:[#allocation4 + $0x158] sm:$0xff]
          %v4495 = vld [vmem:[#allocation4 + $0x160] sm:$0xff]
          %v4496 = vld [vmem:[#allocation4 + $0x168] sm:$0xff]
          %v4497 = vld [vmem:[#allocation4 + $0x170] sm:$0xff]
          %v4498 = vld [vmem:[#allocation4 + $0x178] sm:$0xff]
          %v4499 = vld [vmem:[#allocation4 + $0x180] sm:$0xff]
          %v4500 = vld [vmem:[#allocation4 + $0x188] sm:$0xff]
          %v4501 = vld [vmem:[#allocation4 + $0x190] sm:$0xff]
          %v4502 = vld [vmem:[#allocation4 + $0x198] sm:$0xff]
          %v4503 = vld [vmem:[#allocation4 + $0x1a0] sm:$0xff]
          %v4504 = vld [vmem:[#allocation4 + $0x1a8] sm:$0xff]
          %v4505 = vld [vmem:[#allocation4 + $0x1b0] sm:$0xff]
          %v4506 = vld [vmem:[#allocation4 + $0x1b8] sm:$0xff]
          %v4507 = vld [vmem:[#allocation4 + $0x1c0] sm:$0xff]
          %v4508 = vld [vmem:[#allocation4 + $0x1c8] sm:$0xff]
          %v4509 = vld [vmem:[#allocation4 + $0x1d0] sm:$0xff]
          %v4510 = vld [vmem:[#allocation4 + $0x1d8] sm:$0xff]
          %v4511 = vld [vmem:[#allocation4 + $0x1e0] sm:$0xff]
          %v4512 = vld [vmem:[#allocation4 + $0x1e8] sm:$0xff]
          %v4513 = vld [vmem:[#allocation4 + $0x1f0] sm:$0xff]
          %v4514 = vld [vmem:[#allocation4 + $0x1f8] sm:$0xff]
          %4516 = vset.pattern.permute.xlu0 0
          %4517 = vperm.xlu0 %4516, %v4451
          %v4518 = vpop.permute.xlu0 %4517
          %4521 = vset.pattern.permute.xlu0 0
          %4522 = vperm.xlu0 %4521, %v4452
          %v4523 = vpop.permute.xlu0 %4522
          %4526 = vset.pattern.permute.xlu0 0
          %4527 = vperm.xlu0 %4526, %v4453
          %v4528 = vpop.permute.xlu0 %4527
          %4531 = vset.pattern.permute.xlu0 0
          %4532 = vperm.xlu0 %4531, %v4454
          %v4533 = vpop.permute.xlu0 %4532
          %4536 = vset.pattern.permute.xlu0 0
          %4537 = vperm.xlu0 %4536, %v4455
          %v4538 = vpop.permute.xlu0 %4537
          %4541 = vset.pattern.permute.xlu0 0
          %4542 = vperm.xlu0 %4541, %v4456
          %v4543 = vpop.permute.xlu0 %4542
          %4546 = vset.pattern.permute.xlu0 0
          %4547 = vperm.xlu0 %4546, %v4457
          %v4548 = vpop.permute.xlu0 %4547
          %4551 = vset.pattern.permute.xlu0 0
          %4552 = vperm.xlu0 %4551, %v4458
          %v4553 = vpop.permute.xlu0 %4552
          %4556 = vset.pattern.permute.xlu0 0
          %4557 = vperm.xlu0 %4556, %v4459
          %v4558 = vpop.permute.xlu0 %4557
          %4561 = vset.pattern.permute.xlu0 0
          %4562 = vperm.xlu0 %4561, %v4460
          %v4563 = vpop.permute.xlu0 %4562
          %4566 = vset.pattern.permute.xlu0 0
          %4567 = vperm.xlu0 %4566, %v4461
          %v4568 = vpop.permute.xlu0 %4567
          %4571 = vset.pattern.permute.xlu0 0
          %4572 = vperm.xlu0 %4571, %v4462
          %v4573 = vpop.permute.xlu0 %4572
          %4576 = vset.pattern.permute.xlu0 0
          %4577 = vperm.xlu0 %4576, %v4463
          %v4578 = vpop.permute.xlu0 %4577
          %4581 = vset.pattern.permute.xlu0 0
          %4582 = vperm.xlu0 %4581, %v4464
          %v4583 = vpop.permute.xlu0 %4582
          %4586 = vset.pattern.permute.xlu0 0
          %4587 = vperm.xlu0 %4586, %v4465
          %v4588 = vpop.permute.xlu0 %4587
          %4591 = vset.pattern.permute.xlu0 0
          %4592 = vperm.xlu0 %4591, %v4466
          %v4593 = vpop.permute.xlu0 %4592
          %4596 = vset.pattern.permute.xlu0 0
          %4597 = vperm.xlu0 %4596, %v4467
          %v4598 = vpop.permute.xlu0 %4597
          %4601 = vset.pattern.permute.xlu0 0
          %4602 = vperm.xlu0 %4601, %v4468
          %v4603 = vpop.permute.xlu0 %4602
          %4606 = vset.pattern.permute.xlu0 0
          %4607 = vperm.xlu0 %4606, %v4469
          %v4608 = vpop.permute.xlu0 %4607
          %4611 = vset.pattern.permute.xlu0 0
          %4612 = vperm.xlu0 %4611, %v4470
          %v4613 = vpop.permute.xlu0 %4612
          %4616 = vset.pattern.permute.xlu0 0
          %4617 = vperm.xlu0 %4616, %v4471
          %v4618 = vpop.permute.xlu0 %4617
          %4621 = vset.pattern.permute.xlu0 0
          %4622 = vperm.xlu0 %4621, %v4472
          %v4623 = vpop.permute.xlu0 %4622
          %4626 = vset.pattern.permute.xlu0 0
          %4627 = vperm.xlu0 %4626, %v4473
          %v4628 = vpop.permute.xlu0 %4627
          %4631 = vset.pattern.permute.xlu0 0
          %4632 = vperm.xlu0 %4631, %v4474
          %v4633 = vpop.permute.xlu0 %4632
          %4636 = vset.pattern.permute.xlu0 0
          %4637 = vperm.xlu0 %4636, %v4475
          %v4638 = vpop.permute.xlu0 %4637
          %4641 = vset.pattern.permute.xlu0 0
          %4642 = vperm.xlu0 %4641, %v4476
          %v4643 = vpop.permute.xlu0 %4642
          %4646 = vset.pattern.permute.xlu0 0
          %4647 = vperm.xlu0 %4646, %v4477
          %v4648 = vpop.permute.xlu0 %4647
          %4651 = vset.pattern.permute.xlu0 0
          %4652 = vperm.xlu0 %4651, %v4478
          %v4653 = vpop.permute.xlu0 %4652
          %4656 = vset.pattern.permute.xlu0 0
          %4657 = vperm.xlu0 %4656, %v4479
          %v4658 = vpop.permute.xlu0 %4657
          %4661 = vset.pattern.permute.xlu0 0
          %4662 = vperm.xlu0 %4661, %v4480
          %v4663 = vpop.permute.xlu0 %4662
          %4666 = vset.pattern.permute.xlu0 0
          %4667 = vperm.xlu0 %4666, %v4481
          %v4668 = vpop.permute.xlu0 %4667
          %4671 = vset.pattern.permute.xlu0 0
          %4672 = vperm.xlu0 %4671, %v4482
          %v4673 = vpop.permute.xlu0 %4672
          %4676 = vset.pattern.permute.xlu0 0
          %4677 = vperm.xlu0 %4676, %v4483
          %v4678 = vpop.permute.xlu0 %4677
          %4681 = vset.pattern.permute.xlu0 0
          %4682 = vperm.xlu0 %4681, %v4484
          %v4683 = vpop.permute.xlu0 %4682
          %4686 = vset.pattern.permute.xlu0 0
          %4687 = vperm.xlu0 %4686, %v4485
          %v4688 = vpop.permute.xlu0 %4687
          %4691 = vset.pattern.permute.xlu0 0
          %4692 = vperm.xlu0 %4691, %v4486
          %v4693 = vpop.permute.xlu0 %4692
          %4696 = vset.pattern.permute.xlu0 0
          %4697 = vperm.xlu0 %4696, %v4487
          %v4698 = vpop.permute.xlu0 %4697
          %4701 = vset.pattern.permute.xlu0 0
          %4702 = vperm.xlu0 %4701, %v4488
          %v4703 = vpop.permute.xlu0 %4702
          %4706 = vset.pattern.permute.xlu0 0
          %4707 = vperm.xlu0 %4706, %v4489
          %v4708 = vpop.permute.xlu0 %4707
          %4711 = vset.pattern.permute.xlu0 0
          %4712 = vperm.xlu0 %4711, %v4490
          %v4713 = vpop.permute.xlu0 %4712
          %4716 = vset.pattern.permute.xlu0 0
          %4717 = vperm.xlu0 %4716, %v4491
          %v4718 = vpop.permute.xlu0 %4717
          %4721 = vset.pattern.permute.xlu0 0
          %4722 = vperm.xlu0 %4721, %v4492
          %v4723 = vpop.permute.xlu0 %4722
          %4726 = vset.pattern.permute.xlu0 0
          %4727 = vperm.xlu0 %4726, %v4493
          %v4728 = vpop.permute.xlu0 %4727
          %4731 = vset.pattern.permute.xlu0 0
          %4732 = vperm.xlu0 %4731, %v4494
          %v4733 = vpop.permute.xlu0 %4732
          %4736 = vset.pattern.permute.xlu0 0
          %4737 = vperm.xlu0 %4736, %v4495
          %v4738 = vpop.permute.xlu0 %4737
          %4741 = vset.pattern.permute.xlu0 0
          %4742 = vperm.xlu0 %4741, %v4496
          %v4743 = vpop.permute.xlu0 %4742
          %4746 = vset.pattern.permute.xlu0 0
          %4747 = vperm.xlu0 %4746, %v4497
          %v4748 = vpop.permute.xlu0 %4747
          %4751 = vset.pattern.permute.xlu0 0
          %4752 = vperm.xlu0 %4751, %v4498
          %v4753 = vpop.permute.xlu0 %4752
          %4756 = vset.pattern.permute.xlu0 0
          %4757 = vperm.xlu0 %4756, %v4499
          %v4758 = vpop.permute.xlu0 %4757
          %4761 = vset.pattern.permute.xlu0 0
          %4762 = vperm.xlu0 %4761, %v4500
          %v4763 = vpop.permute.xlu0 %4762
          %4766 = vset.pattern.permute.xlu0 0
          %4767 = vperm.xlu0 %4766, %v4501
          %v4768 = vpop.permute.xlu0 %4767
          %4771 = vset.pattern.permute.xlu0 0
          %4772 = vperm.xlu0 %4771, %v4502
          %v4773 = vpop.permute.xlu0 %4772
          %4776 = vset.pattern.permute.xlu0 0
          %4777 = vperm.xlu0 %4776, %v4503
          %v4778 = vpop.permute.xlu0 %4777
          %4781 = vset.pattern.permute.xlu0 0
          %4782 = vperm.xlu0 %4781, %v4504
          %v4783 = vpop.permute.xlu0 %4782
          %4786 = vset.pattern.permute.xlu0 0
          %4787 = vperm.xlu0 %4786, %v4505
          %v4788 = vpop.permute.xlu0 %4787
          %4791 = vset.pattern.permute.xlu0 0
          %4792 = vperm.xlu0 %4791, %v4506
          %v4793 = vpop.permute.xlu0 %4792
          %4796 = vset.pattern.permute.xlu0 0
          %4797 = vperm.xlu0 %4796, %v4507
          %v4798 = vpop.permute.xlu0 %4797
          %4801 = vset.pattern.permute.xlu0 0
          %4802 = vperm.xlu0 %4801, %v4508
          %v4803 = vpop.permute.xlu0 %4802
          %4806 = vset.pattern.permute.xlu0 0
          %4807 = vperm.xlu0 %4806, %v4509
          %v4808 = vpop.permute.xlu0 %4807
          %4811 = vset.pattern.permute.xlu0 0
          %4812 = vperm.xlu0 %4811, %v4510
          %v4813 = vpop.permute.xlu0 %4812
          %4816 = vset.pattern.permute.xlu0 0
          %4817 = vperm.xlu0 %4816, %v4511
          %v4818 = vpop.permute.xlu0 %4817
          %4821 = vset.pattern.permute.xlu0 0
          %4822 = vperm.xlu0 %4821, %v4512
          %v4823 = vpop.permute.xlu0 %4822
          %4826 = vset.pattern.permute.xlu0 0
          %4827 = vperm.xlu0 %4826, %v4513
          %v4828 = vpop.permute.xlu0 %4827
          %4831 = vset.pattern.permute.xlu0 0
          %4832 = vperm.xlu0 %4831, %v4514
          %v4833 = vpop.permute.xlu0 %4832
          %v4835 = vrcp.pop %v4518
          %v4836 = vmul.f32 %v4518, %v4835
          %v4837 = vsub.f32 1.0, %v4836
          %v4838 = vmul.f32 %v4835, %v4837
          %v4839 = vadd.f32 %v4835, %v4838
          %vm4840 = vweird.f32 %v4518
          %vm4841 = vweird.f32 %v4835
          %vm4842 = vmor %vm4840, %vm4841
          %v4843 = vsel %vm4842, %v4835, %v4839
          %v4844 = vand.u32 2147483647, %v4518
          %vm4845 = vcmp.eq.f32.partialorder %v4844, 8.507059e+37
          %v4846 = vand.u32 %v4518, 2147483648
          %v4847 = vor.u32 1.1754944e-38, %v4846
          %v4848 = vsel %vm4845, %v4847, %v4843
          %v4849 = vmul.f32 %v4387, %v4848
          %v4850 = vrcp.pop %v4523
          %v4851 = vmul.f32 %v4523, %v4850
          %v4852 = vsub.f32 1.0, %v4851
          %v4853 = vmul.f32 %v4850, %v4852
          %v4854 = vadd.f32 %v4850, %v4853
          %vm4855 = vweird.f32 %v4523
          %vm4856 = vweird.f32 %v4850
          %vm4857 = vmor %vm4855, %vm4856
          %v4858 = vsel %vm4857, %v4850, %v4854
          %v4859 = vand.u32 2147483647, %v4523
          %vm4860 = vcmp.eq.f32.partialorder %v4859, 8.507059e+37
          %v4861 = vand.u32 %v4523, 2147483648
          %v4862 = vor.u32 1.1754944e-38, %v4861
          %v4863 = vsel %vm4860, %v4862, %v4858
          %v4864 = vmul.f32 %v4388, %v4863
          %v4865 = vrcp.pop %v4528
          %v4866 = vmul.f32 %v4528, %v4865
          %v4867 = vsub.f32 1.0, %v4866
          %v4868 = vmul.f32 %v4865, %v4867
          %v4869 = vadd.f32 %v4865, %v4868
          %vm4870 = vweird.f32 %v4528
          %vm4871 = vweird.f32 %v4865
          %vm4872 = vmor %vm4870, %vm4871
          %v4873 = vsel %vm4872, %v4865, %v4869
          %v4874 = vand.u32 2147483647, %v4528
          %vm4875 = vcmp.eq.f32.partialorder %v4874, 8.507059e+37
          %v4876 = vand.u32 %v4528, 2147483648
          %v4877 = vor.u32 1.1754944e-38, %v4876
          %v4878 = vsel %vm4875, %v4877, %v4873
          %v4879 = vmul.f32 %v4389, %v4878
          %v4880 = vrcp.pop %v4533
          %v4881 = vmul.f32 %v4533, %v4880
          %v4882 = vsub.f32 1.0, %v4881
          %v4883 = vmul.f32 %v4880, %v4882
          %v4884 = vadd.f32 %v4880, %v4883
          %vm4885 = vweird.f32 %v4533
          %vm4886 = vweird.f32 %v4880
          %vm4887 = vmor %vm4885, %vm4886
          %v4888 = vsel %vm4887, %v4880, %v4884
          %v4889 = vand.u32 2147483647, %v4533
          %vm4890 = vcmp.eq.f32.partialorder %v4889, 8.507059e+37
          %v4891 = vand.u32 %v4533, 2147483648
          %v4892 = vor.u32 1.1754944e-38, %v4891
          %v4893 = vsel %vm4890, %v4892, %v4888
          %v4894 = vmul.f32 %v4390, %v4893
          %v4895 = vrcp.pop %v4538
          %v4896 = vmul.f32 %v4538, %v4895
          %v4897 = vsub.f32 1.0, %v4896
          %v4898 = vmul.f32 %v4895, %v4897
          %v4899 = vadd.f32 %v4895, %v4898
          %vm4900 = vweird.f32 %v4538
          %vm4901 = vweird.f32 %v4895
          %vm4902 = vmor %vm4900, %vm4901
          %v4903 = vsel %vm4902, %v4895, %v4899
          %v4904 = vand.u32 2147483647, %v4538
          %vm4905 = vcmp.eq.f32.partialorder %v4904, 8.507059e+37
          %v4906 = vand.u32 %v4538, 2147483648
          %v4907 = vor.u32 1.1754944e-38, %v4906
          %v4908 = vsel %vm4905, %v4907, %v4903
          %v4909 = vmul.f32 %v4391, %v4908
          %v4910 = vrcp.pop %v4543
          %v4911 = vmul.f32 %v4543, %v4910
          %v4912 = vsub.f32 1.0, %v4911
          %v4913 = vmul.f32 %v4910, %v4912
          %v4914 = vadd.f32 %v4910, %v4913
          %vm4915 = vweird.f32 %v4543
          %vm4916 = vweird.f32 %v4910
          %vm4917 = vmor %vm4915, %vm4916
          %v4918 = vsel %vm4917, %v4910, %v4914
          %v4919 = vand.u32 2147483647, %v4543
          %vm4920 = vcmp.eq.f32.partialorder %v4919, 8.507059e+37
          %v4921 = vand.u32 %v4543, 2147483648
          %v4922 = vor.u32 1.1754944e-38, %v4921
          %v4923 = vsel %vm4920, %v4922, %v4918
          %v4924 = vmul.f32 %v4392, %v4923
          %v4925 = vrcp.pop %v4548
          %v4926 = vmul.f32 %v4548, %v4925
          %v4927 = vsub.f32 1.0, %v4926
          %v4928 = vmul.f32 %v4925, %v4927
          %v4929 = vadd.f32 %v4925, %v4928
          %vm4930 = vweird.f32 %v4548
          %vm4931 = vweird.f32 %v4925
          %vm4932 = vmor %vm4930, %vm4931
          %v4933 = vsel %vm4932, %v4925, %v4929
          %v4934 = vand.u32 2147483647, %v4548
          %vm4935 = vcmp.eq.f32.partialorder %v4934, 8.507059e+37
          %v4936 = vand.u32 %v4548, 2147483648
          %v4937 = vor.u32 1.1754944e-38, %v4936
          %v4938 = vsel %vm4935, %v4937, %v4933
          %v4939 = vmul.f32 %v4393, %v4938
          %v4940 = vrcp.pop %v4553
          %v4941 = vmul.f32 %v4553, %v4940
          %v4942 = vsub.f32 1.0, %v4941
          %v4943 = vmul.f32 %v4940, %v4942
          %v4944 = vadd.f32 %v4940, %v4943
          %vm4945 = vweird.f32 %v4553
          %vm4946 = vweird.f32 %v4940
          %vm4947 = vmor %vm4945, %vm4946
          %v4948 = vsel %vm4947, %v4940, %v4944
          %v4949 = vand.u32 2147483647, %v4553
          %vm4950 = vcmp.eq.f32.partialorder %v4949, 8.507059e+37
          %v4951 = vand.u32 %v4553, 2147483648
          %v4952 = vor.u32 1.1754944e-38, %v4951
          %v4953 = vsel %vm4950, %v4952, %v4948
          %v4954 = vmul.f32 %v4394, %v4953
          %v4955 = vrcp.pop %v4558
          %v4956 = vmul.f32 %v4558, %v4955
          %v4957 = vsub.f32 1.0, %v4956
          %v4958 = vmul.f32 %v4955, %v4957
          %v4959 = vadd.f32 %v4955, %v4958
          %vm4960 = vweird.f32 %v4558
          %vm4961 = vweird.f32 %v4955
          %vm4962 = vmor %vm4960, %vm4961
          %v4963 = vsel %vm4962, %v4955, %v4959
          %v4964 = vand.u32 2147483647, %v4558
          %vm4965 = vcmp.eq.f32.partialorder %v4964, 8.507059e+37
          %v4966 = vand.u32 %v4558, 2147483648
          %v4967 = vor.u32 1.1754944e-38, %v4966
          %v4968 = vsel %vm4965, %v4967, %v4963
          %v4969 = vmul.f32 %v4395, %v4968
          %v4970 = vrcp.pop %v4563
          %v4971 = vmul.f32 %v4563, %v4970
          %v4972 = vsub.f32 1.0, %v4971
          %v4973 = vmul.f32 %v4970, %v4972
          %v4974 = vadd.f32 %v4970, %v4973
          %vm4975 = vweird.f32 %v4563
          %vm4976 = vweird.f32 %v4970
          %vm4977 = vmor %vm4975, %vm4976
          %v4978 = vsel %vm4977, %v4970, %v4974
          %v4979 = vand.u32 2147483647, %v4563
          %vm4980 = vcmp.eq.f32.partialorder %v4979, 8.507059e+37
          %v4981 = vand.u32 %v4563, 2147483648
          %v4982 = vor.u32 1.1754944e-38, %v4981
          %v4983 = vsel %vm4980, %v4982, %v4978
          %v4984 = vmul.f32 %v4396, %v4983
          %v4985 = vrcp.pop %v4568
          %v4986 = vmul.f32 %v4568, %v4985
          %v4987 = vsub.f32 1.0, %v4986
          %v4988 = vmul.f32 %v4985, %v4987
          %v4989 = vadd.f32 %v4985, %v4988
          %vm4990 = vweird.f32 %v4568
          %vm4991 = vweird.f32 %v4985
          %vm4992 = vmor %vm4990, %vm4991
          %v4993 = vsel %vm4992, %v4985, %v4989
          %v4994 = vand.u32 2147483647, %v4568
          %vm4995 = vcmp.eq.f32.partialorder %v4994, 8.507059e+37
          %v4996 = vand.u32 %v4568, 2147483648
          %v4997 = vor.u32 1.1754944e-38, %v4996
          %v4998 = vsel %vm4995, %v4997, %v4993
          %v4999 = vmul.f32 %v4397, %v4998
          %v5000 = vrcp.pop %v4573
          %v5001 = vmul.f32 %v4573, %v5000
          %v5002 = vsub.f32 1.0, %v5001
          %v5003 = vmul.f32 %v5000, %v5002
          %v5004 = vadd.f32 %v5000, %v5003
          %vm5005 = vweird.f32 %v4573
          %vm5006 = vweird.f32 %v5000
          %vm5007 = vmor %vm5005, %vm5006
          %v5008 = vsel %vm5007, %v5000, %v5004
          %v5009 = vand.u32 2147483647, %v4573
          %vm5010 = vcmp.eq.f32.partialorder %v5009, 8.507059e+37
          %v5011 = vand.u32 %v4573, 2147483648
          %v5012 = vor.u32 1.1754944e-38, %v5011
          %v5013 = vsel %vm5010, %v5012, %v5008
          %v5014 = vmul.f32 %v4398, %v5013
          %v5015 = vrcp.pop %v4578
          %v5016 = vmul.f32 %v4578, %v5015
          %v5017 = vsub.f32 1.0, %v5016
          %v5018 = vmul.f32 %v5015, %v5017
          %v5019 = vadd.f32 %v5015, %v5018
          %vm5020 = vweird.f32 %v4578
          %vm5021 = vweird.f32 %v5015
          %vm5022 = vmor %vm5020, %vm5021
          %v5023 = vsel %vm5022, %v5015, %v5019
          %v5024 = vand.u32 2147483647, %v4578
          %vm5025 = vcmp.eq.f32.partialorder %v5024, 8.507059e+37
          %v5026 = vand.u32 %v4578, 2147483648
          %v5027 = vor.u32 1.1754944e-38, %v5026
          %v5028 = vsel %vm5025, %v5027, %v5023
          %v5029 = vmul.f32 %v4399, %v5028
          %v5030 = vrcp.pop %v4583
          %v5031 = vmul.f32 %v4583, %v5030
          %v5032 = vsub.f32 1.0, %v5031
          %v5033 = vmul.f32 %v5030, %v5032
          %v5034 = vadd.f32 %v5030, %v5033
          %vm5035 = vweird.f32 %v4583
          %vm5036 = vweird.f32 %v5030
          %vm5037 = vmor %vm5035, %vm5036
          %v5038 = vsel %vm5037, %v5030, %v5034
          %v5039 = vand.u32 2147483647, %v4583
          %vm5040 = vcmp.eq.f32.partialorder %v5039, 8.507059e+37
          %v5041 = vand.u32 %v4583, 2147483648
          %v5042 = vor.u32 1.1754944e-38, %v5041
          %v5043 = vsel %vm5040, %v5042, %v5038
          %v5044 = vmul.f32 %v4400, %v5043
          %v5045 = vrcp.pop %v4588
          %v5046 = vmul.f32 %v4588, %v5045
          %v5047 = vsub.f32 1.0, %v5046
          %v5048 = vmul.f32 %v5045, %v5047
          %v5049 = vadd.f32 %v5045, %v5048
          %vm5050 = vweird.f32 %v4588
          %vm5051 = vweird.f32 %v5045
          %vm5052 = vmor %vm5050, %vm5051
          %v5053 = vsel %vm5052, %v5045, %v5049
          %v5054 = vand.u32 2147483647, %v4588
          %vm5055 = vcmp.eq.f32.partialorder %v5054, 8.507059e+37
          %v5056 = vand.u32 %v4588, 2147483648
          %v5057 = vor.u32 1.1754944e-38, %v5056
          %v5058 = vsel %vm5055, %v5057, %v5053
          %v5059 = vmul.f32 %v4401, %v5058
          %v5060 = vrcp.pop %v4593
          %v5061 = vmul.f32 %v4593, %v5060
          %v5062 = vsub.f32 1.0, %v5061
          %v5063 = vmul.f32 %v5060, %v5062
          %v5064 = vadd.f32 %v5060, %v5063
          %vm5065 = vweird.f32 %v4593
          %vm5066 = vweird.f32 %v5060
          %vm5067 = vmor %vm5065, %vm5066
          %v5068 = vsel %vm5067, %v5060, %v5064
          %v5069 = vand.u32 2147483647, %v4593
          %vm5070 = vcmp.eq.f32.partialorder %v5069, 8.507059e+37
          %v5071 = vand.u32 %v4593, 2147483648
          %v5072 = vor.u32 1.1754944e-38, %v5071
          %v5073 = vsel %vm5070, %v5072, %v5068
          %v5074 = vmul.f32 %v4402, %v5073
          %v5075 = vrcp.pop %v4598
          %v5076 = vmul.f32 %v4598, %v5075
          %v5077 = vsub.f32 1.0, %v5076
          %v5078 = vmul.f32 %v5075, %v5077
          %v5079 = vadd.f32 %v5075, %v5078
          %vm5080 = vweird.f32 %v4598
          %vm5081 = vweird.f32 %v5075
          %vm5082 = vmor %vm5080, %vm5081
          %v5083 = vsel %vm5082, %v5075, %v5079
          %v5084 = vand.u32 2147483647, %v4598
          %vm5085 = vcmp.eq.f32.partialorder %v5084, 8.507059e+37
          %v5086 = vand.u32 %v4598, 2147483648
          %v5087 = vor.u32 1.1754944e-38, %v5086
          %v5088 = vsel %vm5085, %v5087, %v5083
          %v5089 = vmul.f32 %v4403, %v5088
          %v5090 = vrcp.pop %v4603
          %v5091 = vmul.f32 %v4603, %v5090
          %v5092 = vsub.f32 1.0, %v5091
          %v5093 = vmul.f32 %v5090, %v5092
          %v5094 = vadd.f32 %v5090, %v5093
          %vm5095 = vweird.f32 %v4603
          %vm5096 = vweird.f32 %v5090
          %vm5097 = vmor %vm5095, %vm5096
          %v5098 = vsel %vm5097, %v5090, %v5094
          %v5099 = vand.u32 2147483647, %v4603
          %vm5100 = vcmp.eq.f32.partialorder %v5099, 8.507059e+37
          %v5101 = vand.u32 %v4603, 2147483648
          %v5102 = vor.u32 1.1754944e-38, %v5101
          %v5103 = vsel %vm5100, %v5102, %v5098
          %v5104 = vmul.f32 %v4404, %v5103
          %v5105 = vrcp.pop %v4608
          %v5106 = vmul.f32 %v4608, %v5105
          %v5107 = vsub.f32 1.0, %v5106
          %v5108 = vmul.f32 %v5105, %v5107
          %v5109 = vadd.f32 %v5105, %v5108
          %vm5110 = vweird.f32 %v4608
          %vm5111 = vweird.f32 %v5105
          %vm5112 = vmor %vm5110, %vm5111
          %v5113 = vsel %vm5112, %v5105, %v5109
          %v5114 = vand.u32 2147483647, %v4608
          %vm5115 = vcmp.eq.f32.partialorder %v5114, 8.507059e+37
          %v5116 = vand.u32 %v4608, 2147483648
          %v5117 = vor.u32 1.1754944e-38, %v5116
          %v5118 = vsel %vm5115, %v5117, %v5113
          %v5119 = vmul.f32 %v4405, %v5118
          %v5120 = vrcp.pop %v4613
          %v5121 = vmul.f32 %v4613, %v5120
          %v5122 = vsub.f32 1.0, %v5121
          %v5123 = vmul.f32 %v5120, %v5122
          %v5124 = vadd.f32 %v5120, %v5123
          %vm5125 = vweird.f32 %v4613
          %vm5126 = vweird.f32 %v5120
          %vm5127 = vmor %vm5125, %vm5126
          %v5128 = vsel %vm5127, %v5120, %v5124
          %v5129 = vand.u32 2147483647, %v4613
          %vm5130 = vcmp.eq.f32.partialorder %v5129, 8.507059e+37
          %v5131 = vand.u32 %v4613, 2147483648
          %v5132 = vor.u32 1.1754944e-38, %v5131
          %v5133 = vsel %vm5130, %v5132, %v5128
          %v5134 = vmul.f32 %v4406, %v5133
          %v5135 = vrcp.pop %v4618
          %v5136 = vmul.f32 %v4618, %v5135
          %v5137 = vsub.f32 1.0, %v5136
          %v5138 = vmul.f32 %v5135, %v5137
          %v5139 = vadd.f32 %v5135, %v5138
          %vm5140 = vweird.f32 %v4618
          %vm5141 = vweird.f32 %v5135
          %vm5142 = vmor %vm5140, %vm5141
          %v5143 = vsel %vm5142, %v5135, %v5139
          %v5144 = vand.u32 2147483647, %v4618
          %vm5145 = vcmp.eq.f32.partialorder %v5144, 8.507059e+37
          %v5146 = vand.u32 %v4618, 2147483648
          %v5147 = vor.u32 1.1754944e-38, %v5146
          %v5148 = vsel %vm5145, %v5147, %v5143
          %v5149 = vmul.f32 %v4407, %v5148
          %v5150 = vrcp.pop %v4623
          %v5151 = vmul.f32 %v4623, %v5150
          %v5152 = vsub.f32 1.0, %v5151
          %v5153 = vmul.f32 %v5150, %v5152
          %v5154 = vadd.f32 %v5150, %v5153
          %vm5155 = vweird.f32 %v4623
          %vm5156 = vweird.f32 %v5150
          %vm5157 = vmor %vm5155, %vm5156
          %v5158 = vsel %vm5157, %v5150, %v5154
          %v5159 = vand.u32 2147483647, %v4623
          %vm5160 = vcmp.eq.f32.partialorder %v5159, 8.507059e+37
          %v5161 = vand.u32 %v4623, 2147483648
          %v5162 = vor.u32 1.1754944e-38, %v5161
          %v5163 = vsel %vm5160, %v5162, %v5158
          %v5164 = vmul.f32 %v4408, %v5163
          %v5165 = vrcp.pop %v4628
          %v5166 = vmul.f32 %v4628, %v5165
          %v5167 = vsub.f32 1.0, %v5166
          %v5168 = vmul.f32 %v5165, %v5167
          %v5169 = vadd.f32 %v5165, %v5168
          %vm5170 = vweird.f32 %v4628
          %vm5171 = vweird.f32 %v5165
          %vm5172 = vmor %vm5170, %vm5171
          %v5173 = vsel %vm5172, %v5165, %v5169
          %v5174 = vand.u32 2147483647, %v4628
          %vm5175 = vcmp.eq.f32.partialorder %v5174, 8.507059e+37
          %v5176 = vand.u32 %v4628, 2147483648
          %v5177 = vor.u32 1.1754944e-38, %v5176
          %v5178 = vsel %vm5175, %v5177, %v5173
          %v5179 = vmul.f32 %v4409, %v5178
          %v5180 = vrcp.pop %v4633
          %v5181 = vmul.f32 %v4633, %v5180
          %v5182 = vsub.f32 1.0, %v5181
          %v5183 = vmul.f32 %v5180, %v5182
          %v5184 = vadd.f32 %v5180, %v5183
          %vm5185 = vweird.f32 %v4633
          %vm5186 = vweird.f32 %v5180
          %vm5187 = vmor %vm5185, %vm5186
          %v5188 = vsel %vm5187, %v5180, %v5184
          %v5189 = vand.u32 2147483647, %v4633
          %vm5190 = vcmp.eq.f32.partialorder %v5189, 8.507059e+37
          %v5191 = vand.u32 %v4633, 2147483648
          %v5192 = vor.u32 1.1754944e-38, %v5191
          %v5193 = vsel %vm5190, %v5192, %v5188
          %v5194 = vmul.f32 %v4410, %v5193
          %v5195 = vrcp.pop %v4638
          %v5196 = vmul.f32 %v4638, %v5195
          %v5197 = vsub.f32 1.0, %v5196
          %v5198 = vmul.f32 %v5195, %v5197
          %v5199 = vadd.f32 %v5195, %v5198
          %vm5200 = vweird.f32 %v4638
          %vm5201 = vweird.f32 %v5195
          %vm5202 = vmor %vm5200, %vm5201
          %v5203 = vsel %vm5202, %v5195, %v5199
          %v5204 = vand.u32 2147483647, %v4638
          %vm5205 = vcmp.eq.f32.partialorder %v5204, 8.507059e+37
          %v5206 = vand.u32 %v4638, 2147483648
          %v5207 = vor.u32 1.1754944e-38, %v5206
          %v5208 = vsel %vm5205, %v5207, %v5203
          %v5209 = vmul.f32 %v4411, %v5208
          %v5210 = vrcp.pop %v4643
          %v5211 = vmul.f32 %v4643, %v5210
          %v5212 = vsub.f32 1.0, %v5211
          %v5213 = vmul.f32 %v5210, %v5212
          %v5214 = vadd.f32 %v5210, %v5213
          %vm5215 = vweird.f32 %v4643
          %vm5216 = vweird.f32 %v5210
          %vm5217 = vmor %vm5215, %vm5216
          %v5218 = vsel %vm5217, %v5210, %v5214
          %v5219 = vand.u32 2147483647, %v4643
          %vm5220 = vcmp.eq.f32.partialorder %v5219, 8.507059e+37
          %v5221 = vand.u32 %v4643, 2147483648
          %v5222 = vor.u32 1.1754944e-38, %v5221
          %v5223 = vsel %vm5220, %v5222, %v5218
          %v5224 = vmul.f32 %v4412, %v5223
          %v5225 = vrcp.pop %v4648
          %v5226 = vmul.f32 %v4648, %v5225
          %v5227 = vsub.f32 1.0, %v5226
          %v5228 = vmul.f32 %v5225, %v5227
          %v5229 = vadd.f32 %v5225, %v5228
          %vm5230 = vweird.f32 %v4648
          %vm5231 = vweird.f32 %v5225
          %vm5232 = vmor %vm5230, %vm5231
          %v5233 = vsel %vm5232, %v5225, %v5229
          %v5234 = vand.u32 2147483647, %v4648
          %vm5235 = vcmp.eq.f32.partialorder %v5234, 8.507059e+37
          %v5236 = vand.u32 %v4648, 2147483648
          %v5237 = vor.u32 1.1754944e-38, %v5236
          %v5238 = vsel %vm5235, %v5237, %v5233
          %v5239 = vmul.f32 %v4413, %v5238
          %v5240 = vrcp.pop %v4653
          %v5241 = vmul.f32 %v4653, %v5240
          %v5242 = vsub.f32 1.0, %v5241
          %v5243 = vmul.f32 %v5240, %v5242
          %v5244 = vadd.f32 %v5240, %v5243
          %vm5245 = vweird.f32 %v4653
          %vm5246 = vweird.f32 %v5240
          %vm5247 = vmor %vm5245, %vm5246
          %v5248 = vsel %vm5247, %v5240, %v5244
          %v5249 = vand.u32 2147483647, %v4653
          %vm5250 = vcmp.eq.f32.partialorder %v5249, 8.507059e+37
          %v5251 = vand.u32 %v4653, 2147483648
          %v5252 = vor.u32 1.1754944e-38, %v5251
          %v5253 = vsel %vm5250, %v5252, %v5248
          %v5254 = vmul.f32 %v4414, %v5253
          %v5255 = vrcp.pop %v4658
          %v5256 = vmul.f32 %v4658, %v5255
          %v5257 = vsub.f32 1.0, %v5256
          %v5258 = vmul.f32 %v5255, %v5257
          %v5259 = vadd.f32 %v5255, %v5258
          %vm5260 = vweird.f32 %v4658
          %vm5261 = vweird.f32 %v5255
          %vm5262 = vmor %vm5260, %vm5261
          %v5263 = vsel %vm5262, %v5255, %v5259
          %v5264 = vand.u32 2147483647, %v4658
          %vm5265 = vcmp.eq.f32.partialorder %v5264, 8.507059e+37
          %v5266 = vand.u32 %v4658, 2147483648
          %v5267 = vor.u32 1.1754944e-38, %v5266
          %v5268 = vsel %vm5265, %v5267, %v5263
          %v5269 = vmul.f32 %v4415, %v5268
          %v5270 = vrcp.pop %v4663
          %v5271 = vmul.f32 %v4663, %v5270
          %v5272 = vsub.f32 1.0, %v5271
          %v5273 = vmul.f32 %v5270, %v5272
          %v5274 = vadd.f32 %v5270, %v5273
          %vm5275 = vweird.f32 %v4663
          %vm5276 = vweird.f32 %v5270
          %vm5277 = vmor %vm5275, %vm5276
          %v5278 = vsel %vm5277, %v5270, %v5274
          %v5279 = vand.u32 2147483647, %v4663
          %vm5280 = vcmp.eq.f32.partialorder %v5279, 8.507059e+37
          %v5281 = vand.u32 %v4663, 2147483648
          %v5282 = vor.u32 1.1754944e-38, %v5281
          %v5283 = vsel %vm5280, %v5282, %v5278
          %v5284 = vmul.f32 %v4416, %v5283
          %v5285 = vrcp.pop %v4668
          %v5286 = vmul.f32 %v4668, %v5285
          %v5287 = vsub.f32 1.0, %v5286
          %v5288 = vmul.f32 %v5285, %v5287
          %v5289 = vadd.f32 %v5285, %v5288
          %vm5290 = vweird.f32 %v4668
          %vm5291 = vweird.f32 %v5285
          %vm5292 = vmor %vm5290, %vm5291
          %v5293 = vsel %vm5292, %v5285, %v5289
          %v5294 = vand.u32 2147483647, %v4668
          %vm5295 = vcmp.eq.f32.partialorder %v5294, 8.507059e+37
          %v5296 = vand.u32 %v4668, 2147483648
          %v5297 = vor.u32 1.1754944e-38, %v5296
          %v5298 = vsel %vm5295, %v5297, %v5293
          %v5299 = vmul.f32 %v4417, %v5298
          %v5300 = vrcp.pop %v4673
          %v5301 = vmul.f32 %v4673, %v5300
          %v5302 = vsub.f32 1.0, %v5301
          %v5303 = vmul.f32 %v5300, %v5302
          %v5304 = vadd.f32 %v5300, %v5303
          %vm5305 = vweird.f32 %v4673
          %vm5306 = vweird.f32 %v5300
          %vm5307 = vmor %vm5305, %vm5306
          %v5308 = vsel %vm5307, %v5300, %v5304
          %v5309 = vand.u32 2147483647, %v4673
          %vm5310 = vcmp.eq.f32.partialorder %v5309, 8.507059e+37
          %v5311 = vand.u32 %v4673, 2147483648
          %v5312 = vor.u32 1.1754944e-38, %v5311
          %v5313 = vsel %vm5310, %v5312, %v5308
          %v5314 = vmul.f32 %v4418, %v5313
          %v5315 = vrcp.pop %v4678
          %v5316 = vmul.f32 %v4678, %v5315
          %v5317 = vsub.f32 1.0, %v5316
          %v5318 = vmul.f32 %v5315, %v5317
          %v5319 = vadd.f32 %v5315, %v5318
          %vm5320 = vweird.f32 %v4678
          %vm5321 = vweird.f32 %v5315
          %vm5322 = vmor %vm5320, %vm5321
          %v5323 = vsel %vm5322, %v5315, %v5319
          %v5324 = vand.u32 2147483647, %v4678
          %vm5325 = vcmp.eq.f32.partialorder %v5324, 8.507059e+37
          %v5326 = vand.u32 %v4678, 2147483648
          %v5327 = vor.u32 1.1754944e-38, %v5326
          %v5328 = vsel %vm5325, %v5327, %v5323
          %v5329 = vmul.f32 %v4419, %v5328
          %v5330 = vrcp.pop %v4683
          %v5331 = vmul.f32 %v4683, %v5330
          %v5332 = vsub.f32 1.0, %v5331
          %v5333 = vmul.f32 %v5330, %v5332
          %v5334 = vadd.f32 %v5330, %v5333
          %vm5335 = vweird.f32 %v4683
          %vm5336 = vweird.f32 %v5330
          %vm5337 = vmor %vm5335, %vm5336
          %v5338 = vsel %vm5337, %v5330, %v5334
          %v5339 = vand.u32 2147483647, %v4683
          %vm5340 = vcmp.eq.f32.partialorder %v5339, 8.507059e+37
          %v5341 = vand.u32 %v4683, 2147483648
          %v5342 = vor.u32 1.1754944e-38, %v5341
          %v5343 = vsel %vm5340, %v5342, %v5338
          %v5344 = vmul.f32 %v4420, %v5343
          %v5345 = vrcp.pop %v4688
          %v5346 = vmul.f32 %v4688, %v5345
          %v5347 = vsub.f32 1.0, %v5346
          %v5348 = vmul.f32 %v5345, %v5347
          %v5349 = vadd.f32 %v5345, %v5348
          %vm5350 = vweird.f32 %v4688
          %vm5351 = vweird.f32 %v5345
          %vm5352 = vmor %vm5350, %vm5351
          %v5353 = vsel %vm5352, %v5345, %v5349
          %v5354 = vand.u32 2147483647, %v4688
          %vm5355 = vcmp.eq.f32.partialorder %v5354, 8.507059e+37
          %v5356 = vand.u32 %v4688, 2147483648
          %v5357 = vor.u32 1.1754944e-38, %v5356
          %v5358 = vsel %vm5355, %v5357, %v5353
          %v5359 = vmul.f32 %v4421, %v5358
          %v5360 = vrcp.pop %v4693
          %v5361 = vmul.f32 %v4693, %v5360
          %v5362 = vsub.f32 1.0, %v5361
          %v5363 = vmul.f32 %v5360, %v5362
          %v5364 = vadd.f32 %v5360, %v5363
          %vm5365 = vweird.f32 %v4693
          %vm5366 = vweird.f32 %v5360
          %vm5367 = vmor %vm5365, %vm5366
          %v5368 = vsel %vm5367, %v5360, %v5364
          %v5369 = vand.u32 2147483647, %v4693
          %vm5370 = vcmp.eq.f32.partialorder %v5369, 8.507059e+37
          %v5371 = vand.u32 %v4693, 2147483648
          %v5372 = vor.u32 1.1754944e-38, %v5371
          %v5373 = vsel %vm5370, %v5372, %v5368
          %v5374 = vmul.f32 %v4422, %v5373
          %v5375 = vrcp.pop %v4698
          %v5376 = vmul.f32 %v4698, %v5375
          %v5377 = vsub.f32 1.0, %v5376
          %v5378 = vmul.f32 %v5375, %v5377
          %v5379 = vadd.f32 %v5375, %v5378
          %vm5380 = vweird.f32 %v4698
          %vm5381 = vweird.f32 %v5375
          %vm5382 = vmor %vm5380, %vm5381
          %v5383 = vsel %vm5382, %v5375, %v5379
          %v5384 = vand.u32 2147483647, %v4698
          %vm5385 = vcmp.eq.f32.partialorder %v5384, 8.507059e+37
          %v5386 = vand.u32 %v4698, 2147483648
          %v5387 = vor.u32 1.1754944e-38, %v5386
          %v5388 = vsel %vm5385, %v5387, %v5383
          %v5389 = vmul.f32 %v4423, %v5388
          %v5390 = vrcp.pop %v4703
          %v5391 = vmul.f32 %v4703, %v5390
          %v5392 = vsub.f32 1.0, %v5391
          %v5393 = vmul.f32 %v5390, %v5392
          %v5394 = vadd.f32 %v5390, %v5393
          %vm5395 = vweird.f32 %v4703
          %vm5396 = vweird.f32 %v5390
          %vm5397 = vmor %vm5395, %vm5396
          %v5398 = vsel %vm5397, %v5390, %v5394
          %v5399 = vand.u32 2147483647, %v4703
          %vm5400 = vcmp.eq.f32.partialorder %v5399, 8.507059e+37
          %v5401 = vand.u32 %v4703, 2147483648
          %v5402 = vor.u32 1.1754944e-38, %v5401
          %v5403 = vsel %vm5400, %v5402, %v5398
          %v5404 = vmul.f32 %v4424, %v5403
          %v5405 = vrcp.pop %v4708
          %v5406 = vmul.f32 %v4708, %v5405
          %v5407 = vsub.f32 1.0, %v5406
          %v5408 = vmul.f32 %v5405, %v5407
          %v5409 = vadd.f32 %v5405, %v5408
          %vm5410 = vweird.f32 %v4708
          %vm5411 = vweird.f32 %v5405
          %vm5412 = vmor %vm5410, %vm5411
          %v5413 = vsel %vm5412, %v5405, %v5409
          %v5414 = vand.u32 2147483647, %v4708
          %vm5415 = vcmp.eq.f32.partialorder %v5414, 8.507059e+37
          %v5416 = vand.u32 %v4708, 2147483648
          %v5417 = vor.u32 1.1754944e-38, %v5416
          %v5418 = vsel %vm5415, %v5417, %v5413
          %v5419 = vmul.f32 %v4425, %v5418
          %v5420 = vrcp.pop %v4713
          %v5421 = vmul.f32 %v4713, %v5420
          %v5422 = vsub.f32 1.0, %v5421
          %v5423 = vmul.f32 %v5420, %v5422
          %v5424 = vadd.f32 %v5420, %v5423
          %vm5425 = vweird.f32 %v4713
          %vm5426 = vweird.f32 %v5420
          %vm5427 = vmor %vm5425, %vm5426
          %v5428 = vsel %vm5427, %v5420, %v5424
          %v5429 = vand.u32 2147483647, %v4713
          %vm5430 = vcmp.eq.f32.partialorder %v5429, 8.507059e+37
          %v5431 = vand.u32 %v4713, 2147483648
          %v5432 = vor.u32 1.1754944e-38, %v5431
          %v5433 = vsel %vm5430, %v5432, %v5428
          %v5434 = vmul.f32 %v4426, %v5433
          %v5435 = vrcp.pop %v4718
          %v5436 = vmul.f32 %v4718, %v5435
          %v5437 = vsub.f32 1.0, %v5436
          %v5438 = vmul.f32 %v5435, %v5437
          %v5439 = vadd.f32 %v5435, %v5438
          %vm5440 = vweird.f32 %v4718
          %vm5441 = vweird.f32 %v5435
          %vm5442 = vmor %vm5440, %vm5441
          %v5443 = vsel %vm5442, %v5435, %v5439
          %v5444 = vand.u32 2147483647, %v4718
          %vm5445 = vcmp.eq.f32.partialorder %v5444, 8.507059e+37
          %v5446 = vand.u32 %v4718, 2147483648
          %v5447 = vor.u32 1.1754944e-38, %v5446
          %v5448 = vsel %vm5445, %v5447, %v5443
          %v5449 = vmul.f32 %v4427, %v5448
          %v5450 = vrcp.pop %v4723
          %v5451 = vmul.f32 %v4723, %v5450
          %v5452 = vsub.f32 1.0, %v5451
          %v5453 = vmul.f32 %v5450, %v5452
          %v5454 = vadd.f32 %v5450, %v5453
          %vm5455 = vweird.f32 %v4723
          %vm5456 = vweird.f32 %v5450
          %vm5457 = vmor %vm5455, %vm5456
          %v5458 = vsel %vm5457, %v5450, %v5454
          %v5459 = vand.u32 2147483647, %v4723
          %vm5460 = vcmp.eq.f32.partialorder %v5459, 8.507059e+37
          %v5461 = vand.u32 %v4723, 2147483648
          %v5462 = vor.u32 1.1754944e-38, %v5461
          %v5463 = vsel %vm5460, %v5462, %v5458
          %v5464 = vmul.f32 %v4428, %v5463
          %v5465 = vrcp.pop %v4728
          %v5466 = vmul.f32 %v4728, %v5465
          %v5467 = vsub.f32 1.0, %v5466
          %v5468 = vmul.f32 %v5465, %v5467
          %v5469 = vadd.f32 %v5465, %v5468
          %vm5470 = vweird.f32 %v4728
          %vm5471 = vweird.f32 %v5465
          %vm5472 = vmor %vm5470, %vm5471
          %v5473 = vsel %vm5472, %v5465, %v5469
          %v5474 = vand.u32 2147483647, %v4728
          %vm5475 = vcmp.eq.f32.partialorder %v5474, 8.507059e+37
          %v5476 = vand.u32 %v4728, 2147483648
          %v5477 = vor.u32 1.1754944e-38, %v5476
          %v5478 = vsel %vm5475, %v5477, %v5473
          %v5479 = vmul.f32 %v4429, %v5478
          %v5480 = vrcp.pop %v4733
          %v5481 = vmul.f32 %v4733, %v5480
          %v5482 = vsub.f32 1.0, %v5481
          %v5483 = vmul.f32 %v5480, %v5482
          %v5484 = vadd.f32 %v5480, %v5483
          %vm5485 = vweird.f32 %v4733
          %vm5486 = vweird.f32 %v5480
          %vm5487 = vmor %vm5485, %vm5486
          %v5488 = vsel %vm5487, %v5480, %v5484
          %v5489 = vand.u32 2147483647, %v4733
          %vm5490 = vcmp.eq.f32.partialorder %v5489, 8.507059e+37
          %v5491 = vand.u32 %v4733, 2147483648
          %v5492 = vor.u32 1.1754944e-38, %v5491
          %v5493 = vsel %vm5490, %v5492, %v5488
          %v5494 = vmul.f32 %v4430, %v5493
          %v5495 = vrcp.pop %v4738
          %v5496 = vmul.f32 %v4738, %v5495
          %v5497 = vsub.f32 1.0, %v5496
          %v5498 = vmul.f32 %v5495, %v5497
          %v5499 = vadd.f32 %v5495, %v5498
          %vm5500 = vweird.f32 %v4738
          %vm5501 = vweird.f32 %v5495
          %vm5502 = vmor %vm5500, %vm5501
          %v5503 = vsel %vm5502, %v5495, %v5499
          %v5504 = vand.u32 2147483647, %v4738
          %vm5505 = vcmp.eq.f32.partialorder %v5504, 8.507059e+37
          %v5506 = vand.u32 %v4738, 2147483648
          %v5507 = vor.u32 1.1754944e-38, %v5506
          %v5508 = vsel %vm5505, %v5507, %v5503
          %v5509 = vmul.f32 %v4431, %v5508
          %v5510 = vrcp.pop %v4743
          %v5511 = vmul.f32 %v4743, %v5510
          %v5512 = vsub.f32 1.0, %v5511
          %v5513 = vmul.f32 %v5510, %v5512
          %v5514 = vadd.f32 %v5510, %v5513
          %vm5515 = vweird.f32 %v4743
          %vm5516 = vweird.f32 %v5510
          %vm5517 = vmor %vm5515, %vm5516
          %v5518 = vsel %vm5517, %v5510, %v5514
          %v5519 = vand.u32 2147483647, %v4743
          %vm5520 = vcmp.eq.f32.partialorder %v5519, 8.507059e+37
          %v5521 = vand.u32 %v4743, 2147483648
          %v5522 = vor.u32 1.1754944e-38, %v5521
          %v5523 = vsel %vm5520, %v5522, %v5518
          %v5524 = vmul.f32 %v4432, %v5523
          %v5525 = vrcp.pop %v4748
          %v5526 = vmul.f32 %v4748, %v5525
          %v5527 = vsub.f32 1.0, %v5526
          %v5528 = vmul.f32 %v5525, %v5527
          %v5529 = vadd.f32 %v5525, %v5528
          %vm5530 = vweird.f32 %v4748
          %vm5531 = vweird.f32 %v5525
          %vm5532 = vmor %vm5530, %vm5531
          %v5533 = vsel %vm5532, %v5525, %v5529
          %v5534 = vand.u32 2147483647, %v4748
          %vm5535 = vcmp.eq.f32.partialorder %v5534, 8.507059e+37
          %v5536 = vand.u32 %v4748, 2147483648
          %v5537 = vor.u32 1.1754944e-38, %v5536
          %v5538 = vsel %vm5535, %v5537, %v5533
          %v5539 = vmul.f32 %v4433, %v5538
          %v5540 = vrcp.pop %v4753
          %v5541 = vmul.f32 %v4753, %v5540
          %v5542 = vsub.f32 1.0, %v5541
          %v5543 = vmul.f32 %v5540, %v5542
          %v5544 = vadd.f32 %v5540, %v5543
          %vm5545 = vweird.f32 %v4753
          %vm5546 = vweird.f32 %v5540
          %vm5547 = vmor %vm5545, %vm5546
          %v5548 = vsel %vm5547, %v5540, %v5544
          %v5549 = vand.u32 2147483647, %v4753
          %vm5550 = vcmp.eq.f32.partialorder %v5549, 8.507059e+37
          %v5551 = vand.u32 %v4753, 2147483648
          %v5552 = vor.u32 1.1754944e-38, %v5551
          %v5553 = vsel %vm5550, %v5552, %v5548
          %v5554 = vmul.f32 %v4434, %v5553
          %v5555 = vrcp.pop %v4758
          %v5556 = vmul.f32 %v4758, %v5555
          %v5557 = vsub.f32 1.0, %v5556
          %v5558 = vmul.f32 %v5555, %v5557
          %v5559 = vadd.f32 %v5555, %v5558
          %vm5560 = vweird.f32 %v4758
          %vm5561 = vweird.f32 %v5555
          %vm5562 = vmor %vm5560, %vm5561
          %v5563 = vsel %vm5562, %v5555, %v5559
          %v5564 = vand.u32 2147483647, %v4758
          %vm5565 = vcmp.eq.f32.partialorder %v5564, 8.507059e+37
          %v5566 = vand.u32 %v4758, 2147483648
          %v5567 = vor.u32 1.1754944e-38, %v5566
          %v5568 = vsel %vm5565, %v5567, %v5563
          %v5569 = vmul.f32 %v4435, %v5568
          %v5570 = vrcp.pop %v4763
          %v5571 = vmul.f32 %v4763, %v5570
          %v5572 = vsub.f32 1.0, %v5571
          %v5573 = vmul.f32 %v5570, %v5572
          %v5574 = vadd.f32 %v5570, %v5573
          %vm5575 = vweird.f32 %v4763
          %vm5576 = vweird.f32 %v5570
          %vm5577 = vmor %vm5575, %vm5576
          %v5578 = vsel %vm5577, %v5570, %v5574
          %v5579 = vand.u32 2147483647, %v4763
          %vm5580 = vcmp.eq.f32.partialorder %v5579, 8.507059e+37
          %v5581 = vand.u32 %v4763, 2147483648
          %v5582 = vor.u32 1.1754944e-38, %v5581
          %v5583 = vsel %vm5580, %v5582, %v5578
          %v5584 = vmul.f32 %v4436, %v5583
          %v5585 = vrcp.pop %v4768
          %v5586 = vmul.f32 %v4768, %v5585
          %v5587 = vsub.f32 1.0, %v5586
          %v5588 = vmul.f32 %v5585, %v5587
          %v5589 = vadd.f32 %v5585, %v5588
          %vm5590 = vweird.f32 %v4768
          %vm5591 = vweird.f32 %v5585
          %vm5592 = vmor %vm5590, %vm5591
          %v5593 = vsel %vm5592, %v5585, %v5589
          %v5594 = vand.u32 2147483647, %v4768
          %vm5595 = vcmp.eq.f32.partialorder %v5594, 8.507059e+37
          %v5596 = vand.u32 %v4768, 2147483648
          %v5597 = vor.u32 1.1754944e-38, %v5596
          %v5598 = vsel %vm5595, %v5597, %v5593
          %v5599 = vmul.f32 %v4437, %v5598
          %v5600 = vrcp.pop %v4773
          %v5601 = vmul.f32 %v4773, %v5600
          %v5602 = vsub.f32 1.0, %v5601
          %v5603 = vmul.f32 %v5600, %v5602
          %v5604 = vadd.f32 %v5600, %v5603
          %vm5605 = vweird.f32 %v4773
          %vm5606 = vweird.f32 %v5600
          %vm5607 = vmor %vm5605, %vm5606
          %v5608 = vsel %vm5607, %v5600, %v5604
          %v5609 = vand.u32 2147483647, %v4773
          %vm5610 = vcmp.eq.f32.partialorder %v5609, 8.507059e+37
          %v5611 = vand.u32 %v4773, 2147483648
          %v5612 = vor.u32 1.1754944e-38, %v5611
          %v5613 = vsel %vm5610, %v5612, %v5608
          %v5614 = vmul.f32 %v4438, %v5613
          %v5615 = vrcp.pop %v4778
          %v5616 = vmul.f32 %v4778, %v5615
          %v5617 = vsub.f32 1.0, %v5616
          %v5618 = vmul.f32 %v5615, %v5617
          %v5619 = vadd.f32 %v5615, %v5618
          %vm5620 = vweird.f32 %v4778
          %vm5621 = vweird.f32 %v5615
          %vm5622 = vmor %vm5620, %vm5621
          %v5623 = vsel %vm5622, %v5615, %v5619
          %v5624 = vand.u32 2147483647, %v4778
          %vm5625 = vcmp.eq.f32.partialorder %v5624, 8.507059e+37
          %v5626 = vand.u32 %v4778, 2147483648
          %v5627 = vor.u32 1.1754944e-38, %v5626
          %v5628 = vsel %vm5625, %v5627, %v5623
          %v5629 = vmul.f32 %v4439, %v5628
          %v5630 = vrcp.pop %v4783
          %v5631 = vmul.f32 %v4783, %v5630
          %v5632 = vsub.f32 1.0, %v5631
          %v5633 = vmul.f32 %v5630, %v5632
          %v5634 = vadd.f32 %v5630, %v5633
          %vm5635 = vweird.f32 %v4783
          %vm5636 = vweird.f32 %v5630
          %vm5637 = vmor %vm5635, %vm5636
          %v5638 = vsel %vm5637, %v5630, %v5634
          %v5639 = vand.u32 2147483647, %v4783
          %vm5640 = vcmp.eq.f32.partialorder %v5639, 8.507059e+37
          %v5641 = vand.u32 %v4783, 2147483648
          %v5642 = vor.u32 1.1754944e-38, %v5641
          %v5643 = vsel %vm5640, %v5642, %v5638
          %v5644 = vmul.f32 %v4440, %v5643
          %v5645 = vrcp.pop %v4788
          %v5646 = vmul.f32 %v4788, %v5645
          %v5647 = vsub.f32 1.0, %v5646
          %v5648 = vmul.f32 %v5645, %v5647
          %v5649 = vadd.f32 %v5645, %v5648
          %vm5650 = vweird.f32 %v4788
          %vm5651 = vweird.f32 %v5645
          %vm5652 = vmor %vm5650, %vm5651
          %v5653 = vsel %vm5652, %v5645, %v5649
          %v5654 = vand.u32 2147483647, %v4788
          %vm5655 = vcmp.eq.f32.partialorder %v5654, 8.507059e+37
          %v5656 = vand.u32 %v4788, 2147483648
          %v5657 = vor.u32 1.1754944e-38, %v5656
          %v5658 = vsel %vm5655, %v5657, %v5653
          %v5659 = vmul.f32 %v4441, %v5658
          %v5660 = vrcp.pop %v4793
          %v5661 = vmul.f32 %v4793, %v5660
          %v5662 = vsub.f32 1.0, %v5661
          %v5663 = vmul.f32 %v5660, %v5662
          %v5664 = vadd.f32 %v5660, %v5663
          %vm5665 = vweird.f32 %v4793
          %vm5666 = vweird.f32 %v5660
          %vm5667 = vmor %vm5665, %vm5666
          %v5668 = vsel %vm5667, %v5660, %v5664
          %v5669 = vand.u32 2147483647, %v4793
          %vm5670 = vcmp.eq.f32.partialorder %v5669, 8.507059e+37
          %v5671 = vand.u32 %v4793, 2147483648
          %v5672 = vor.u32 1.1754944e-38, %v5671
          %v5673 = vsel %vm5670, %v5672, %v5668
          %v5674 = vmul.f32 %v4442, %v5673
          %v5675 = vrcp.pop %v4798
          %v5676 = vmul.f32 %v4798, %v5675
          %v5677 = vsub.f32 1.0, %v5676
          %v5678 = vmul.f32 %v5675, %v5677
          %v5679 = vadd.f32 %v5675, %v5678
          %vm5680 = vweird.f32 %v4798
          %vm5681 = vweird.f32 %v5675
          %vm5682 = vmor %vm5680, %vm5681
          %v5683 = vsel %vm5682, %v5675, %v5679
          %v5684 = vand.u32 2147483647, %v4798
          %vm5685 = vcmp.eq.f32.partialorder %v5684, 8.507059e+37
          %v5686 = vand.u32 %v4798, 2147483648
          %v5687 = vor.u32 1.1754944e-38, %v5686
          %v5688 = vsel %vm5685, %v5687, %v5683
          %v5689 = vmul.f32 %v4443, %v5688
          %v5690 = vrcp.pop %v4803
          %v5691 = vmul.f32 %v4803, %v5690
          %v5692 = vsub.f32 1.0, %v5691
          %v5693 = vmul.f32 %v5690, %v5692
          %v5694 = vadd.f32 %v5690, %v5693
          %vm5695 = vweird.f32 %v4803
          %vm5696 = vweird.f32 %v5690
          %vm5697 = vmor %vm5695, %vm5696
          %v5698 = vsel %vm5697, %v5690, %v5694
          %v5699 = vand.u32 2147483647, %v4803
          %vm5700 = vcmp.eq.f32.partialorder %v5699, 8.507059e+37
          %v5701 = vand.u32 %v4803, 2147483648
          %v5702 = vor.u32 1.1754944e-38, %v5701
          %v5703 = vsel %vm5700, %v5702, %v5698
          %v5704 = vmul.f32 %v4444, %v5703
          %v5705 = vrcp.pop %v4808
          %v5706 = vmul.f32 %v4808, %v5705
          %v5707 = vsub.f32 1.0, %v5706
          %v5708 = vmul.f32 %v5705, %v5707
          %v5709 = vadd.f32 %v5705, %v5708
          %vm5710 = vweird.f32 %v4808
          %vm5711 = vweird.f32 %v5705
          %vm5712 = vmor %vm5710, %vm5711
          %v5713 = vsel %vm5712, %v5705, %v5709
          %v5714 = vand.u32 2147483647, %v4808
          %vm5715 = vcmp.eq.f32.partialorder %v5714, 8.507059e+37
          %v5716 = vand.u32 %v4808, 2147483648
          %v5717 = vor.u32 1.1754944e-38, %v5716
          %v5718 = vsel %vm5715, %v5717, %v5713
          %v5719 = vmul.f32 %v4445, %v5718
          %v5720 = vrcp.pop %v4813
          %v5721 = vmul.f32 %v4813, %v5720
          %v5722 = vsub.f32 1.0, %v5721
          %v5723 = vmul.f32 %v5720, %v5722
          %v5724 = vadd.f32 %v5720, %v5723
          %vm5725 = vweird.f32 %v4813
          %vm5726 = vweird.f32 %v5720
          %vm5727 = vmor %vm5725, %vm5726
          %v5728 = vsel %vm5727, %v5720, %v5724
          %v5729 = vand.u32 2147483647, %v4813
          %vm5730 = vcmp.eq.f32.partialorder %v5729, 8.507059e+37
          %v5731 = vand.u32 %v4813, 2147483648
          %v5732 = vor.u32 1.1754944e-38, %v5731
          %v5733 = vsel %vm5730, %v5732, %v5728
          %v5734 = vmul.f32 %v4446, %v5733
          %v5735 = vrcp.pop %v4818
          %v5736 = vmul.f32 %v4818, %v5735
          %v5737 = vsub.f32 1.0, %v5736
          %v5738 = vmul.f32 %v5735, %v5737
          %v5739 = vadd.f32 %v5735, %v5738
          %vm5740 = vweird.f32 %v4818
          %vm5741 = vweird.f32 %v5735
          %vm5742 = vmor %vm5740, %vm5741
          %v5743 = vsel %vm5742, %v5735, %v5739
          %v5744 = vand.u32 2147483647, %v4818
          %vm5745 = vcmp.eq.f32.partialorder %v5744, 8.507059e+37
          %v5746 = vand.u32 %v4818, 2147483648
          %v5747 = vor.u32 1.1754944e-38, %v5746
          %v5748 = vsel %vm5745, %v5747, %v5743
          %v5749 = vmul.f32 %v4447, %v5748
          %v5750 = vrcp.pop %v4823
          %v5751 = vmul.f32 %v4823, %v5750
          %v5752 = vsub.f32 1.0, %v5751
          %v5753 = vmul.f32 %v5750, %v5752
          %v5754 = vadd.f32 %v5750, %v5753
          %vm5755 = vweird.f32 %v4823
          %vm5756 = vweird.f32 %v5750
          %vm5757 = vmor %vm5755, %vm5756
          %v5758 = vsel %vm5757, %v5750, %v5754
          %v5759 = vand.u32 2147483647, %v4823
          %vm5760 = vcmp.eq.f32.partialorder %v5759, 8.507059e+37
          %v5761 = vand.u32 %v4823, 2147483648
          %v5762 = vor.u32 1.1754944e-38, %v5761
          %v5763 = vsel %vm5760, %v5762, %v5758
          %v5764 = vmul.f32 %v4448, %v5763
          %v5765 = vrcp.pop %v4828
          %v5766 = vmul.f32 %v4828, %v5765
          %v5767 = vsub.f32 1.0, %v5766
          %v5768 = vmul.f32 %v5765, %v5767
          %v5769 = vadd.f32 %v5765, %v5768
          %vm5770 = vweird.f32 %v4828
          %vm5771 = vweird.f32 %v5765
          %vm5772 = vmor %vm5770, %vm5771
          %v5773 = vsel %vm5772, %v5765, %v5769
          %v5774 = vand.u32 2147483647, %v4828
          %vm5775 = vcmp.eq.f32.partialorder %v5774, 8.507059e+37
          %v5776 = vand.u32 %v4828, 2147483648
          %v5777 = vor.u32 1.1754944e-38, %v5776
          %v5778 = vsel %vm5775, %v5777, %v5773
          %v5779 = vmul.f32 %v4449, %v5778
          %v5780 = vrcp.pop %v4833
          %v5781 = vmul.f32 %v4833, %v5780
          %v5782 = vsub.f32 1.0, %v5781
          %v5783 = vmul.f32 %v5780, %v5782
          %v5784 = vadd.f32 %v5780, %v5783
          %vm5785 = vweird.f32 %v4833
          %vm5786 = vweird.f32 %v5780
          %vm5787 = vmor %vm5785, %vm5786
          %v5788 = vsel %vm5787, %v5780, %v5784
          %v5789 = vand.u32 2147483647, %v4833
          %vm5790 = vcmp.eq.f32.partialorder %v5789, 8.507059e+37
          %v5791 = vand.u32 %v4833, 2147483648
          %v5792 = vor.u32 1.1754944e-38, %v5791
          %v5793 = vsel %vm5790, %v5792, %v5788
          %v5794 = vmul.f32 %v4450, %v5793
          %v5795 = vpack.c.bf16 %v4849, %v4849
          %v5796 = vpack.c.bf16 %v4864, %v4864
          %v5797 = vpack.c.bf16 %v4879, %v4879
          %v5798 = vpack.c.bf16 %v4894, %v4894
          %v5799 = vpack.c.bf16 %v4909, %v4909
          %v5800 = vpack.c.bf16 %v4924, %v4924
          %v5801 = vpack.c.bf16 %v4939, %v4939
          %v5802 = vpack.c.bf16 %v4954, %v4954
          %v5803 = vpack.c.bf16 %v4969, %v4969
          %v5804 = vpack.c.bf16 %v4984, %v4984
          %v5805 = vpack.c.bf16 %v4999, %v4999
          %v5806 = vpack.c.bf16 %v5014, %v5014
          %v5807 = vpack.c.bf16 %v5029, %v5029
          %v5808 = vpack.c.bf16 %v5044, %v5044
          %v5809 = vpack.c.bf16 %v5059, %v5059
          %v5810 = vpack.c.bf16 %v5074, %v5074
          %v5811 = vpack.c.bf16 %v5089, %v5089
          %v5812 = vpack.c.bf16 %v5104, %v5104
          %v5813 = vpack.c.bf16 %v5119, %v5119
          %v5814 = vpack.c.bf16 %v5134, %v5134
          %v5815 = vpack.c.bf16 %v5149, %v5149
          %v5816 = vpack.c.bf16 %v5164, %v5164
          %v5817 = vpack.c.bf16 %v5179, %v5179
          %v5818 = vpack.c.bf16 %v5194, %v5194
          %v5819 = vpack.c.bf16 %v5209, %v5209
          %v5820 = vpack.c.bf16 %v5224, %v5224
          %v5821 = vpack.c.bf16 %v5239, %v5239
          %v5822 = vpack.c.bf16 %v5254, %v5254
          %v5823 = vpack.c.bf16 %v5269, %v5269
          %v5824 = vpack.c.bf16 %v5284, %v5284
          %v5825 = vpack.c.bf16 %v5299, %v5299
          %v5826 = vpack.c.bf16 %v5314, %v5314
          %v5827 = vpack.c.bf16 %v5329, %v5329
          %v5828 = vpack.c.bf16 %v5344, %v5344
          %v5829 = vpack.c.bf16 %v5359, %v5359
          %v5830 = vpack.c.bf16 %v5374, %v5374
          %v5831 = vpack.c.bf16 %v5389, %v5389
          %v5832 = vpack.c.bf16 %v5404, %v5404
          %v5833 = vpack.c.bf16 %v5419, %v5419
          %v5834 = vpack.c.bf16 %v5434, %v5434
          %v5835 = vpack.c.bf16 %v5449, %v5449
          %v5836 = vpack.c.bf16 %v5464, %v5464
          %v5837 = vpack.c.bf16 %v5479, %v5479
          %v5838 = vpack.c.bf16 %v5494, %v5494
          %v5839 = vpack.c.bf16 %v5509, %v5509
          %v5840 = vpack.c.bf16 %v5524, %v5524
          %v5841 = vpack.c.bf16 %v5539, %v5539
          %v5842 = vpack.c.bf16 %v5554, %v5554
          %v5843 = vpack.c.bf16 %v5569, %v5569
          %v5844 = vpack.c.bf16 %v5584, %v5584
          %v5845 = vpack.c.bf16 %v5599, %v5599
          %v5846 = vpack.c.bf16 %v5614, %v5614
          %v5847 = vpack.c.bf16 %v5629, %v5629
          %v5848 = vpack.c.bf16 %v5644, %v5644
          %v5849 = vpack.c.bf16 %v5659, %v5659
          %v5850 = vpack.c.bf16 %v5674, %v5674
          %v5851 = vpack.c.bf16 %v5689, %v5689
          %v5852 = vpack.c.bf16 %v5704, %v5704
          %v5853 = vpack.c.bf16 %v5719, %v5719
          %v5854 = vpack.c.bf16 %v5734, %v5734
          %v5855 = vpack.c.bf16 %v5749, %v5749
          %v5856 = vpack.c.bf16 %v5764, %v5764
          %v5857 = vpack.c.bf16 %v5779, %v5779
          %v5858 = vpack.c.bf16 %v5794, %v5794
          %5859 = vst [vmem:[%s304] sm:$0xf] %v5795
          %5860 = vst [vmem:[%s304 + $0x4] sm:$0xf] %v5796
          %5861 = vst [vmem:[%s304 + $0x8] sm:$0xf] %v5797
          %5862 = vst [vmem:[%s304 + $0xc] sm:$0xf] %v5798
          %5863 = vst [vmem:[%s304 + $0x10] sm:$0xf] %v5799
          %5864 = vst [vmem:[%s304 + $0x14] sm:$0xf] %v5800
          %5865 = vst [vmem:[%s304 + $0x18] sm:$0xf] %v5801
          %5866 = vst [vmem:[%s304 + $0x1c] sm:$0xf] %v5802
          %5867 = vst [vmem:[%s304 + $0x20] sm:$0xf] %v5803
          %5868 = vst [vmem:[%s304 + $0x24] sm:$0xf] %v5804
          %5869 = vst [vmem:[%s304 + $0x28] sm:$0xf] %v5805
          %5870 = vst [vmem:[%s304 + $0x2c] sm:$0xf] %v5806
          %5871 = vst [vmem:[%s304 + $0x30] sm:$0xf] %v5807
          %5872 = vst [vmem:[%s304 + $0x34] sm:$0xf] %v5808
          %5873 = vst [vmem:[%s304 + $0x38] sm:$0xf] %v5809
          %5874 = vst [vmem:[%s304 + $0x3c] sm:$0xf] %v5810
          %5875 = vst [vmem:[%s304 + $0x40] sm:$0xf] %v5811
          %5876 = vst [vmem:[%s304 + $0x44] sm:$0xf] %v5812
          %5877 = vst [vmem:[%s304 + $0x48] sm:$0xf] %v5813
          %5878 = vst [vmem:[%s304 + $0x4c] sm:$0xf] %v5814
          %5879 = vst [vmem:[%s304 + $0x50] sm:$0xf] %v5815
          %5880 = vst [vmem:[%s304 + $0x54] sm:$0xf] %v5816
          %5881 = vst [vmem:[%s304 + $0x58] sm:$0xf] %v5817
          %5882 = vst [vmem:[%s304 + $0x5c] sm:$0xf] %v5818
          %5883 = vst [vmem:[%s304 + $0x60] sm:$0xf] %v5819
          %5884 = vst [vmem:[%s304 + $0x64] sm:$0xf] %v5820
          %5885 = vst [vmem:[%s304 + $0x68] sm:$0xf] %v5821
          %5886 = vst [vmem:[%s304 + $0x6c] sm:$0xf] %v5822
          %5887 = vst [vmem:[%s304 + $0x70] sm:$0xf] %v5823
          %5888 = vst [vmem:[%s304 + $0x74] sm:$0xf] %v5824
          %5889 = vst [vmem:[%s304 + $0x78] sm:$0xf] %v5825
          %5890 = vst [vmem:[%s304 + $0x7c] sm:$0xf] %v5826
          %5891 = vst [vmem:[%s304 + $0x80] sm:$0xf] %v5827
          %5892 = vst [vmem:[%s304 + $0x84] sm:$0xf] %v5828
          %5893 = vst [vmem:[%s304 + $0x88] sm:$0xf] %v5829
          %5894 = vst [vmem:[%s304 + $0x8c] sm:$0xf] %v5830
          %5895 = vst [vmem:[%s304 + $0x90] sm:$0xf] %v5831
          %5896 = vst [vmem:[%s304 + $0x94] sm:$0xf] %v5832
          %5897 = vst [vmem:[%s304 + $0x98] sm:$0xf] %v5833
          %5898 = vst [vmem:[%s304 + $0x9c] sm:$0xf] %v5834
          %5899 = vst [vmem:[%s304 + $0xa0] sm:$0xf] %v5835
          %5900 = vst [vmem:[%s304 + $0xa4] sm:$0xf] %v5836
          %5901 = vst [vmem:[%s304 + $0xa8] sm:$0xf] %v5837
          %5902 = vst [vmem:[%s304 + $0xac] sm:$0xf] %v5838
          %5903 = vst [vmem:[%s304 + $0xb0] sm:$0xf] %v5839
          %5904 = vst [vmem:[%s304 + $0xb4] sm:$0xf] %v5840
          %5905 = vst [vmem:[%s304 + $0xb8] sm:$0xf] %v5841
          %5906 = vst [vmem:[%s304 + $0xbc] sm:$0xf] %v5842
          %5907 = vst [vmem:[%s304 + $0xc0] sm:$0xf] %v5843
          %5908 = vst [vmem:[%s304 + $0xc4] sm:$0xf] %v5844
          %5909 = vst [vmem:[%s304 + $0xc8] sm:$0xf] %v5845
          %5910 = vst [vmem:[%s304 + $0xcc] sm:$0xf] %v5846
          %5911 = vst [vmem:[%s304 + $0xd0] sm:$0xf] %v5847
          %5912 = vst [vmem:[%s304 + $0xd4] sm:$0xf] %v5848
          %5913 = vst [vmem:[%s304 + $0xd8] sm:$0xf] %v5849
          %5914 = vst [vmem:[%s304 + $0xdc] sm:$0xf] %v5850
          %5915 = vst [vmem:[%s304 + $0xe0] sm:$0xf] %v5851
          %5916 = vst [vmem:[%s304 + $0xe4] sm:$0xf] %v5852
          %5917 = vst [vmem:[%s304 + $0xe8] sm:$0xf] %v5853
          %5918 = vst [vmem:[%s304 + $0xec] sm:$0xf] %v5854
          %5919 = vst [vmem:[%s304 + $0xf0] sm:$0xf] %v5855
          %5920 = vst [vmem:[%s304 + $0xf4] sm:$0xf] %v5856
          %5921 = vst [vmem:[%s304 + $0xf8] sm:$0xf] %v5857
          %5922 = vst [vmem:[%s304 + $0xfc] sm:$0xf] %v5858
        $region52: #{tpu_custom_call.1} parent=31 // pred_fallthru
          _
        %s5923 = sand.u32 %s136, 1
        %s5924 = scalar_lea.sflag [#allocation8], %s5923
        %s5925 = sand.u32 %s136, 1
        %s5926 = smul.addr %s5925, 256
        %s5927 = scalar_lea.vmem [#allocation12], %s5926
        // Predicated region
        $region53: #{tpu_custom_call.1} parent=31 // pred_check
          %p5928 = pneg %p146
        $region54: #{tpu_custom_call.1} parent=31 // pred_check_branch
          %5930 = sbr.rel (%p5928) target = $region56
        $region55: #{tpu_custom_call.1} parent=31 // pred_region
          %s5931 = smul.u32 64, %s29
          %5933 = vsyncadd %s5924, 0
          %s5934 = smul.addr %s28, 64
          %s5935 = sadd.s32 %s5931, %s5934
          %s5936 = smul.addr %s5935, 4
          %s5937 = scalar_lea.hbm %s3, %s5936
          %s5938 = sshll.u32 %s5927, 4
          %s5939 = int_to_ptr.vmem [resolvable:$true] %s5938
          %s5940 = sshll.u32 %s5937, 4
          %s5941 = int_to_ptr.hbm [resolvable:$true] %s5940
          %5946 = dma.vmem_to_hbm [thread:$0]  %s5939, 4096, %s5941, %s5924, 64, 64, 4
        $region56: #{tpu_custom_call.1} parent=31 // pred_fallthru
          _
      $region32: #{tpu_custom_call.1} parent=5 // pred_fallthru
        _
      %p5947 = scmp.le.s32.totalorder 2, %s18
      // Predicated region
      $region57: #{tpu_custom_call.1} parent=5 // pred_check
        %p5948 = pneg %p5947
      $region58: #{tpu_custom_call.1} parent=5 // pred_check_branch
        %5950 = sbr.rel (%p5948) target = $region60
      $region59: #{tpu_custom_call.1} parent=5 // pred_region
        %s5951 = ssub.s32 %s18, 2
        // Predicated region
        $region61: #{tpu_custom_call.1} parent=59 // pred_check
          %p5952 = pneg %p152
        $region62: #{tpu_custom_call.1} parent=59 // pred_check_branch
          %5954 = sbr.rel (%p5952) target = $region64
        $region63: #{tpu_custom_call.1} parent=59 // pred_region
          %s5955 = sand.u32 %s137, 1
          %s5956 = scalar_lea.sflag [#allocation8], %s5955
          %s5957 = sand.u32 %s137, 1
          %s5958 = smul.addr %s5957, 256
          %s5959 = scalar_lea.vmem [#allocation12], %s5958
          %5961 = dma.done %s5956, 4096
        $region64: #{tpu_custom_call.1} parent=59 // pred_fallthru
          _
      $region60: #{tpu_custom_call.1} parent=5 // pred_fallthru
        _
    $region6: #{tpu_custom_call.1} parent=1 // loop_footer
      %s22 = sadd.s32 1, %s18
    $region7: #{tpu_custom_call.1} parent=1 // loop_footer_branch
      %17 = sbr.rel target = $region3
    $region8: #{tpu_custom_call.1} parent=1 // loop_exit
      _
    %5962 = vsyncpa [#allocation7], 1
    %s5963 = scalar_lea.sflag [#allocation7], 1
    %5964 = vsyncpa %s5963, 1
    %5965 = vsyncpa [#allocation10], 1
    %s5966 = scalar_lea.sflag [#allocation10], 1
    %5967 = vsyncpa %s5966, 1
    %5968 = vsyncpa [#allocation8], 1
    %s5969 = scalar_lea.sflag [#allocation8], 1
    %5970 = vsyncpa %s5969, 1

</llo_original>
